<compile_context>
chip_gen: v6e
topology: v6e:2x2x1
jax: 0.10.0
libtpu: 0.0.40
codegen_flags: <defaults>
</compile_context>

<pallas_src>
import jax
import jax.numpy as jnp
from jax.experimental import pallas as pl
from jax.experimental.pallas import tpu as pltpu

# ---- model config (small BERT-style encoder) --------------------------------
HIDDEN = 32
NUM_HEADS = 4
HEAD_DIM = HIDDEN // NUM_HEADS
INTERMEDIATE = 64
NUM_LAYERS = 2
LN_EPS = 1e-12                      # HF BERT default
_ATTN_SCALE = 1.0 / (HEAD_DIM ** 0.5)
_INV_SQRT2 = 0.7071067811865476

# Packed small-vector rows (one (L, N_VEC_ROWS, VEC_W) operand).
ROW_BO, ROW_LN1G, ROW_LN1B, ROW_BI, ROW_BO2, ROW_LN2G, ROW_LN2B = range(7)
ROW_BQ = 7
ROW_BK = 7 + NUM_HEADS
ROW_BV = 7 + 2 * NUM_HEADS
N_VEC_ROWS = 7 + 3 * NUM_HEADS      # 19
VEC_W = max(HIDDEN, INTERMEDIATE)   # 64


# ---------------------------- in-kernel helpers -------------------------------
def _erf(x):
    # Abramowitz & Stegun 7.1.26 rational approximation, |error| < 1.5e-7.
    p = 0.3275911
    a1, a2, a3, a4, a5 = (0.254829592, -0.284496736, 1.421413741,
                          -1.453152027, 1.061405429)
    sign = jnp.where(x >= 0.0, 1.0, -1.0)
    z = jnp.abs(x)
    t = 1.0 / (1.0 + p * z)
    poly = ((((a5 * t + a4) * t + a3) * t + a2) * t + a1) * t
    return sign * (1.0 - poly * jnp.exp(-z * z))


def _gelu(x):
    return 0.5 * x * (1.0 + _erf(x * _INV_SQRT2))


def _layernorm(x, gamma, beta):
    mu = jnp.mean(x, axis=-1, keepdims=True)
    var = jnp.mean(jnp.square(x - mu), axis=-1, keepdims=True)
    return (x - mu) * jax.lax.rsqrt(var + LN_EPS) * gamma + beta


# ---------------------------- fused encoder kernel ----------------------------
def _encoder_kernel(x_ref, mask_ref, wqkv_ref, wo_ref, wi_ref, wo2_ref,
                    vecs_ref, o_ref):
    # One grid step == one batch element.
    x = x_ref[0]                     # (S, H) f32 activations, VMEM-resident
    mask = mask_ref[0]               # (1, S) additive attention mask

    def vec(l, row, width):          # lane-aligned (offset 0) packed vector read
        return vecs_ref[l, row:row + 1, :width]        # (1, width)

    for l in range(NUM_LAYERS):                         # static unroll
        # ---- multi-head self-attention ----------------------------------
        # Per-head weights are free leading-dim Ref slices (no lane-offset
        # activation slices); output proj accumulates sum_h ctx_h @ Wo_h, so
        # there is no head concat.  Attention scale is folded into Wq / bq.
        attn = None
        for h in range(NUM_HEADS):                       # static unroll
            qh = jnp.dot(x, wqkv_ref[l, 0, h],
                         preferred_element_type=jnp.float32) + vec(l, ROW_BQ + h, HEAD_DIM)
            kh = jnp.dot(x, wqkv_ref[l, 1, h],
                         preferred_element_type=jnp.float32) + vec(l, ROW_BK + h, HEAD_DIM)
            vh = jnp.dot(x, wqkv_ref[l, 2, h],
                         preferred_element_type=jnp.float32) + vec(l, ROW_BV + h, HEAD_DIM)
            # scores = q @ k^T, no materialized transpose (contract last dims)
            s = jax.lax.dot_general(qh, kh, (((1,), (1,)), ((), ())),
                                    preferred_element_type=jnp.float32)   # (S, S)
            s = s + mask
            s = s - jnp.max(s, axis=-1, keepdims=True)
            p = jnp.exp(s)
            p = p / jnp.sum(p, axis=-1, keepdims=True)   # exact normalize (parity)
            ctx = jnp.dot(p, vh, preferred_element_type=jnp.float32)       # (S, D)
            part = jnp.dot(ctx, wo_ref[l, h], preferred_element_type=jnp.float32)
            attn = part if attn is None else attn + part
        attn = attn + vec(l, ROW_BO, HIDDEN)
        x = _layernorm(attn + x, vec(l, ROW_LN1G, HIDDEN), vec(l, ROW_LN1B, HIDDEN))

        # ---- GELU MLP + residual + LayerNorm ------------------------------
        inter = _gelu(jnp.dot(x, wi_ref[l], preferred_element_type=jnp.float32)
                      + vec(l, ROW_BI, INTERMEDIATE))
        mlp = (jnp.dot(inter, wo2_ref[l], preferred_element_type=jnp.float32)
               + vec(l, ROW_BO2, HIDDEN))
        x = _layernorm(mlp + x, vec(l, ROW_LN2G, HIDDEN), vec(l, ROW_LN2B, HIDDEN))

    # CLS token: first row of this batch element (sublane slice at offset 0).
    o_ref[0] = x[0:1, :]


# ---------------------------- wrapper ------------------------------------------
def biobert_encoder_forward(token_emb, packed, attention_mask=None):
    """token_emb: (B, S, H).  attention_mask: HF-style *additive* extended mask
    of shape (B, 1, 1, S) / (B, 1, S), or a (B, S) 0/1 keep-mask (converted).
    Returns the CLS-token output, shape (B, H)."""
    B, S, H = token_emb.shape
    if H != HIDDEN:
        raise ValueError(f"hidden size mismatch: {H} != {HIDDEN}")

    if attention_mask is None:
        mask_add = jnp.zeros((B, 1, S), jnp.float32)
    elif attention_mask.ndim == 2:
        # (B, S) 0/1 keep-mask -> additive extended mask (HF convention)
        mask_add = (1.0 - attention_mask.astype(jnp.float32)).reshape(B, 1, S) * -1e9
    else:
        if attention_mask.shape not in ((B, 1, 1, S), (B, 1, S)):
            raise ValueError(f"bad attention_mask shape {attention_mask.shape}")
        mask_add = attention_mask.astype(jnp.float32).reshape(B, 1, S)

    wqkv, wo, wi, wo2, vecs = (packed["wqkv"], packed["wo"], packed["wi"],
                               packed["wo2"], packed["vecs"])
    in_specs = [
        pl.BlockSpec((1, S, HIDDEN), lambda b: (b, 0, 0)),
        pl.BlockSpec((1, 1, S), lambda b: (b, 0, 0)),
        pl.BlockSpec(wqkv.shape, lambda b: (0, 0, 0, 0, 0)),
        pl.BlockSpec(wo.shape, lambda b: (0, 0, 0, 0)),
        pl.BlockSpec(wi.shape, lambda b: (0, 0, 0)),
        pl.BlockSpec(wo2.shape, lambda b: (0, 0, 0)),
        pl.BlockSpec(vecs.shape, lambda b: (0, 0, 0)),
    ]
    out = pl.pallas_call(
        _encoder_kernel,
        out_shape=jax.ShapeDtypeStruct((B, 1, HIDDEN), jnp.float32),
        grid=(B,),
        in_specs=in_specs,
        out_specs=pl.BlockSpec((1, 1, HIDDEN), lambda b: (b, 0, 0)),
        compiler_params=pltpu.CompilerParams(dimension_semantics=("parallel",)),
    )(token_emb.astype(jnp.float32), mask_add, wqkv, wo, wi, wo2, vecs)
    return out[:, 0, :]


# ---------------------------- params: init / pack ------------------------------
def init_params(key):
    """Natural per-layer BERT weights, (in, out) orientation (x @ W + b)."""
    def dense(k, shape):
        return 0.02 * jax.random.normal(k, shape, jnp.float32)

    layers = []
    for _ in range(NUM_LAYERS):
        key, *ks = jax.random.split(key, 14)
        (kq, kbq, kk, kbk, kv, kbv, ko, kbo, ki, kbi, ko2, kbo2, _) = ks
        layers.append({
            "wq": dense(kq, (HIDDEN, HIDDEN)), "bq": dense(kbq, (HIDDEN,)),
            "wk": dense(kk, (HIDDEN, HIDDEN)), "bk": dense(kbk, (HIDDEN,)),
            "wv": dense(kv, (HIDDEN, HIDDEN)), "bv": dense(kbv, (HIDDEN,)),
            "wo": dense(ko, (HIDDEN, HIDDEN)), "bo": dense(kbo, (HIDDEN,)),
            "ln1_g": jnp.ones((HIDDEN,), jnp.float32),
            "ln1_b": jnp.zeros((HIDDEN,), jnp.float32),
            "wi": dense(ki, (HIDDEN, INTERMEDIATE)), "bi": dense(kbi, (INTERMEDIATE,)),
            "wo2": dense(ko2, (INTERMEDIATE, HIDDEN)), "bo2": dense(kbo2, (HIDDEN,)),
            "ln2_g": jnp.ones((HIDDEN,), jnp.float32),
            "ln2_b": jnp.zeros((HIDDEN,), jnp.float32),
        })
    return layers


def pack_params(layers):
    """Kernel-friendly layout: per-head weights on leading dims, scale folded
    into Wq/bq, small vectors packed into one (L, 19, 64) array."""
    wqkv, wo, wi, wo2, vecs = [], [], [], [], []
    for p in layers:
        wq = p["wq"] * _ATTN_SCALE
        bq = p["bq"] * _ATTN_SCALE

        def col_heads(w):    # (H, H) -> (NH, H, D): per-head output-column blocks
            return jnp.stack(
                [w[:, h * HEAD_DIM:(h + 1) * HEAD_DIM] for h in range(NUM_HEADS)], 0)

        wqkv.append(jnp.stack([col_heads(wq), col_heads(p["wk"]),
                               col_heads(p["wv"])], 0))                 # (3, NH, H, D)
        wo.append(jnp.stack(
            [p["wo"][h * HEAD_DIM:(h + 1) * HEAD_DIM, :] for h in range(NUM_HEADS)],
            0))                                                         # (NH, D, H)
        wi.append(p["wi"])
        wo2.append(p["wo2"])

        v = jnp.zeros((N_VEC_ROWS, VEC_W), jnp.float32)
        v = v.at[ROW_BO, :HIDDEN].set(p["bo"])
        v = v.at[ROW_LN1G, :HIDDEN].set(p["ln1_g"])
        v = v.at[ROW_LN1B, :HIDDEN].set(p["ln1_b"])
        v = v.at[ROW_BI, :INTERMEDIATE].set(p["bi"])
        v = v.at[ROW_BO2, :HIDDEN].set(p["bo2"])
        v = v.at[ROW_LN2G, :HIDDEN].set(p["ln2_g"])
        v = v.at[ROW_LN2B, :HIDDEN].set(p["ln2_b"])
        for h in range(NUM_HEADS):
            sl = slice(h * HEAD_DIM, (h + 1) * HEAD_DIM)
            v = v.at[ROW_BQ + h, :HEAD_DIM].set(bq[sl])
            v = v.at[ROW_BK + h, :HEAD_DIM].set(p["bk"][sl])
            v = v.at[ROW_BV + h, :HEAD_DIM].set(p["bv"][sl])
        vecs.append(v)

    return {"wqkv": jnp.stack(wqkv), "wo": jnp.stack(wo), "wi": jnp.stack(wi),
            "wo2": jnp.stack(wo2), "vecs": jnp.stack(vecs)}


# ---------------------------- pure-JAX reference --------------------------------
def _ref_layernorm(x, g, b):
    mu = jnp.mean(x, axis=-1, keepdims=True)
    var = jnp.mean(jnp.square(x - mu), axis=-1, keepdims=True)
    return (x - mu) * jax.lax.rsqrt(var + LN_EPS) * g + b


def reference_forward(token_emb, layers, mask_add):
    """Plain-JAX BERT encoder (HF semantics) -> CLS token.  mask_add: (B, 1, S)."""
    x = token_emb.astype(jnp.float32)
    B, S, H = x.shape
    m4 = mask_add[:, None, :, :]                         # (B, 1, 1, S)

    def heads(t):
        return t.reshape(B, S, NUM_HEADS, HEAD_DIM).transpose(0, 2, 1, 3)

    for p in layers:
        q = x @ p["wq"] + p["bq"]
        k = x @ p["wk"] + p["bk"]
        v = x @ p["wv"] + p["bv"]
        s = jnp.einsum("bhqd,bhkd->bhqk", heads(q), heads(k)) * _ATTN_SCALE + m4
        a = jax.nn.softmax(s, axis=-1)
        ctx = jnp.einsum("bhqk,bhkd->bhqd", a, heads(v))
        ctx = ctx.transpose(0, 2, 1, 3).reshape(B, S, H)
        x = _ref_layernorm(ctx @ p["wo"] + p["bo"] + x, p["ln1_g"], p["ln1_b"])
        inter = jax.nn.gelu(x @ p["wi"] + p["bi"], approximate=False)
        x = _ref_layernorm(inter @ p["wo2"] + p["bo2"] + x, p["ln2_g"], p["ln2_b"])
    return x[:, 0, :]


# ---------------------------- main ----------------------------------------------
if __name__ == "__main__":
    key = jax.random.PRNGKey(0)
    pkey, xkey = jax.random.split(key)
    layers = init_params(pkey)
    packed = pack_params(layers)

    B, S = 2, 8
    token_emb = jax.random.normal(xkey, (B, S, HIDDEN), jnp.float32)

    # HF-style additive extended attention mask: 0 keep, -1e9 masked (last 2
    # positions of batch element 1 are padding).
    keep = jnp.ones((B, S), jnp.float32).at[1, -2:].set(0.0)
    attn_mask = (1.0 - keep)[:, None, None, :] * -1e9            # (B, 1, 1, S)

    cls_out = biobert_encoder_forward(token_emb, packed, attn_mask)
    jax.block_until_ready(cls_out)
    assert cls_out.shape == (B, HIDDEN)

    ref = reference_forward(token_emb, layers, (1.0 - keep)[:, None, :] * -1e9)
    max_err = float(jnp.max(jnp.abs(cls_out - ref)))
    assert jnp.allclose(cls_out, ref, atol=2e-3, rtol=2e-3), max_err
    print("KERNEL_OK")
</pallas_src>

<mosaic_0001>
module attributes {stable_mosaic.version = 11 : i64} {
  func.func @_encoder_kernel(%arg0: i32, %arg1: memref<1x8x32xf32, #tpu.memory_space<vmem>>, %arg2: memref<1x1x8xf32, #tpu.memory_space<vmem>>, %arg3: memref<2x3x4x32x8xf32, #tpu.memory_space<vmem>>, %arg4: memref<2x4x8x32xf32, #tpu.memory_space<vmem>>, %arg5: memref<2x32x64xf32, #tpu.memory_space<vmem>>, %arg6: memref<2x64x32xf32, #tpu.memory_space<vmem>>, %arg7: memref<2x19x64xf32, #tpu.memory_space<vmem>>, %arg8: memref<1x1x32xf32, #tpu.memory_space<vmem>>) attributes {dimension_semantics = [#tpu.dimension_semantics<parallel>], iteration_bounds = array<i64: 2>, scalar_prefetch = 0 : i64, scratch_operands = 0 : i64, tpu.core_type = #tpu.core_type<tc>, window_params = [{transform_indices = @transform_0, window_bounds = array<i64: 1, 8, 32>}, {transform_indices = @transform_1, window_bounds = array<i64: 1, 1, 8>}, {pipeline_mode = #tpu.pipeline_mode<synchronous>, transform_indices = @transform_2, window_bounds = array<i64: 2, 3, 4, 32, 8>}, {pipeline_mode = #tpu.pipeline_mode<synchronous>, transform_indices = @transform_3, window_bounds = array<i64: 2, 4, 8, 32>}, {pipeline_mode = #tpu.pipeline_mode<synchronous>, transform_indices = @transform_4, window_bounds = array<i64: 2, 32, 64>}, {pipeline_mode = #tpu.pipeline_mode<synchronous>, transform_indices = @transform_5, window_bounds = array<i64: 2, 64, 32>}, {pipeline_mode = #tpu.pipeline_mode<synchronous>, transform_indices = @transform_6, window_bounds = array<i64: 2, 19, 64>}, {transform_indices = @transform_7, window_bounds = array<i64: 1, 1, 32>}]} {
    %c0 = arith.constant 0 : index
    %c0_0 = arith.constant 0 : index
    %c0_1 = arith.constant 0 : index
    %0 = vector.load %arg1[%c0, %c0_0, %c0_1] : memref<1x8x32xf32, #tpu.memory_space<vmem>>, vector<1x8x32xf32>
    %1 = vector.shape_cast %0 : vector<1x8x32xf32> to vector<8x32xf32>
    %c0_2 = arith.constant 0 : index
    %c0_3 = arith.constant 0 : index
    %c0_4 = arith.constant 0 : index
    %2 = vector.load %arg2[%c0_2, %c0_3, %c0_4] : memref<1x1x8xf32, #tpu.memory_space<vmem>>, vector<1x1x8xf32>
    %3 = vector.shape_cast %2 : vector<1x1x8xf32> to vector<1x8xf32>
    %c0_5 = arith.constant 0 : index
    %c0_6 = arith.constant 0 : index
    %c0_7 = arith.constant 0 : index
    %c0_8 = arith.constant 0 : index
    %c0_9 = arith.constant 0 : index
    %4 = vector.load %arg3[%c0_5, %c0_6, %c0_7, %c0_8, %c0_9] : memref<2x3x4x32x8xf32, #tpu.memory_space<vmem>>, vector<1x1x1x32x8xf32>
    %5 = vector.shape_cast %4 : vector<1x1x1x32x8xf32> to vector<32x8xf32>
    %cst = arith.constant dense<0.000000e+00> : vector<8x8xf32>
    %6 = tpu.matmul %1, %5, %cst {dimension_numbers = #tpu.dot_dimension_numbers<[1], [0], [0], [1], [0, 0, 1, 1], [], []>} : vector<8x32xf32>, vector<32x8xf32>, vector<8x8xf32> -> vector<8x8xf32>
    %c0_10 = arith.constant 0 : index
    %c7 = arith.constant 7 : index
    %c0_11 = arith.constant 0 : index
    %7 = vector.load %arg7[%c0_10, %c7, %c0_11] : memref<2x19x64xf32, #tpu.memory_space<vmem>>, vector<1x1x8xf32>
    %8 = vector.shape_cast %7 : vector<1x1x8xf32> to vector<1x8xf32>
    %9 = vector.broadcast %8 : vector<1x8xf32> to vector<8x8xf32>
    %10 = arith.addf %6, %9 : vector<8x8xf32>
    %c0_12 = arith.constant 0 : index
    %c1 = arith.constant 1 : index
    %c0_13 = arith.constant 0 : index
    %c0_14 = arith.constant 0 : index
    %c0_15 = arith.constant 0 : index
    %11 = vector.load %arg3[%c0_12, %c1, %c0_13, %c0_14, %c0_15] : memref<2x3x4x32x8xf32, #tpu.memory_space<vmem>>, vector<1x1x1x32x8xf32>
    %12 = vector.shape_cast %11 : vector<1x1x1x32x8xf32> to vector<32x8xf32>
    %cst_16 = arith.constant dense<0.000000e+00> : vector<8x8xf32>
    %13 = tpu.matmul %1, %12, %cst_16 {dimension_numbers = #tpu.dot_dimension_numbers<[1], [0], [0], [1], [0, 0, 1, 1], [], []>} : vector<8x32xf32>, vector<32x8xf32>, vector<8x8xf32> -> vector<8x8xf32>
    %c0_17 = arith.constant 0 : index
    %c11 = arith.constant 11 : index
    %c0_18 = arith.constant 0 : index
    %14 = vector.load %arg7[%c0_17, %c11, %c0_18] : memref<2x19x64xf32, #tpu.memory_space<vmem>>, vector<1x1x8xf32>
    %15 = vector.shape_cast %14 : vector<1x1x8xf32> to vector<1x8xf32>
    %16 = vector.broadcast %15 : vector<1x8xf32> to vector<8x8xf32>
    %17 = arith.addf %13, %16 : vector<8x8xf32>
    %c0_19 = arith.constant 0 : index
    %c2 = arith.constant 2 : index
    %c0_20 = arith.constant 0 : index
    %c0_21 = arith.constant 0 : index
    %c0_22 = arith.constant 0 : index
    %18 = vector.load %arg3[%c0_19, %c2, %c0_20, %c0_21, %c0_22] : memref<2x3x4x32x8xf32, #tpu.memory_space<vmem>>, vector<1x1x1x32x8xf32>
    %19 = vector.shape_cast %18 : vector<1x1x1x32x8xf32> to vector<32x8xf32>
    %cst_23 = arith.constant dense<0.000000e+00> : vector<8x8xf32>
    %20 = tpu.matmul %1, %19, %cst_23 {dimension_numbers = #tpu.dot_dimension_numbers<[1], [0], [0], [1], [0, 0, 1, 1], [], []>} : vector<8x32xf32>, vector<32x8xf32>, vector<8x8xf32> -> vector<8x8xf32>
    %c0_24 = arith.constant 0 : index
    %c15 = arith.constant 15 : index
    %c0_25 = arith.constant 0 : index
    %21 = vector.load %arg7[%c0_24, %c15, %c0_25] : memref<2x19x64xf32, #tpu.memory_space<vmem>>, vector<1x1x8xf32>
    %22 = vector.shape_cast %21 : vector<1x1x8xf32> to vector<1x8xf32>
    %23 = vector.broadcast %22 : vector<1x8xf32> to vector<8x8xf32>
    %24 = arith.addf %20, %23 : vector<8x8xf32>
    %cst_26 = arith.constant dense<0.000000e+00> : vector<8x8xf32>
    %25 = tpu.matmul %10, %17, %cst_26 {dimension_numbers = #tpu.dot_dimension_numbers<[1], [1], [0], [0], [0, 0, 1, 0], [], []>} : vector<8x8xf32>, vector<8x8xf32>, vector<8x8xf32> -> vector<8x8xf32>
    %26 = vector.broadcast %3 : vector<1x8xf32> to vector<8x8xf32>
    %27 = arith.addf %25, %26 : vector<8x8xf32>
    %cst_27 = arith.constant dense<0xFF800000> : vector<8xf32>
    %28 = vector.multi_reduction <maximumf>, %27, %cst_27 [1] : vector<8x8xf32> to vector<8xf32>
    %29 = vector.shape_cast %28 : vector<8xf32> to vector<8x1xf32>
    %30 = vector.broadcast %29 : vector<8x1xf32> to vector<8x8xf32>
    %31 = arith.subf %27, %30 : vector<8x8xf32>
    %32 = math.exp %31 : vector<8x8xf32>
    %cst_28 = arith.constant dense<0.000000e+00> : vector<8xf32>
    %33 = vector.multi_reduction <add>, %32, %cst_28 [1] : vector<8x8xf32> to vector<8xf32>
    %34 = vector.shape_cast %33 : vector<8xf32> to vector<8x1xf32>
    %35 = vector.broadcast %34 : vector<8x1xf32> to vector<8x8xf32>
    %36 = arith.divf %32, %35 : vector<8x8xf32>
    %cst_29 = arith.constant dense<0.000000e+00> : vector<8x8xf32>
    %37 = tpu.matmul %36, %24, %cst_29 {dimension_numbers = #tpu.dot_dimension_numbers<[1], [0], [0], [1], [0, 0, 1, 1], [], []>} : vector<8x8xf32>, vector<8x8xf32>, vector<8x8xf32> -> vector<8x8xf32>
    %c0_30 = arith.constant 0 : index
    %c0_31 = arith.constant 0 : index
    %c0_32 = arith.constant 0 : index
    %c0_33 = arith.constant 0 : index
    %38 = vector.load %arg4[%c0_30, %c0_31, %c0_32, %c0_33] : memref<2x4x8x32xf32, #tpu.memory_space<vmem>>, vector<1x1x8x32xf32>
    %39 = vector.shape_cast %38 : vector<1x1x8x32xf32> to vector<8x32xf32>
    %cst_34 = arith.constant dense<0.000000e+00> : vector<8x32xf32>
    %40 = tpu.matmul %37, %39, %cst_34 {dimension_numbers = #tpu.dot_dimension_numbers<[1], [0], [0], [1], [0, 0, 1, 1], [], []>} : vector<8x8xf32>, vector<8x32xf32>, vector<8x32xf32> -> vector<8x32xf32>
    %c0_35 = arith.constant 0 : index
    %c0_36 = arith.constant 0 : index
    %c1_37 = arith.constant 1 : index
    %c0_38 = arith.constant 0 : index
    %c0_39 = arith.constant 0 : index
    %41 = vector.load %arg3[%c0_35, %c0_36, %c1_37, %c0_38, %c0_39] : memref<2x3x4x32x8xf32, #tpu.memory_space<vmem>>, vector<1x1x1x32x8xf32>
    %42 = vector.shape_cast %41 : vector<1x1x1x32x8xf32> to vector<32x8xf32>
    %cst_40 = arith.constant dense<0.000000e+00> : vector<8x8xf32>
    %43 = tpu.matmul %1, %42, %cst_40 {dimension_numbers = #tpu.dot_dimension_numbers<[1], [0], [0], [1], [0, 0, 1, 1], [], []>} : vector<8x32xf32>, vector<32x8xf32>, vector<8x8xf32> -> vector<8x8xf32>
    %c0_41 = arith.constant 0 : index
    %c8 = arith.constant 8 : index
    %c0_42 = arith.constant 0 : index
    %44 = vector.load %arg7[%c0_41, %c8, %c0_42] : memref<2x19x64xf32, #tpu.memory_space<vmem>>, vector<1x1x8xf32>
    %45 = vector.shape_cast %44 : vector<1x1x8xf32> to vector<1x8xf32>
    %46 = vector.broadcast %45 : vector<1x8xf32> to vector<8x8xf32>
    %47 = arith.addf %43, %46 : vector<8x8xf32>
    %c0_43 = arith.constant 0 : index
    %c1_44 = arith.constant 1 : index
    %c1_45 = arith.constant 1 : index
    %c0_46 = arith.constant 0 : index
    %c0_47 = arith.constant 0 : index
    %48 = vector.load %arg3[%c0_43, %c1_44, %c1_45, %c0_46, %c0_47] : memref<2x3x4x32x8xf32, #tpu.memory_space<vmem>>, vector<1x1x1x32x8xf32>
    %49 = vector.shape_cast %48 : vector<1x1x1x32x8xf32> to vector<32x8xf32>
    %cst_48 = arith.constant dense<0.000000e+00> : vector<8x8xf32>
    %50 = tpu.matmul %1, %49, %cst_48 {dimension_numbers = #tpu.dot_dimension_numbers<[1], [0], [0], [1], [0, 0, 1, 1], [], []>} : vector<8x32xf32>, vector<32x8xf32>, vector<8x8xf32> -> vector<8x8xf32>
    %c0_49 = arith.constant 0 : index
    %c12 = arith.constant 12 : index
    %c0_50 = arith.constant 0 : index
    %51 = vector.load %arg7[%c0_49, %c12, %c0_50] : memref<2x19x64xf32, #tpu.memory_space<vmem>>, vector<1x1x8xf32>
    %52 = vector.shape_cast %51 : vector<1x1x8xf32> to vector<1x8xf32>
    %53 = vector.broadcast %52 : vector<1x8xf32> to vector<8x8xf32>
    %54 = arith.addf %50, %53 : vector<8x8xf32>
    %c0_51 = arith.constant 0 : index
    %c2_52 = arith.constant 2 : index
    %c1_53 = arith.constant 1 : index
    %c0_54 = arith.constant 0 : index
    %c0_55 = arith.constant 0 : index
    %55 = vector.load %arg3[%c0_51, %c2_52, %c1_53, %c0_54, %c0_55] : memref<2x3x4x32x8xf32, #tpu.memory_space<vmem>>, vector<1x1x1x32x8xf32>
    %56 = vector.shape_cast %55 : vector<1x1x1x32x8xf32> to vector<32x8xf32>
    %cst_56 = arith.constant dense<0.000000e+00> : vector<8x8xf32>
    %57 = tpu.matmul %1, %56, %cst_56 {dimension_numbers = #tpu.dot_dimension_numbers<[1], [0], [0], [1], [0, 0, 1, 1], [], []>} : vector<8x32xf32>, vector<32x8xf32>, vector<8x8xf32> -> vector<8x8xf32>
    %c0_57 = arith.constant 0 : index
    %c16 = arith.constant 16 : index
    %c0_58 = arith.constant 0 : index
    %58 = vector.load %arg7[%c0_57, %c16, %c0_58] : memref<2x19x64xf32, #tpu.memory_space<vmem>>, vector<1x1x8xf32>
    %59 = vector.shape_cast %58 : vector<1x1x8xf32> to vector<1x8xf32>
    %60 = vector.broadcast %59 : vector<1x8xf32> to vector<8x8xf32>
    %61 = arith.addf %57, %60 : vector<8x8xf32>
    %cst_59 = arith.constant dense<0.000000e+00> : vector<8x8xf32>
    %62 = tpu.matmul %47, %54, %cst_59 {dimension_numbers = #tpu.dot_dimension_numbers<[1], [1], [0], [0], [0, 0, 1, 0], [], []>} : vector<8x8xf32>, vector<8x8xf32>, vector<8x8xf32> -> vector<8x8xf32>
    %63 = vector.broadcast %3 : vector<1x8xf32> to vector<8x8xf32>
    %64 = arith.addf %62, %63 : vector<8x8xf32>
    %cst_60 = arith.constant dense<0xFF800000> : vector<8xf32>
    %65 = vector.multi_reduction <maximumf>, %64, %cst_60 [1] : vector<8x8xf32> to vector<8xf32>
    %66 = vector.shape_cast %65 : vector<8xf32> to vector<8x1xf32>
    %67 = vector.broadcast %66 : vector<8x1xf32> to vector<8x8xf32>
    %68 = arith.subf %64, %67 : vector<8x8xf32>
    %69 = math.exp %68 : vector<8x8xf32>
    %cst_61 = arith.constant dense<0.000000e+00> : vector<8xf32>
    %70 = vector.multi_reduction <add>, %69, %cst_61 [1] : vector<8x8xf32> to vector<8xf32>
    %71 = vector.shape_cast %70 : vector<8xf32> to vector<8x1xf32>
    %72 = vector.broadcast %71 : vector<8x1xf32> to vector<8x8xf32>
    %73 = arith.divf %69, %72 : vector<8x8xf32>
    %cst_62 = arith.constant dense<0.000000e+00> : vector<8x8xf32>
    %74 = tpu.matmul %73, %61, %cst_62 {dimension_numbers = #tpu.dot_dimension_numbers<[1], [0], [0], [1], [0, 0, 1, 1], [], []>} : vector<8x8xf32>, vector<8x8xf32>, vector<8x8xf32> -> vector<8x8xf32>
    %c0_63 = arith.constant 0 : index
    %c1_64 = arith.constant 1 : index
    %c0_65 = arith.constant 0 : index
    %c0_66 = arith.constant 0 : index
    %75 = vector.load %arg4[%c0_63, %c1_64, %c0_65, %c0_66] : memref<2x4x8x32xf32, #tpu.memory_space<vmem>>, vector<1x1x8x32xf32>
    %76 = vector.shape_cast %75 : vector<1x1x8x32xf32> to vector<8x32xf32>
    %cst_67 = arith.constant dense<0.000000e+00> : vector<8x32xf32>
    %77 = tpu.matmul %74, %76, %cst_67 {dimension_numbers = #tpu.dot_dimension_numbers<[1], [0], [0], [1], [0, 0, 1, 1], [], []>} : vector<8x8xf32>, vector<8x32xf32>, vector<8x32xf32> -> vector<8x32xf32>
    %78 = arith.addf %40, %77 : vector<8x32xf32>
    %c0_68 = arith.constant 0 : index
    %c0_69 = arith.constant 0 : index
    %c2_70 = arith.constant 2 : index
    %c0_71 = arith.constant 0 : index
    %c0_72 = arith.constant 0 : index
    %79 = vector.load %arg3[%c0_68, %c0_69, %c2_70, %c0_71, %c0_72] : memref<2x3x4x32x8xf32, #tpu.memory_space<vmem>>, vector<1x1x1x32x8xf32>
    %80 = vector.shape_cast %79 : vector<1x1x1x32x8xf32> to vector<32x8xf32>
    %cst_73 = arith.constant dense<0.000000e+00> : vector<8x8xf32>
    %81 = tpu.matmul %1, %80, %cst_73 {dimension_numbers = #tpu.dot_dimension_numbers<[1], [0], [0], [1], [0, 0, 1, 1], [], []>} : vector<8x32xf32>, vector<32x8xf32>, vector<8x8xf32> -> vector<8x8xf32>
    %c0_74 = arith.constant 0 : index
    %c9 = arith.constant 9 : index
    %c0_75 = arith.constant 0 : index
    %82 = vector.load %arg7[%c0_74, %c9, %c0_75] : memref<2x19x64xf32, #tpu.memory_space<vmem>>, vector<1x1x8xf32>
    %83 = vector.shape_cast %82 : vector<1x1x8xf32> to vector<1x8xf32>
    %84 = vector.broadcast %83 : vector<1x8xf32> to vector<8x8xf32>
    %85 = arith.addf %81, %84 : vector<8x8xf32>
    %c0_76 = arith.constant 0 : index
    %c1_77 = arith.constant 1 : index
    %c2_78 = arith.constant 2 : index
    %c0_79 = arith.constant 0 : index
    %c0_80 = arith.constant 0 : index
    %86 = vector.load %arg3[%c0_76, %c1_77, %c2_78, %c0_79, %c0_80] : memref<2x3x4x32x8xf32, #tpu.memory_space<vmem>>, vector<1x1x1x32x8xf32>
    %87 = vector.shape_cast %86 : vector<1x1x1x32x8xf32> to vector<32x8xf32>
    %cst_81 = arith.constant dense<0.000000e+00> : vector<8x8xf32>
    %88 = tpu.matmul %1, %87, %cst_81 {dimension_numbers = #tpu.dot_dimension_numbers<[1], [0], [0], [1], [0, 0, 1, 1], [], []>} : vector<8x32xf32>, vector<32x8xf32>, vector<8x8xf32> -> vector<8x8xf32>
    %c0_82 = arith.constant 0 : index
    %c13 = arith.constant 13 : index
    %c0_83 = arith.constant 0 : index
    %89 = vector.load %arg7[%c0_82, %c13, %c0_83] : memref<2x19x64xf32, #tpu.memory_space<vmem>>, vector<1x1x8xf32>
    %90 = vector.shape_cast %89 : vector<1x1x8xf32> to vector<1x8xf32>
    %91 = vector.broadcast %90 : vector<1x8xf32> to vector<8x8xf32>
    %92 = arith.addf %88, %91 : vector<8x8xf32>
    %c0_84 = arith.constant 0 : index
    %c2_85 = arith.constant 2 : index
    %c2_86 = arith.constant 2 : index
    %c0_87 = arith.constant 0 : index
    %c0_88 = arith.constant 0 : index
    %93 = vector.load %arg3[%c0_84, %c2_85, %c2_86, %c0_87, %c0_88] : memref<2x3x4x32x8xf32, #tpu.memory_space<vmem>>, vector<1x1x1x32x8xf32>
    %94 = vector.shape_cast %93 : vector<1x1x1x32x8xf32> to vector<32x8xf32>
    %cst_89 = arith.constant dense<0.000000e+00> : vector<8x8xf32>
    %95 = tpu.matmul %1, %94, %cst_89 {dimension_numbers = #tpu.dot_dimension_numbers<[1], [0], [0], [1], [0, 0, 1, 1], [], []>} : vector<8x32xf32>, vector<32x8xf32>, vector<8x8xf32> -> vector<8x8xf32>
    %c0_90 = arith.constant 0 : index
    %c17 = arith.constant 17 : index
    %c0_91 = arith.constant 0 : index
    %96 = vector.load %arg7[%c0_90, %c17, %c0_91] : memref<2x19x64xf32, #tpu.memory_space<vmem>>, vector<1x1x8xf32>
    %97 = vector.shape_cast %96 : vector<1x1x8xf32> to vector<1x8xf32>
    %98 = vector.broadcast %97 : vector<1x8xf32> to vector<8x8xf32>
    %99 = arith.addf %95, %98 : vector<8x8xf32>
    %cst_92 = arith.constant dense<0.000000e+00> : vector<8x8xf32>
    %100 = tpu.matmul %85, %92, %cst_92 {dimension_numbers = #tpu.dot_dimension_numbers<[1], [1], [0], [0], [0, 0, 1, 0], [], []>} : vector<8x8xf32>, vector<8x8xf32>, vector<8x8xf32> -> vector<8x8xf32>
    %101 = vector.broadcast %3 : vector<1x8xf32> to vector<8x8xf32>
    %102 = arith.addf %100, %101 : vector<8x8xf32>
    %cst_93 = arith.constant dense<0xFF800000> : vector<8xf32>
    %103 = vector.multi_reduction <maximumf>, %102, %cst_93 [1] : vector<8x8xf32> to vector<8xf32>
    %104 = vector.shape_cast %103 : vector<8xf32> to vector<8x1xf32>
    %105 = vector.broadcast %104 : vector<8x1xf32> to vector<8x8xf32>
    %106 = arith.subf %102, %105 : vector<8x8xf32>
    %107 = math.exp %106 : vector<8x8xf32>
    %cst_94 = arith.constant dense<0.000000e+00> : vector<8xf32>
    %108 = vector.multi_reduction <add>, %107, %cst_94 [1] : vector<8x8xf32> to vector<8xf32>
    %109 = vector.shape_cast %108 : vector<8xf32> to vector<8x1xf32>
    %110 = vector.broadcast %109 : vector<8x1xf32> to vector<8x8xf32>
    %111 = arith.divf %107, %110 : vector<8x8xf32>
    %cst_95 = arith.constant dense<0.000000e+00> : vector<8x8xf32>
    %112 = tpu.matmul %111, %99, %cst_95 {dimension_numbers = #tpu.dot_dimension_numbers<[1], [0], [0], [1], [0, 0, 1, 1], [], []>} : vector<8x8xf32>, vector<8x8xf32>, vector<8x8xf32> -> vector<8x8xf32>
    %c0_96 = arith.constant 0 : index
    %c2_97 = arith.constant 2 : index
    %c0_98 = arith.constant 0 : index
    %c0_99 = arith.constant 0 : index
    %113 = vector.load %arg4[%c0_96, %c2_97, %c0_98, %c0_99] : memref<2x4x8x32xf32, #tpu.memory_space<vmem>>, vector<1x1x8x32xf32>
    %114 = vector.shape_cast %113 : vector<1x1x8x32xf32> to vector<8x32xf32>
    %cst_100 = arith.constant dense<0.000000e+00> : vector<8x32xf32>
    %115 = tpu.matmul %112, %114, %cst_100 {dimension_numbers = #tpu.dot_dimension_numbers<[1], [0], [0], [1], [0, 0, 1, 1], [], []>} : vector<8x8xf32>, vector<8x32xf32>, vector<8x32xf32> -> vector<8x32xf32>
    %116 = arith.addf %78, %115 : vector<8x32xf32>
    %c0_101 = arith.constant 0 : index
    %c0_102 = arith.constant 0 : index
    %c3 = arith.constant 3 : index
    %c0_103 = arith.constant 0 : index
    %c0_104 = arith.constant 0 : index
    %117 = vector.load %arg3[%c0_101, %c0_102, %c3, %c0_103, %c0_104] : memref<2x3x4x32x8xf32, #tpu.memory_space<vmem>>, vector<1x1x1x32x8xf32>
    %118 = vector.shape_cast %117 : vector<1x1x1x32x8xf32> to vector<32x8xf32>
    %cst_105 = arith.constant dense<0.000000e+00> : vector<8x8xf32>
    %119 = tpu.matmul %1, %118, %cst_105 {dimension_numbers = #tpu.dot_dimension_numbers<[1], [0], [0], [1], [0, 0, 1, 1], [], []>} : vector<8x32xf32>, vector<32x8xf32>, vector<8x8xf32> -> vector<8x8xf32>
    %c0_106 = arith.constant 0 : index
    %c10 = arith.constant 10 : index
    %c0_107 = arith.constant 0 : index
    %120 = vector.load %arg7[%c0_106, %c10, %c0_107] : memref<2x19x64xf32, #tpu.memory_space<vmem>>, vector<1x1x8xf32>
    %121 = vector.shape_cast %120 : vector<1x1x8xf32> to vector<1x8xf32>
    %122 = vector.broadcast %121 : vector<1x8xf32> to vector<8x8xf32>
    %123 = arith.addf %119, %122 : vector<8x8xf32>
    %c0_108 = arith.constant 0 : index
    %c1_109 = arith.constant 1 : index
    %c3_110 = arith.constant 3 : index
    %c0_111 = arith.constant 0 : index
    %c0_112 = arith.constant 0 : index
    %124 = vector.load %arg3[%c0_108, %c1_109, %c3_110, %c0_111, %c0_112] : memref<2x3x4x32x8xf32, #tpu.memory_space<vmem>>, vector<1x1x1x32x8xf32>
    %125 = vector.shape_cast %124 : vector<1x1x1x32x8xf32> to vector<32x8xf32>
    %cst_113 = arith.constant dense<0.000000e+00> : vector<8x8xf32>
    %126 = tpu.matmul %1, %125, %cst_113 {dimension_numbers = #tpu.dot_dimension_numbers<[1], [0], [0], [1], [0, 0, 1, 1], [], []>} : vector<8x32xf32>, vector<32x8xf32>, vector<8x8xf32> -> vector<8x8xf32>
    %c0_114 = arith.constant 0 : index
    %c14 = arith.constant 14 : index
    %c0_115 = arith.constant 0 : index
    %127 = vector.load %arg7[%c0_114, %c14, %c0_115] : memref<2x19x64xf32, #tpu.memory_space<vmem>>, vector<1x1x8xf32>
    %128 = vector.shape_cast %127 : vector<1x1x8xf32> to vector<1x8xf32>
    %129 = vector.broadcast %128 : vector<1x8xf32> to vector<8x8xf32>
    %130 = arith.addf %126, %129 : vector<8x8xf32>
    %c0_116 = arith.constant 0 : index
    %c2_117 = arith.constant 2 : index
    %c3_118 = arith.constant 3 : index
    %c0_119 = arith.constant 0 : index
    %c0_120 = arith.constant 0 : index
    %131 = vector.load %arg3[%c0_116, %c2_117, %c3_118, %c0_119, %c0_120] : memref<2x3x4x32x8xf32, #tpu.memory_space<vmem>>, vector<1x1x1x32x8xf32>
    %132 = vector.shape_cast %131 : vector<1x1x1x32x8xf32> to vector<32x8xf32>
    %cst_121 = arith.constant dense<0.000000e+00> : vector<8x8xf32>
    %133 = tpu.matmul %1, %132, %cst_121 {dimension_numbers = #tpu.dot_dimension_numbers<[1], [0], [0], [1], [0, 0, 1, 1], [], []>} : vector<8x32xf32>, vector<32x8xf32>, vector<8x8xf32> -> vector<8x8xf32>
    %c0_122 = arith.constant 0 : index
    %c18 = arith.constant 18 : index
    %c0_123 = arith.constant 0 : index
    %134 = vector.load %arg7[%c0_122, %c18, %c0_123] : memref<2x19x64xf32, #tpu.memory_space<vmem>>, vector<1x1x8xf32>
    %135 = vector.shape_cast %134 : vector<1x1x8xf32> to vector<1x8xf32>
    %136 = vector.broadcast %135 : vector<1x8xf32> to vector<8x8xf32>
    %137 = arith.addf %133, %136 : vector<8x8xf32>
    %cst_124 = arith.constant dense<0.000000e+00> : vector<8x8xf32>
    %138 = tpu.matmul %123, %130, %cst_124 {dimension_numbers = #tpu.dot_dimension_numbers<[1], [1], [0], [0], [0, 0, 1, 0], [], []>} : vector<8x8xf32>, vector<8x8xf32>, vector<8x8xf32> -> vector<8x8xf32>
    %139 = vector.broadcast %3 : vector<1x8xf32> to vector<8x8xf32>
    %140 = arith.addf %138, %139 : vector<8x8xf32>
    %cst_125 = arith.constant dense<0xFF800000> : vector<8xf32>
    %141 = vector.multi_reduction <maximumf>, %140, %cst_125 [1] : vector<8x8xf32> to vector<8xf32>
    %142 = vector.shape_cast %141 : vector<8xf32> to vector<8x1xf32>
    %143 = vector.broadcast %142 : vector<8x1xf32> to vector<8x8xf32>
    %144 = arith.subf %140, %143 : vector<8x8xf32>
    %145 = math.exp %144 : vector<8x8xf32>
    %cst_126 = arith.constant dense<0.000000e+00> : vector<8xf32>
    %146 = vector.multi_reduction <add>, %145, %cst_126 [1] : vector<8x8xf32> to vector<8xf32>
    %147 = vector.shape_cast %146 : vector<8xf32> to vector<8x1xf32>
    %148 = vector.broadcast %147 : vector<8x1xf32> to vector<8x8xf32>
    %149 = arith.divf %145, %148 : vector<8x8xf32>
    %cst_127 = arith.constant dense<0.000000e+00> : vector<8x8xf32>
    %150 = tpu.matmul %149, %137, %cst_127 {dimension_numbers = #tpu.dot_dimension_numbers<[1], [0], [0], [1], [0, 0, 1, 1], [], []>} : vector<8x8xf32>, vector<8x8xf32>, vector<8x8xf32> -> vector<8x8xf32>
    %c0_128 = arith.constant 0 : index
    %c3_129 = arith.constant 3 : index
    %c0_130 = arith.constant 0 : index
    %c0_131 = arith.constant 0 : index
    %151 = vector.load %arg4[%c0_128, %c3_129, %c0_130, %c0_131] : memref<2x4x8x32xf32, #tpu.memory_space<vmem>>, vector<1x1x8x32xf32>
    %152 = vector.shape_cast %151 : vector<1x1x8x32xf32> to vector<8x32xf32>
    %cst_132 = arith.constant dense<0.000000e+00> : vector<8x32xf32>
    %153 = tpu.matmul %150, %152, %cst_132 {dimension_numbers = #tpu.dot_dimension_numbers<[1], [0], [0], [1], [0, 0, 1, 1], [], []>} : vector<8x8xf32>, vector<8x32xf32>, vector<8x32xf32> -> vector<8x32xf32>
    %154 = arith.addf %116, %153 : vector<8x32xf32>
    %c0_133 = arith.constant 0 : index
    %c0_134 = arith.constant 0 : index
    %c0_135 = arith.constant 0 : index
    %155 = vector.load %arg7[%c0_133, %c0_134, %c0_135] : memref<2x19x64xf32, #tpu.memory_space<vmem>>, vector<1x1x32xf32>
    %156 = vector.shape_cast %155 : vector<1x1x32xf32> to vector<1x32xf32>
    %157 = vector.broadcast %156 : vector<1x32xf32> to vector<8x32xf32>
    %158 = arith.addf %154, %157 : vector<8x32xf32>
    %159 = arith.addf %158, %1 : vector<8x32xf32>
    %c0_136 = arith.constant 0 : index
    %c1_137 = arith.constant 1 : index
    %c0_138 = arith.constant 0 : index
    %160 = vector.load %arg7[%c0_136, %c1_137, %c0_138] : memref<2x19x64xf32, #tpu.memory_space<vmem>>, vector<1x1x32xf32>
    %161 = vector.shape_cast %160 : vector<1x1x32xf32> to vector<1x32xf32>
    %c0_139 = arith.constant 0 : index
    %c2_140 = arith.constant 2 : index
    %c0_141 = arith.constant 0 : index
    %162 = vector.load %arg7[%c0_139, %c2_140, %c0_141] : memref<2x19x64xf32, #tpu.memory_space<vmem>>, vector<1x1x32xf32>
    %163 = vector.shape_cast %162 : vector<1x1x32xf32> to vector<1x32xf32>
    %cst_142 = arith.constant dense<0.000000e+00> : vector<8xf32>
    %164 = vector.multi_reduction <add>, %159, %cst_142 [1] : vector<8x32xf32> to vector<8xf32>
    %165 = vector.shape_cast %164 : vector<8xf32> to vector<8x1xf32>
    %cst_143 = arith.constant 3.200000e+01 : f32
    %166 = vector.broadcast %cst_143 : f32 to vector<8x1xf32>
    %167 = arith.divf %165, %166 : vector<8x1xf32>
    %168 = vector.broadcast %167 : vector<8x1xf32> to vector<8x32xf32>
    %169 = arith.subf %159, %168 : vector<8x32xf32>
    %170 = arith.mulf %169, %169 : vector<8x32xf32>
    %cst_144 = arith.constant dense<0.000000e+00> : vector<8xf32>
    %171 = vector.multi_reduction <add>, %170, %cst_144 [1] : vector<8x32xf32> to vector<8xf32>
    %172 = vector.shape_cast %171 : vector<8xf32> to vector<8x1xf32>
    %cst_145 = arith.constant 3.200000e+01 : f32
    %173 = vector.broadcast %cst_145 : f32 to vector<8x1xf32>
    %174 = arith.divf %172, %173 : vector<8x1xf32>
    %175 = vector.broadcast %167 : vector<8x1xf32> to vector<8x32xf32>
    %176 = arith.subf %159, %175 : vector<8x32xf32>
    %cst_146 = arith.constant 9.99999996E-13 : f32
    %177 = vector.broadcast %cst_146 : f32 to vector<8x1xf32>
    %178 = arith.addf %174, %177 : vector<8x1xf32>
    %179 = math.rsqrt %178 : vector<8x1xf32>
    %180 = vector.broadcast %179 : vector<8x1xf32> to vector<8x32xf32>
    %181 = arith.mulf %176, %180 : vector<8x32xf32>
    %182 = vector.broadcast %161 : vector<1x32xf32> to vector<8x32xf32>
    %183 = arith.mulf %181, %182 : vector<8x32xf32>
    %184 = vector.broadcast %163 : vector<1x32xf32> to vector<8x32xf32>
    %185 = arith.addf %183, %184 : vector<8x32xf32>
    %c0_147 = arith.constant 0 : index
    %c0_148 = arith.constant 0 : index
    %c0_149 = arith.constant 0 : index
    %186 = vector.load %arg5[%c0_147, %c0_148, %c0_149] : memref<2x32x64xf32, #tpu.memory_space<vmem>>, vector<1x32x64xf32>
    %187 = vector.shape_cast %186 : vector<1x32x64xf32> to vector<32x64xf32>
    %cst_150 = arith.constant dense<0.000000e+00> : vector<8x64xf32>
    %188 = tpu.matmul %185, %187, %cst_150 {dimension_numbers = #tpu.dot_dimension_numbers<[1], [0], [0], [1], [0, 0, 1, 1], [], []>} : vector<8x32xf32>, vector<32x64xf32>, vector<8x64xf32> -> vector<8x64xf32>
    %c0_151 = arith.constant 0 : index
    %c3_152 = arith.constant 3 : index
    %c0_153 = arith.constant 0 : index
    %189 = vector.load %arg7[%c0_151, %c3_152, %c0_153] : memref<2x19x64xf32, #tpu.memory_space<vmem>>, vector<1x1x64xf32>
    %190 = vector.shape_cast %189 : vector<1x1x64xf32> to vector<1x64xf32>
    %191 = vector.broadcast %190 : vector<1x64xf32> to vector<8x64xf32>
    %192 = arith.addf %188, %191 : vector<8x64xf32>
    %cst_154 = arith.constant 5.000000e-01 : f32
    %193 = vector.broadcast %cst_154 : f32 to vector<8x64xf32>
    %194 = arith.mulf %193, %192 : vector<8x64xf32>
    %cst_155 = arith.constant 0.707106769 : f32
    %195 = vector.broadcast %cst_155 : f32 to vector<8x64xf32>
    %196 = arith.mulf %192, %195 : vector<8x64xf32>
    %cst_156 = arith.constant 0.000000e+00 : f32
    %197 = vector.broadcast %cst_156 : f32 to vector<8x64xf32>
    %198 = arith.cmpf oge, %196, %197 : vector<8x64xf32>
    %cst_157 = arith.constant 1.000000e+00 : f32
    %cst_158 = arith.constant -1.000000e+00 : f32
    %199 = vector.broadcast %cst_157 : f32 to vector<8x64xf32>
    %200 = vector.broadcast %cst_158 : f32 to vector<8x64xf32>
    %201 = arith.select %198, %199, %200 : vector<8x64xi1>, vector<8x64xf32>
    %202 = math.absf %196 : vector<8x64xf32>
    %cst_159 = arith.constant 0.327591091 : f32
    %203 = vector.broadcast %cst_159 : f32 to vector<8x64xf32>
    %204 = arith.mulf %203, %202 : vector<8x64xf32>
    %cst_160 = arith.constant 1.000000e+00 : f32
    %205 = vector.broadcast %cst_160 : f32 to vector<8x64xf32>
    %206 = arith.addf %205, %204 : vector<8x64xf32>
    %cst_161 = arith.constant 1.000000e+00 : f32
    %207 = vector.broadcast %cst_161 : f32 to vector<8x64xf32>
    %208 = arith.divf %207, %206 : vector<8x64xf32>
    %cst_162 = arith.constant 1.06140542 : f32
    %209 = vector.broadcast %cst_162 : f32 to vector<8x64xf32>
    %210 = arith.mulf %209, %208 : vector<8x64xf32>
    %cst_163 = arith.constant -1.45315206 : f32
    %211 = vector.broadcast %cst_163 : f32 to vector<8x64xf32>
    %212 = arith.addf %210, %211 : vector<8x64xf32>
    %213 = arith.mulf %212, %208 : vector<8x64xf32>
    %cst_164 = arith.constant 1.42141378 : f32
    %214 = vector.broadcast %cst_164 : f32 to vector<8x64xf32>
    %215 = arith.addf %213, %214 : vector<8x64xf32>
    %216 = arith.mulf %215, %208 : vector<8x64xf32>
    %cst_165 = arith.constant -0.284496725 : f32
    %217 = vector.broadcast %cst_165 : f32 to vector<8x64xf32>
    %218 = arith.addf %216, %217 : vector<8x64xf32>
    %219 = arith.mulf %218, %208 : vector<8x64xf32>
    %cst_166 = arith.constant 0.254829586 : f32
    %220 = vector.broadcast %cst_166 : f32 to vector<8x64xf32>
    %221 = arith.addf %219, %220 : vector<8x64xf32>
    %222 = arith.mulf %221, %208 : vector<8x64xf32>
    %cst_167 = arith.constant 0.000000e+00 : f32
    %223 = vector.broadcast %cst_167 : f32 to vector<8x64xf32>
    %224 = arith.subf %223, %202 : vector<8x64xf32>
    %225 = arith.mulf %224, %202 : vector<8x64xf32>
    %226 = math.exp %225 : vector<8x64xf32>
    %227 = arith.mulf %222, %226 : vector<8x64xf32>
    %cst_168 = arith.constant 1.000000e+00 : f32
    %228 = vector.broadcast %cst_168 : f32 to vector<8x64xf32>
    %229 = arith.subf %228, %227 : vector<8x64xf32>
    %230 = arith.mulf %201, %229 : vector<8x64xf32>
    %cst_169 = arith.constant 1.000000e+00 : f32
    %231 = vector.broadcast %cst_169 : f32 to vector<8x64xf32>
    %232 = arith.addf %231, %230 : vector<8x64xf32>
    %233 = arith.mulf %194, %232 : vector<8x64xf32>
    %c0_170 = arith.constant 0 : index
    %c0_171 = arith.constant 0 : index
    %c0_172 = arith.constant 0 : index
    %234 = vector.load %arg6[%c0_170, %c0_171, %c0_172] : memref<2x64x32xf32, #tpu.memory_space<vmem>>, vector<1x64x32xf32>
    %235 = vector.shape_cast %234 : vector<1x64x32xf32> to vector<64x32xf32>
    %cst_173 = arith.constant dense<0.000000e+00> : vector<8x32xf32>
    %236 = tpu.matmul %233, %235, %cst_173 {dimension_numbers = #tpu.dot_dimension_numbers<[1], [0], [0], [1], [0, 0, 1, 1], [], []>} : vector<8x64xf32>, vector<64x32xf32>, vector<8x32xf32> -> vector<8x32xf32>
    %c0_174 = arith.constant 0 : index
    %c4 = arith.constant 4 : index
    %c0_175 = arith.constant 0 : index
    %237 = vector.load %arg7[%c0_174, %c4, %c0_175] : memref<2x19x64xf32, #tpu.memory_space<vmem>>, vector<1x1x32xf32>
    %238 = vector.shape_cast %237 : vector<1x1x32xf32> to vector<1x32xf32>
    %239 = vector.broadcast %238 : vector<1x32xf32> to vector<8x32xf32>
    %240 = arith.addf %236, %239 : vector<8x32xf32>
    %241 = arith.addf %240, %185 : vector<8x32xf32>
    %c0_176 = arith.constant 0 : index
    %c5 = arith.constant 5 : index
    %c0_177 = arith.constant 0 : index
    %242 = vector.load %arg7[%c0_176, %c5, %c0_177] : memref<2x19x64xf32, #tpu.memory_space<vmem>>, vector<1x1x32xf32>
    %243 = vector.shape_cast %242 : vector<1x1x32xf32> to vector<1x32xf32>
    %c0_178 = arith.constant 0 : index
    %c6 = arith.constant 6 : index
    %c0_179 = arith.constant 0 : index
    %244 = vector.load %arg7[%c0_178, %c6, %c0_179] : memref<2x19x64xf32, #tpu.memory_space<vmem>>, vector<1x1x32xf32>
    %245 = vector.shape_cast %244 : vector<1x1x32xf32> to vector<1x32xf32>
    %cst_180 = arith.constant dense<0.000000e+00> : vector<8xf32>
    %246 = vector.multi_reduction <add>, %241, %cst_180 [1] : vector<8x32xf32> to vector<8xf32>
    %247 = vector.shape_cast %246 : vector<8xf32> to vector<8x1xf32>
    %cst_181 = arith.constant 3.200000e+01 : f32
    %248 = vector.broadcast %cst_181 : f32 to vector<8x1xf32>
    %249 = arith.divf %247, %248 : vector<8x1xf32>
    %250 = vector.broadcast %249 : vector<8x1xf32> to vector<8x32xf32>
    %251 = arith.subf %241, %250 : vector<8x32xf32>
    %252 = arith.mulf %251, %251 : vector<8x32xf32>
    %cst_182 = arith.constant dense<0.000000e+00> : vector<8xf32>
    %253 = vector.multi_reduction <add>, %252, %cst_182 [1] : vector<8x32xf32> to vector<8xf32>
    %254 = vector.shape_cast %253 : vector<8xf32> to vector<8x1xf32>
    %cst_183 = arith.constant 3.200000e+01 : f32
    %255 = vector.broadcast %cst_183 : f32 to vector<8x1xf32>
    %256 = arith.divf %254, %255 : vector<8x1xf32>
    %257 = vector.broadcast %249 : vector<8x1xf32> to vector<8x32xf32>
    %258 = arith.subf %241, %257 : vector<8x32xf32>
    %cst_184 = arith.constant 9.99999996E-13 : f32
    %259 = vector.broadcast %cst_184 : f32 to vector<8x1xf32>
    %260 = arith.addf %256, %259 : vector<8x1xf32>
    %261 = math.rsqrt %260 : vector<8x1xf32>
    %262 = vector.broadcast %261 : vector<8x1xf32> to vector<8x32xf32>
    %263 = arith.mulf %258, %262 : vector<8x32xf32>
    %264 = vector.broadcast %243 : vector<1x32xf32> to vector<8x32xf32>
    %265 = arith.mulf %263, %264 : vector<8x32xf32>
    %266 = vector.broadcast %245 : vector<1x32xf32> to vector<8x32xf32>
    %267 = arith.addf %265, %266 : vector<8x32xf32>
    %c1_185 = arith.constant 1 : index
    %c0_186 = arith.constant 0 : index
    %c0_187 = arith.constant 0 : index
    %c0_188 = arith.constant 0 : index
    %c0_189 = arith.constant 0 : index
    %268 = vector.load %arg3[%c1_185, %c0_186, %c0_187, %c0_188, %c0_189] : memref<2x3x4x32x8xf32, #tpu.memory_space<vmem>>, vector<1x1x1x32x8xf32>
    %269 = vector.shape_cast %268 : vector<1x1x1x32x8xf32> to vector<32x8xf32>
    %cst_190 = arith.constant dense<0.000000e+00> : vector<8x8xf32>
    %270 = tpu.matmul %267, %269, %cst_190 {dimension_numbers = #tpu.dot_dimension_numbers<[1], [0], [0], [1], [0, 0, 1, 1], [], []>} : vector<8x32xf32>, vector<32x8xf32>, vector<8x8xf32> -> vector<8x8xf32>
    %c1_191 = arith.constant 1 : index
    %c7_192 = arith.constant 7 : index
    %c0_193 = arith.constant 0 : index
    %271 = vector.load %arg7[%c1_191, %c7_192, %c0_193] : memref<2x19x64xf32, #tpu.memory_space<vmem>>, vector<1x1x8xf32>
    %272 = vector.shape_cast %271 : vector<1x1x8xf32> to vector<1x8xf32>
    %273 = vector.broadcast %272 : vector<1x8xf32> to vector<8x8xf32>
    %274 = arith.addf %270, %273 : vector<8x8xf32>
    %c1_194 = arith.constant 1 : index
    %c1_195 = arith.constant 1 : index
    %c0_196 = arith.constant 0 : index
    %c0_197 = arith.constant 0 : index
    %c0_198 = arith.constant 0 : index
    %275 = vector.load %arg3[%c1_194, %c1_195, %c0_196, %c0_197, %c0_198] : memref<2x3x4x32x8xf32, #tpu.memory_space<vmem>>, vector<1x1x1x32x8xf32>
    %276 = vector.shape_cast %275 : vector<1x1x1x32x8xf32> to vector<32x8xf32>
    %cst_199 = arith.constant dense<0.000000e+00> : vector<8x8xf32>
    %277 = tpu.matmul %267, %276, %cst_199 {dimension_numbers = #tpu.dot_dimension_numbers<[1], [0], [0], [1], [0, 0, 1, 1], [], []>} : vector<8x32xf32>, vector<32x8xf32>, vector<8x8xf32> -> vector<8x8xf32>
    %c1_200 = arith.constant 1 : index
    %c11_201 = arith.constant 11 : index
    %c0_202 = arith.constant 0 : index
    %278 = vector.load %arg7[%c1_200, %c11_201, %c0_202] : memref<2x19x64xf32, #tpu.memory_space<vmem>>, vector<1x1x8xf32>
    %279 = vector.shape_cast %278 : vector<1x1x8xf32> to vector<1x8xf32>
    %280 = vector.broadcast %279 : vector<1x8xf32> to vector<8x8xf32>
    %281 = arith.addf %277, %280 : vector<8x8xf32>
    %c1_203 = arith.constant 1 : index
    %c2_204 = arith.constant 2 : index
    %c0_205 = arith.constant 0 : index
    %c0_206 = arith.constant 0 : index
    %c0_207 = arith.constant 0 : index
    %282 = vector.load %arg3[%c1_203, %c2_204, %c0_205, %c0_206, %c0_207] : memref<2x3x4x32x8xf32, #tpu.memory_space<vmem>>, vector<1x1x1x32x8xf32>
    %283 = vector.shape_cast %282 : vector<1x1x1x32x8xf32> to vector<32x8xf32>
    %cst_208 = arith.constant dense<0.000000e+00> : vector<8x8xf32>
    %284 = tpu.matmul %267, %283, %cst_208 {dimension_numbers = #tpu.dot_dimension_numbers<[1], [0], [0], [1], [0, 0, 1, 1], [], []>} : vector<8x32xf32>, vector<32x8xf32>, vector<8x8xf32> -> vector<8x8xf32>
    %c1_209 = arith.constant 1 : index
    %c15_210 = arith.constant 15 : index
    %c0_211 = arith.constant 0 : index
    %285 = vector.load %arg7[%c1_209, %c15_210, %c0_211] : memref<2x19x64xf32, #tpu.memory_space<vmem>>, vector<1x1x8xf32>
    %286 = vector.shape_cast %285 : vector<1x1x8xf32> to vector<1x8xf32>
    %287 = vector.broadcast %286 : vector<1x8xf32> to vector<8x8xf32>
    %288 = arith.addf %284, %287 : vector<8x8xf32>
    %cst_212 = arith.constant dense<0.000000e+00> : vector<8x8xf32>
    %289 = tpu.matmul %274, %281, %cst_212 {dimension_numbers = #tpu.dot_dimension_numbers<[1], [1], [0], [0], [0, 0, 1, 0], [], []>} : vector<8x8xf32>, vector<8x8xf32>, vector<8x8xf32> -> vector<8x8xf32>
    %290 = vector.broadcast %3 : vector<1x8xf32> to vector<8x8xf32>
    %291 = arith.addf %289, %290 : vector<8x8xf32>
    %cst_213 = arith.constant dense<0xFF800000> : vector<8xf32>
    %292 = vector.multi_reduction <maximumf>, %291, %cst_213 [1] : vector<8x8xf32> to vector<8xf32>
    %293 = vector.shape_cast %292 : vector<8xf32> to vector<8x1xf32>
    %294 = vector.broadcast %293 : vector<8x1xf32> to vector<8x8xf32>
    %295 = arith.subf %291, %294 : vector<8x8xf32>
    %296 = math.exp %295 : vector<8x8xf32>
    %cst_214 = arith.constant dense<0.000000e+00> : vector<8xf32>
    %297 = vector.multi_reduction <add>, %296, %cst_214 [1] : vector<8x8xf32> to vector<8xf32>
    %298 = vector.shape_cast %297 : vector<8xf32> to vector<8x1xf32>
    %299 = vector.broadcast %298 : vector<8x1xf32> to vector<8x8xf32>
    %300 = arith.divf %296, %299 : vector<8x8xf32>
    %cst_215 = arith.constant dense<0.000000e+00> : vector<8x8xf32>
    %301 = tpu.matmul %300, %288, %cst_215 {dimension_numbers = #tpu.dot_dimension_numbers<[1], [0], [0], [1], [0, 0, 1, 1], [], []>} : vector<8x8xf32>, vector<8x8xf32>, vector<8x8xf32> -> vector<8x8xf32>
    %c1_216 = arith.constant 1 : index
    %c0_217 = arith.constant 0 : index
    %c0_218 = arith.constant 0 : index
    %c0_219 = arith.constant 0 : index
    %302 = vector.load %arg4[%c1_216, %c0_217, %c0_218, %c0_219] : memref<2x4x8x32xf32, #tpu.memory_space<vmem>>, vector<1x1x8x32xf32>
    %303 = vector.shape_cast %302 : vector<1x1x8x32xf32> to vector<8x32xf32>
    %cst_220 = arith.constant dense<0.000000e+00> : vector<8x32xf32>
    %304 = tpu.matmul %301, %303, %cst_220 {dimension_numbers = #tpu.dot_dimension_numbers<[1], [0], [0], [1], [0, 0, 1, 1], [], []>} : vector<8x8xf32>, vector<8x32xf32>, vector<8x32xf32> -> vector<8x32xf32>
    %c1_221 = arith.constant 1 : index
    %c0_222 = arith.constant 0 : index
    %c1_223 = arith.constant 1 : index
    %c0_224 = arith.constant 0 : index
    %c0_225 = arith.constant 0 : index
    %305 = vector.load %arg3[%c1_221, %c0_222, %c1_223, %c0_224, %c0_225] : memref<2x3x4x32x8xf32, #tpu.memory_space<vmem>>, vector<1x1x1x32x8xf32>
    %306 = vector.shape_cast %305 : vector<1x1x1x32x8xf32> to vector<32x8xf32>
    %cst_226 = arith.constant dense<0.000000e+00> : vector<8x8xf32>
    %307 = tpu.matmul %267, %306, %cst_226 {dimension_numbers = #tpu.dot_dimension_numbers<[1], [0], [0], [1], [0, 0, 1, 1], [], []>} : vector<8x32xf32>, vector<32x8xf32>, vector<8x8xf32> -> vector<8x8xf32>
    %c1_227 = arith.constant 1 : index
    %c8_228 = arith.constant 8 : index
    %c0_229 = arith.constant 0 : index
    %308 = vector.load %arg7[%c1_227, %c8_228, %c0_229] : memref<2x19x64xf32, #tpu.memory_space<vmem>>, vector<1x1x8xf32>
    %309 = vector.shape_cast %308 : vector<1x1x8xf32> to vector<1x8xf32>
    %310 = vector.broadcast %309 : vector<1x8xf32> to vector<8x8xf32>
    %311 = arith.addf %307, %310 : vector<8x8xf32>
    %c1_230 = arith.constant 1 : index
    %c1_231 = arith.constant 1 : index
    %c1_232 = arith.constant 1 : index
    %c0_233 = arith.constant 0 : index
    %c0_234 = arith.constant 0 : index
    %312 = vector.load %arg3[%c1_230, %c1_231, %c1_232, %c0_233, %c0_234] : memref<2x3x4x32x8xf32, #tpu.memory_space<vmem>>, vector<1x1x1x32x8xf32>
    %313 = vector.shape_cast %312 : vector<1x1x1x32x8xf32> to vector<32x8xf32>
    %cst_235 = arith.constant dense<0.000000e+00> : vector<8x8xf32>
    %314 = tpu.matmul %267, %313, %cst_235 {dimension_numbers = #tpu.dot_dimension_numbers<[1], [0], [0], [1], [0, 0, 1, 1], [], []>} : vector<8x32xf32>, vector<32x8xf32>, vector<8x8xf32> -> vector<8x8xf32>
    %c1_236 = arith.constant 1 : index
    %c12_237 = arith.constant 12 : index
    %c0_238 = arith.constant 0 : index
    %315 = vector.load %arg7[%c1_236, %c12_237, %c0_238] : memref<2x19x64xf32, #tpu.memory_space<vmem>>, vector<1x1x8xf32>
    %316 = vector.shape_cast %315 : vector<1x1x8xf32> to vector<1x8xf32>
    %317 = vector.broadcast %316 : vector<1x8xf32> to vector<8x8xf32>
    %318 = arith.addf %314, %317 : vector<8x8xf32>
    %c1_239 = arith.constant 1 : index
    %c2_240 = arith.constant 2 : index
    %c1_241 = arith.constant 1 : index
    %c0_242 = arith.constant 0 : index
    %c0_243 = arith.constant 0 : index
    %319 = vector.load %arg3[%c1_239, %c2_240, %c1_241, %c0_242, %c0_243] : memref<2x3x4x32x8xf32, #tpu.memory_space<vmem>>, vector<1x1x1x32x8xf32>
    %320 = vector.shape_cast %319 : vector<1x1x1x32x8xf32> to vector<32x8xf32>
    %cst_244 = arith.constant dense<0.000000e+00> : vector<8x8xf32>
    %321 = tpu.matmul %267, %320, %cst_244 {dimension_numbers = #tpu.dot_dimension_numbers<[1], [0], [0], [1], [0, 0, 1, 1], [], []>} : vector<8x32xf32>, vector<32x8xf32>, vector<8x8xf32> -> vector<8x8xf32>
    %c1_245 = arith.constant 1 : index
    %c16_246 = arith.constant 16 : index
    %c0_247 = arith.constant 0 : index
    %322 = vector.load %arg7[%c1_245, %c16_246, %c0_247] : memref<2x19x64xf32, #tpu.memory_space<vmem>>, vector<1x1x8xf32>
    %323 = vector.shape_cast %322 : vector<1x1x8xf32> to vector<1x8xf32>
    %324 = vector.broadcast %323 : vector<1x8xf32> to vector<8x8xf32>
    %325 = arith.addf %321, %324 : vector<8x8xf32>
    %cst_248 = arith.constant dense<0.000000e+00> : vector<8x8xf32>
    %326 = tpu.matmul %311, %318, %cst_248 {dimension_numbers = #tpu.dot_dimension_numbers<[1], [1], [0], [0], [0, 0, 1, 0], [], []>} : vector<8x8xf32>, vector<8x8xf32>, vector<8x8xf32> -> vector<8x8xf32>
    %327 = vector.broadcast %3 : vector<1x8xf32> to vector<8x8xf32>
    %328 = arith.addf %326, %327 : vector<8x8xf32>
    %cst_249 = arith.constant dense<0xFF800000> : vector<8xf32>
    %329 = vector.multi_reduction <maximumf>, %328, %cst_249 [1] : vector<8x8xf32> to vector<8xf32>
    %330 = vector.shape_cast %329 : vector<8xf32> to vector<8x1xf32>
    %331 = vector.broadcast %330 : vector<8x1xf32> to vector<8x8xf32>
    %332 = arith.subf %328, %331 : vector<8x8xf32>
    %333 = math.exp %332 : vector<8x8xf32>
    %cst_250 = arith.constant dense<0.000000e+00> : vector<8xf32>
    %334 = vector.multi_reduction <add>, %333, %cst_250 [1] : vector<8x8xf32> to vector<8xf32>
    %335 = vector.shape_cast %334 : vector<8xf32> to vector<8x1xf32>
    %336 = vector.broadcast %335 : vector<8x1xf32> to vector<8x8xf32>
    %337 = arith.divf %333, %336 : vector<8x8xf32>
    %cst_251 = arith.constant dense<0.000000e+00> : vector<8x8xf32>
    %338 = tpu.matmul %337, %325, %cst_251 {dimension_numbers = #tpu.dot_dimension_numbers<[1], [0], [0], [1], [0, 0, 1, 1], [], []>} : vector<8x8xf32>, vector<8x8xf32>, vector<8x8xf32> -> vector<8x8xf32>
    %c1_252 = arith.constant 1 : index
    %c1_253 = arith.constant 1 : index
    %c0_254 = arith.constant 0 : index
    %c0_255 = arith.constant 0 : index
    %339 = vector.load %arg4[%c1_252, %c1_253, %c0_254, %c0_255] : memref<2x4x8x32xf32, #tpu.memory_space<vmem>>, vector<1x1x8x32xf32>
    %340 = vector.shape_cast %339 : vector<1x1x8x32xf32> to vector<8x32xf32>
    %cst_256 = arith.constant dense<0.000000e+00> : vector<8x32xf32>
    %341 = tpu.matmul %338, %340, %cst_256 {dimension_numbers = #tpu.dot_dimension_numbers<[1], [0], [0], [1], [0, 0, 1, 1], [], []>} : vector<8x8xf32>, vector<8x32xf32>, vector<8x32xf32> -> vector<8x32xf32>
    %342 = arith.addf %304, %341 : vector<8x32xf32>
    %c1_257 = arith.constant 1 : index
    %c0_258 = arith.constant 0 : index
    %c2_259 = arith.constant 2 : index
    %c0_260 = arith.constant 0 : index
    %c0_261 = arith.constant 0 : index
    %343 = vector.load %arg3[%c1_257, %c0_258, %c2_259, %c0_260, %c0_261] : memref<2x3x4x32x8xf32, #tpu.memory_space<vmem>>, vector<1x1x1x32x8xf32>
    %344 = vector.shape_cast %343 : vector<1x1x1x32x8xf32> to vector<32x8xf32>
    %cst_262 = arith.constant dense<0.000000e+00> : vector<8x8xf32>
    %345 = tpu.matmul %267, %344, %cst_262 {dimension_numbers = #tpu.dot_dimension_numbers<[1], [0], [0], [1], [0, 0, 1, 1], [], []>} : vector<8x32xf32>, vector<32x8xf32>, vector<8x8xf32> -> vector<8x8xf32>
    %c1_263 = arith.constant 1 : index
    %c9_264 = arith.constant 9 : index
    %c0_265 = arith.constant 0 : index
    %346 = vector.load %arg7[%c1_263, %c9_264, %c0_265] : memref<2x19x64xf32, #tpu.memory_space<vmem>>, vector<1x1x8xf32>
    %347 = vector.shape_cast %346 : vector<1x1x8xf32> to vector<1x8xf32>
    %348 = vector.broadcast %347 : vector<1x8xf32> to vector<8x8xf32>
    %349 = arith.addf %345, %348 : vector<8x8xf32>
    %c1_266 = arith.constant 1 : index
    %c1_267 = arith.constant 1 : index
    %c2_268 = arith.constant 2 : index
    %c0_269 = arith.constant 0 : index
    %c0_270 = arith.constant 0 : index
    %350 = vector.load %arg3[%c1_266, %c1_267, %c2_268, %c0_269, %c0_270] : memref<2x3x4x32x8xf32, #tpu.memory_space<vmem>>, vector<1x1x1x32x8xf32>
    %351 = vector.shape_cast %350 : vector<1x1x1x32x8xf32> to vector<32x8xf32>
    %cst_271 = arith.constant dense<0.000000e+00> : vector<8x8xf32>
    %352 = tpu.matmul %267, %351, %cst_271 {dimension_numbers = #tpu.dot_dimension_numbers<[1], [0], [0], [1], [0, 0, 1, 1], [], []>} : vector<8x32xf32>, vector<32x8xf32>, vector<8x8xf32> -> vector<8x8xf32>
    %c1_272 = arith.constant 1 : index
    %c13_273 = arith.constant 13 : index
    %c0_274 = arith.constant 0 : index
    %353 = vector.load %arg7[%c1_272, %c13_273, %c0_274] : memref<2x19x64xf32, #tpu.memory_space<vmem>>, vector<1x1x8xf32>
    %354 = vector.shape_cast %353 : vector<1x1x8xf32> to vector<1x8xf32>
    %355 = vector.broadcast %354 : vector<1x8xf32> to vector<8x8xf32>
    %356 = arith.addf %352, %355 : vector<8x8xf32>
    %c1_275 = arith.constant 1 : index
    %c2_276 = arith.constant 2 : index
    %c2_277 = arith.constant 2 : index
    %c0_278 = arith.constant 0 : index
    %c0_279 = arith.constant 0 : index
    %357 = vector.load %arg3[%c1_275, %c2_276, %c2_277, %c0_278, %c0_279] : memref<2x3x4x32x8xf32, #tpu.memory_space<vmem>>, vector<1x1x1x32x8xf32>
    %358 = vector.shape_cast %357 : vector<1x1x1x32x8xf32> to vector<32x8xf32>
    %cst_280 = arith.constant dense<0.000000e+00> : vector<8x8xf32>
    %359 = tpu.matmul %267, %358, %cst_280 {dimension_numbers = #tpu.dot_dimension_numbers<[1], [0], [0], [1], [0, 0, 1, 1], [], []>} : vector<8x32xf32>, vector<32x8xf32>, vector<8x8xf32> -> vector<8x8xf32>
    %c1_281 = arith.constant 1 : index
    %c17_282 = arith.constant 17 : index
    %c0_283 = arith.constant 0 : index
    %360 = vector.load %arg7[%c1_281, %c17_282, %c0_283] : memref<2x19x64xf32, #tpu.memory_space<vmem>>, vector<1x1x8xf32>
    %361 = vector.shape_cast %360 : vector<1x1x8xf32> to vector<1x8xf32>
    %362 = vector.broadcast %361 : vector<1x8xf32> to vector<8x8xf32>
    %363 = arith.addf %359, %362 : vector<8x8xf32>
    %cst_284 = arith.constant dense<0.000000e+00> : vector<8x8xf32>
    %364 = tpu.matmul %349, %356, %cst_284 {dimension_numbers = #tpu.dot_dimension_numbers<[1], [1], [0], [0], [0, 0, 1, 0], [], []>} : vector<8x8xf32>, vector<8x8xf32>, vector<8x8xf32> -> vector<8x8xf32>
    %365 = vector.broadcast %3 : vector<1x8xf32> to vector<8x8xf32>
    %366 = arith.addf %364, %365 : vector<8x8xf32>
    %cst_285 = arith.constant dense<0xFF800000> : vector<8xf32>
    %367 = vector.multi_reduction <maximumf>, %366, %cst_285 [1] : vector<8x8xf32> to vector<8xf32>
    %368 = vector.shape_cast %367 : vector<8xf32> to vector<8x1xf32>
    %369 = vector.broadcast %368 : vector<8x1xf32> to vector<8x8xf32>
    %370 = arith.subf %366, %369 : vector<8x8xf32>
    %371 = math.exp %370 : vector<8x8xf32>
    %cst_286 = arith.constant dense<0.000000e+00> : vector<8xf32>
    %372 = vector.multi_reduction <add>, %371, %cst_286 [1] : vector<8x8xf32> to vector<8xf32>
    %373 = vector.shape_cast %372 : vector<8xf32> to vector<8x1xf32>
    %374 = vector.broadcast %373 : vector<8x1xf32> to vector<8x8xf32>
    %375 = arith.divf %371, %374 : vector<8x8xf32>
    %cst_287 = arith.constant dense<0.000000e+00> : vector<8x8xf32>
    %376 = tpu.matmul %375, %363, %cst_287 {dimension_numbers = #tpu.dot_dimension_numbers<[1], [0], [0], [1], [0, 0, 1, 1], [], []>} : vector<8x8xf32>, vector<8x8xf32>, vector<8x8xf32> -> vector<8x8xf32>
    %c1_288 = arith.constant 1 : index
    %c2_289 = arith.constant 2 : index
    %c0_290 = arith.constant 0 : index
    %c0_291 = arith.constant 0 : index
    %377 = vector.load %arg4[%c1_288, %c2_289, %c0_290, %c0_291] : memref<2x4x8x32xf32, #tpu.memory_space<vmem>>, vector<1x1x8x32xf32>
    %378 = vector.shape_cast %377 : vector<1x1x8x32xf32> to vector<8x32xf32>
    %cst_292 = arith.constant dense<0.000000e+00> : vector<8x32xf32>
    %379 = tpu.matmul %376, %378, %cst_292 {dimension_numbers = #tpu.dot_dimension_numbers<[1], [0], [0], [1], [0, 0, 1, 1], [], []>} : vector<8x8xf32>, vector<8x32xf32>, vector<8x32xf32> -> vector<8x32xf32>
    %380 = arith.addf %342, %379 : vector<8x32xf32>
    %c1_293 = arith.constant 1 : index
    %c0_294 = arith.constant 0 : index
    %c3_295 = arith.constant 3 : index
    %c0_296 = arith.constant 0 : index
    %c0_297 = arith.constant 0 : index
    %381 = vector.load %arg3[%c1_293, %c0_294, %c3_295, %c0_296, %c0_297] : memref<2x3x4x32x8xf32, #tpu.memory_space<vmem>>, vector<1x1x1x32x8xf32>
    %382 = vector.shape_cast %381 : vector<1x1x1x32x8xf32> to vector<32x8xf32>
    %cst_298 = arith.constant dense<0.000000e+00> : vector<8x8xf32>
    %383 = tpu.matmul %267, %382, %cst_298 {dimension_numbers = #tpu.dot_dimension_numbers<[1], [0], [0], [1], [0, 0, 1, 1], [], []>} : vector<8x32xf32>, vector<32x8xf32>, vector<8x8xf32> -> vector<8x8xf32>
    %c1_299 = arith.constant 1 : index
    %c10_300 = arith.constant 10 : index
    %c0_301 = arith.constant 0 : index
    %384 = vector.load %arg7[%c1_299, %c10_300, %c0_301] : memref<2x19x64xf32, #tpu.memory_space<vmem>>, vector<1x1x8xf32>
    %385 = vector.shape_cast %384 : vector<1x1x8xf32> to vector<1x8xf32>
    %386 = vector.broadcast %385 : vector<1x8xf32> to vector<8x8xf32>
    %387 = arith.addf %383, %386 : vector<8x8xf32>
    %c1_302 = arith.constant 1 : index
    %c1_303 = arith.constant 1 : index
    %c3_304 = arith.constant 3 : index
    %c0_305 = arith.constant 0 : index
    %c0_306 = arith.constant 0 : index
    %388 = vector.load %arg3[%c1_302, %c1_303, %c3_304, %c0_305, %c0_306] : memref<2x3x4x32x8xf32, #tpu.memory_space<vmem>>, vector<1x1x1x32x8xf32>
    %389 = vector.shape_cast %388 : vector<1x1x1x32x8xf32> to vector<32x8xf32>
    %cst_307 = arith.constant dense<0.000000e+00> : vector<8x8xf32>
    %390 = tpu.matmul %267, %389, %cst_307 {dimension_numbers = #tpu.dot_dimension_numbers<[1], [0], [0], [1], [0, 0, 1, 1], [], []>} : vector<8x32xf32>, vector<32x8xf32>, vector<8x8xf32> -> vector<8x8xf32>
    %c1_308 = arith.constant 1 : index
    %c14_309 = arith.constant 14 : index
    %c0_310 = arith.constant 0 : index
    %391 = vector.load %arg7[%c1_308, %c14_309, %c0_310] : memref<2x19x64xf32, #tpu.memory_space<vmem>>, vector<1x1x8xf32>
    %392 = vector.shape_cast %391 : vector<1x1x8xf32> to vector<1x8xf32>
    %393 = vector.broadcast %392 : vector<1x8xf32> to vector<8x8xf32>
    %394 = arith.addf %390, %393 : vector<8x8xf32>
    %c1_311 = arith.constant 1 : index
    %c2_312 = arith.constant 2 : index
    %c3_313 = arith.constant 3 : index
    %c0_314 = arith.constant 0 : index
    %c0_315 = arith.constant 0 : index
    %395 = vector.load %arg3[%c1_311, %c2_312, %c3_313, %c0_314, %c0_315] : memref<2x3x4x32x8xf32, #tpu.memory_space<vmem>>, vector<1x1x1x32x8xf32>
    %396 = vector.shape_cast %395 : vector<1x1x1x32x8xf32> to vector<32x8xf32>
    %cst_316 = arith.constant dense<0.000000e+00> : vector<8x8xf32>
    %397 = tpu.matmul %267, %396, %cst_316 {dimension_numbers = #tpu.dot_dimension_numbers<[1], [0], [0], [1], [0, 0, 1, 1], [], []>} : vector<8x32xf32>, vector<32x8xf32>, vector<8x8xf32> -> vector<8x8xf32>
    %c1_317 = arith.constant 1 : index
    %c18_318 = arith.constant 18 : index
    %c0_319 = arith.constant 0 : index
    %398 = vector.load %arg7[%c1_317, %c18_318, %c0_319] : memref<2x19x64xf32, #tpu.memory_space<vmem>>, vector<1x1x8xf32>
    %399 = vector.shape_cast %398 : vector<1x1x8xf32> to vector<1x8xf32>
    %400 = vector.broadcast %399 : vector<1x8xf32> to vector<8x8xf32>
    %401 = arith.addf %397, %400 : vector<8x8xf32>
    %cst_320 = arith.constant dense<0.000000e+00> : vector<8x8xf32>
    %402 = tpu.matmul %387, %394, %cst_320 {dimension_numbers = #tpu.dot_dimension_numbers<[1], [1], [0], [0], [0, 0, 1, 0], [], []>} : vector<8x8xf32>, vector<8x8xf32>, vector<8x8xf32> -> vector<8x8xf32>
    %403 = vector.broadcast %3 : vector<1x8xf32> to vector<8x8xf32>
    %404 = arith.addf %402, %403 : vector<8x8xf32>
    %cst_321 = arith.constant dense<0xFF800000> : vector<8xf32>
    %405 = vector.multi_reduction <maximumf>, %404, %cst_321 [1] : vector<8x8xf32> to vector<8xf32>
    %406 = vector.shape_cast %405 : vector<8xf32> to vector<8x1xf32>
    %407 = vector.broadcast %406 : vector<8x1xf32> to vector<8x8xf32>
    %408 = arith.subf %404, %407 : vector<8x8xf32>
    %409 = math.exp %408 : vector<8x8xf32>
    %cst_322 = arith.constant dense<0.000000e+00> : vector<8xf32>
    %410 = vector.multi_reduction <add>, %409, %cst_322 [1] : vector<8x8xf32> to vector<8xf32>
    %411 = vector.shape_cast %410 : vector<8xf32> to vector<8x1xf32>
    %412 = vector.broadcast %411 : vector<8x1xf32> to vector<8x8xf32>
    %413 = arith.divf %409, %412 : vector<8x8xf32>
    %cst_323 = arith.constant dense<0.000000e+00> : vector<8x8xf32>
    %414 = tpu.matmul %413, %401, %cst_323 {dimension_numbers = #tpu.dot_dimension_numbers<[1], [0], [0], [1], [0, 0, 1, 1], [], []>} : vector<8x8xf32>, vector<8x8xf32>, vector<8x8xf32> -> vector<8x8xf32>
    %c1_324 = arith.constant 1 : index
    %c3_325 = arith.constant 3 : index
    %c0_326 = arith.constant 0 : index
    %c0_327 = arith.constant 0 : index
    %415 = vector.load %arg4[%c1_324, %c3_325, %c0_326, %c0_327] : memref<2x4x8x32xf32, #tpu.memory_space<vmem>>, vector<1x1x8x32xf32>
    %416 = vector.shape_cast %415 : vector<1x1x8x32xf32> to vector<8x32xf32>
    %cst_328 = arith.constant dense<0.000000e+00> : vector<8x32xf32>
    %417 = tpu.matmul %414, %416, %cst_328 {dimension_numbers = #tpu.dot_dimension_numbers<[1], [0], [0], [1], [0, 0, 1, 1], [], []>} : vector<8x8xf32>, vector<8x32xf32>, vector<8x32xf32> -> vector<8x32xf32>
    %418 = arith.addf %380, %417 : vector<8x32xf32>
    %c1_329 = arith.constant 1 : index
    %c0_330 = arith.constant 0 : index
    %c0_331 = arith.constant 0 : index
    %419 = vector.load %arg7[%c1_329, %c0_330, %c0_331] : memref<2x19x64xf32, #tpu.memory_space<vmem>>, vector<1x1x32xf32>
    %420 = vector.shape_cast %419 : vector<1x1x32xf32> to vector<1x32xf32>
    %421 = vector.broadcast %420 : vector<1x32xf32> to vector<8x32xf32>
    %422 = arith.addf %418, %421 : vector<8x32xf32>
    %423 = arith.addf %422, %267 : vector<8x32xf32>
    %c1_332 = arith.constant 1 : index
    %c1_333 = arith.constant 1 : index
    %c0_334 = arith.constant 0 : index
    %424 = vector.load %arg7[%c1_332, %c1_333, %c0_334] : memref<2x19x64xf32, #tpu.memory_space<vmem>>, vector<1x1x32xf32>
    %425 = vector.shape_cast %424 : vector<1x1x32xf32> to vector<1x32xf32>
    %c1_335 = arith.constant 1 : index
    %c2_336 = arith.constant 2 : index
    %c0_337 = arith.constant 0 : index
    %426 = vector.load %arg7[%c1_335, %c2_336, %c0_337] : memref<2x19x64xf32, #tpu.memory_space<vmem>>, vector<1x1x32xf32>
    %427 = vector.shape_cast %426 : vector<1x1x32xf32> to vector<1x32xf32>
    %cst_338 = arith.constant dense<0.000000e+00> : vector<8xf32>
    %428 = vector.multi_reduction <add>, %423, %cst_338 [1] : vector<8x32xf32> to vector<8xf32>
    %429 = vector.shape_cast %428 : vector<8xf32> to vector<8x1xf32>
    %cst_339 = arith.constant 3.200000e+01 : f32
    %430 = vector.broadcast %cst_339 : f32 to vector<8x1xf32>
    %431 = arith.divf %429, %430 : vector<8x1xf32>
    %432 = vector.broadcast %431 : vector<8x1xf32> to vector<8x32xf32>
    %433 = arith.subf %423, %432 : vector<8x32xf32>
    %434 = arith.mulf %433, %433 : vector<8x32xf32>
    %cst_340 = arith.constant dense<0.000000e+00> : vector<8xf32>
    %435 = vector.multi_reduction <add>, %434, %cst_340 [1] : vector<8x32xf32> to vector<8xf32>
    %436 = vector.shape_cast %435 : vector<8xf32> to vector<8x1xf32>
    %cst_341 = arith.constant 3.200000e+01 : f32
    %437 = vector.broadcast %cst_341 : f32 to vector<8x1xf32>
    %438 = arith.divf %436, %437 : vector<8x1xf32>
    %439 = vector.broadcast %431 : vector<8x1xf32> to vector<8x32xf32>
    %440 = arith.subf %423, %439 : vector<8x32xf32>
    %cst_342 = arith.constant 9.99999996E-13 : f32
    %441 = vector.broadcast %cst_342 : f32 to vector<8x1xf32>
    %442 = arith.addf %438, %441 : vector<8x1xf32>
    %443 = math.rsqrt %442 : vector<8x1xf32>
    %444 = vector.broadcast %443 : vector<8x1xf32> to vector<8x32xf32>
    %445 = arith.mulf %440, %444 : vector<8x32xf32>
    %446 = vector.broadcast %425 : vector<1x32xf32> to vector<8x32xf32>
    %447 = arith.mulf %445, %446 : vector<8x32xf32>
    %448 = vector.broadcast %427 : vector<1x32xf32> to vector<8x32xf32>
    %449 = arith.addf %447, %448 : vector<8x32xf32>
    %c1_343 = arith.constant 1 : index
    %c0_344 = arith.constant 0 : index
    %c0_345 = arith.constant 0 : index
    %450 = vector.load %arg5[%c1_343, %c0_344, %c0_345] : memref<2x32x64xf32, #tpu.memory_space<vmem>>, vector<1x32x64xf32>
    %451 = vector.shape_cast %450 : vector<1x32x64xf32> to vector<32x64xf32>
    %cst_346 = arith.constant dense<0.000000e+00> : vector<8x64xf32>
    %452 = tpu.matmul %449, %451, %cst_346 {dimension_numbers = #tpu.dot_dimension_numbers<[1], [0], [0], [1], [0, 0, 1, 1], [], []>} : vector<8x32xf32>, vector<32x64xf32>, vector<8x64xf32> -> vector<8x64xf32>
    %c1_347 = arith.constant 1 : index
    %c3_348 = arith.constant 3 : index
    %c0_349 = arith.constant 0 : index
    %453 = vector.load %arg7[%c1_347, %c3_348, %c0_349] : memref<2x19x64xf32, #tpu.memory_space<vmem>>, vector<1x1x64xf32>
    %454 = vector.shape_cast %453 : vector<1x1x64xf32> to vector<1x64xf32>
    %455 = vector.broadcast %454 : vector<1x64xf32> to vector<8x64xf32>
    %456 = arith.addf %452, %455 : vector<8x64xf32>
    %cst_350 = arith.constant 5.000000e-01 : f32
    %457 = vector.broadcast %cst_350 : f32 to vector<8x64xf32>
    %458 = arith.mulf %457, %456 : vector<8x64xf32>
    %cst_351 = arith.constant 0.707106769 : f32
    %459 = vector.broadcast %cst_351 : f32 to vector<8x64xf32>
    %460 = arith.mulf %456, %459 : vector<8x64xf32>
    %cst_352 = arith.constant 0.000000e+00 : f32
    %461 = vector.broadcast %cst_352 : f32 to vector<8x64xf32>
    %462 = arith.cmpf oge, %460, %461 : vector<8x64xf32>
    %cst_353 = arith.constant 1.000000e+00 : f32
    %cst_354 = arith.constant -1.000000e+00 : f32
    %463 = vector.broadcast %cst_353 : f32 to vector<8x64xf32>
    %464 = vector.broadcast %cst_354 : f32 to vector<8x64xf32>
    %465 = arith.select %462, %463, %464 : vector<8x64xi1>, vector<8x64xf32>
    %466 = math.absf %460 : vector<8x64xf32>
    %cst_355 = arith.constant 0.327591091 : f32
    %467 = vector.broadcast %cst_355 : f32 to vector<8x64xf32>
    %468 = arith.mulf %467, %466 : vector<8x64xf32>
    %cst_356 = arith.constant 1.000000e+00 : f32
    %469 = vector.broadcast %cst_356 : f32 to vector<8x64xf32>
    %470 = arith.addf %469, %468 : vector<8x64xf32>
    %cst_357 = arith.constant 1.000000e+00 : f32
    %471 = vector.broadcast %cst_357 : f32 to vector<8x64xf32>
    %472 = arith.divf %471, %470 : vector<8x64xf32>
    %cst_358 = arith.constant 1.06140542 : f32
    %473 = vector.broadcast %cst_358 : f32 to vector<8x64xf32>
    %474 = arith.mulf %473, %472 : vector<8x64xf32>
    %cst_359 = arith.constant -1.45315206 : f32
    %475 = vector.broadcast %cst_359 : f32 to vector<8x64xf32>
    %476 = arith.addf %474, %475 : vector<8x64xf32>
    %477 = arith.mulf %476, %472 : vector<8x64xf32>
    %cst_360 = arith.constant 1.42141378 : f32
    %478 = vector.broadcast %cst_360 : f32 to vector<8x64xf32>
    %479 = arith.addf %477, %478 : vector<8x64xf32>
    %480 = arith.mulf %479, %472 : vector<8x64xf32>
    %cst_361 = arith.constant -0.284496725 : f32
    %481 = vector.broadcast %cst_361 : f32 to vector<8x64xf32>
    %482 = arith.addf %480, %481 : vector<8x64xf32>
    %483 = arith.mulf %482, %472 : vector<8x64xf32>
    %cst_362 = arith.constant 0.254829586 : f32
    %484 = vector.broadcast %cst_362 : f32 to vector<8x64xf32>
    %485 = arith.addf %483, %484 : vector<8x64xf32>
    %486 = arith.mulf %485, %472 : vector<8x64xf32>
    %cst_363 = arith.constant 0.000000e+00 : f32
    %487 = vector.broadcast %cst_363 : f32 to vector<8x64xf32>
    %488 = arith.subf %487, %466 : vector<8x64xf32>
    %489 = arith.mulf %488, %466 : vector<8x64xf32>
    %490 = math.exp %489 : vector<8x64xf32>
    %491 = arith.mulf %486, %490 : vector<8x64xf32>
    %cst_364 = arith.constant 1.000000e+00 : f32
    %492 = vector.broadcast %cst_364 : f32 to vector<8x64xf32>
    %493 = arith.subf %492, %491 : vector<8x64xf32>
    %494 = arith.mulf %465, %493 : vector<8x64xf32>
    %cst_365 = arith.constant 1.000000e+00 : f32
    %495 = vector.broadcast %cst_365 : f32 to vector<8x64xf32>
    %496 = arith.addf %495, %494 : vector<8x64xf32>
    %497 = arith.mulf %458, %496 : vector<8x64xf32>
    %c1_366 = arith.constant 1 : index
    %c0_367 = arith.constant 0 : index
    %c0_368 = arith.constant 0 : index
    %498 = vector.load %arg6[%c1_366, %c0_367, %c0_368] : memref<2x64x32xf32, #tpu.memory_space<vmem>>, vector<1x64x32xf32>
    %499 = vector.shape_cast %498 : vector<1x64x32xf32> to vector<64x32xf32>
    %cst_369 = arith.constant dense<0.000000e+00> : vector<8x32xf32>
    %500 = tpu.matmul %497, %499, %cst_369 {dimension_numbers = #tpu.dot_dimension_numbers<[1], [0], [0], [1], [0, 0, 1, 1], [], []>} : vector<8x64xf32>, vector<64x32xf32>, vector<8x32xf32> -> vector<8x32xf32>
    %c1_370 = arith.constant 1 : index
    %c4_371 = arith.constant 4 : index
    %c0_372 = arith.constant 0 : index
    %501 = vector.load %arg7[%c1_370, %c4_371, %c0_372] : memref<2x19x64xf32, #tpu.memory_space<vmem>>, vector<1x1x32xf32>
    %502 = vector.shape_cast %501 : vector<1x1x32xf32> to vector<1x32xf32>
    %503 = vector.broadcast %502 : vector<1x32xf32> to vector<8x32xf32>
    %504 = arith.addf %500, %503 : vector<8x32xf32>
    %505 = arith.addf %504, %449 : vector<8x32xf32>
    %c1_373 = arith.constant 1 : index
    %c5_374 = arith.constant 5 : index
    %c0_375 = arith.constant 0 : index
    %506 = vector.load %arg7[%c1_373, %c5_374, %c0_375] : memref<2x19x64xf32, #tpu.memory_space<vmem>>, vector<1x1x32xf32>
    %507 = vector.shape_cast %506 : vector<1x1x32xf32> to vector<1x32xf32>
    %c1_376 = arith.constant 1 : index
    %c6_377 = arith.constant 6 : index
    %c0_378 = arith.constant 0 : index
    %508 = vector.load %arg7[%c1_376, %c6_377, %c0_378] : memref<2x19x64xf32, #tpu.memory_space<vmem>>, vector<1x1x32xf32>
    %509 = vector.shape_cast %508 : vector<1x1x32xf32> to vector<1x32xf32>
    %cst_379 = arith.constant dense<0.000000e+00> : vector<8xf32>
    %510 = vector.multi_reduction <add>, %505, %cst_379 [1] : vector<8x32xf32> to vector<8xf32>
    %511 = vector.shape_cast %510 : vector<8xf32> to vector<8x1xf32>
    %cst_380 = arith.constant 3.200000e+01 : f32
    %512 = vector.broadcast %cst_380 : f32 to vector<8x1xf32>
    %513 = arith.divf %511, %512 : vector<8x1xf32>
    %514 = vector.broadcast %513 : vector<8x1xf32> to vector<8x32xf32>
    %515 = arith.subf %505, %514 : vector<8x32xf32>
    %516 = arith.mulf %515, %515 : vector<8x32xf32>
    %cst_381 = arith.constant dense<0.000000e+00> : vector<8xf32>
    %517 = vector.multi_reduction <add>, %516, %cst_381 [1] : vector<8x32xf32> to vector<8xf32>
    %518 = vector.shape_cast %517 : vector<8xf32> to vector<8x1xf32>
    %cst_382 = arith.constant 3.200000e+01 : f32
    %519 = vector.broadcast %cst_382 : f32 to vector<8x1xf32>
    %520 = arith.divf %518, %519 : vector<8x1xf32>
    %521 = vector.broadcast %513 : vector<8x1xf32> to vector<8x32xf32>
    %522 = arith.subf %505, %521 : vector<8x32xf32>
    %cst_383 = arith.constant 9.99999996E-13 : f32
    %523 = vector.broadcast %cst_383 : f32 to vector<8x1xf32>
    %524 = arith.addf %520, %523 : vector<8x1xf32>
    %525 = math.rsqrt %524 : vector<8x1xf32>
    %526 = vector.broadcast %525 : vector<8x1xf32> to vector<8x32xf32>
    %527 = arith.mulf %522, %526 : vector<8x32xf32>
    %528 = vector.broadcast %507 : vector<1x32xf32> to vector<8x32xf32>
    %529 = arith.mulf %527, %528 : vector<8x32xf32>
    %530 = vector.broadcast %509 : vector<1x32xf32> to vector<8x32xf32>
    %531 = arith.addf %529, %530 : vector<8x32xf32>
    %532 = vector.extract_strided_slice %531 {offsets = [0, 0], sizes = [1, 32], strides = [1, 1]} : vector<8x32xf32> to vector<1x32xf32>
    %c0_384 = arith.constant 0 : index
    %c0_385 = arith.constant 0 : index
    %c0_386 = arith.constant 0 : index
    %533 = vector.load %arg8[%c0_384, %c0_385, %c0_386] : memref<1x1x32xf32, #tpu.memory_space<vmem>>, vector<1x1x32xf32>
    %534 = vector.shape_cast %533 : vector<1x1x32xf32> to vector<1x32xf32>
    %535 = vector.shape_cast %532 : vector<1x32xf32> to vector<1x1x32xf32>
    tpu.vector_store %arg8[%c0_384, %c0_385, %c0_386], %535 {strides = array<i32>} : memref<1x1x32xf32, #tpu.memory_space<vmem>>, vector<1x1x32xf32>,
    return
  }
  func.func @transform_0(%arg0: i32) -> (i32, i32, i32) {
    %c0_i32 = arith.constant 0 : i32
    %c0_i32_0 = arith.constant 0 : i32
    %c0_i32_1 = arith.constant 0 : i32
    return %arg0, %c0_i32, %c0_i32_0 : i32, i32, i32
  }
  func.func @transform_1(%arg0: i32) -> (i32, i32, i32) {
    %c0_i32 = arith.constant 0 : i32
    %c0_i32_0 = arith.constant 0 : i32
    %c0_i32_1 = arith.constant 0 : i32
    return %arg0, %c0_i32, %c0_i32_0 : i32, i32, i32
  }
  func.func @transform_2(%arg0: i32) -> (i32, i32, i32, i32, i32) {
    %c0_i32 = arith.constant 0 : i32
    %c0_i32_0 = arith.constant 0 : i32
    %c0_i32_1 = arith.constant 0 : i32
    %c0_i32_2 = arith.constant 0 : i32
    %c0_i32_3 = arith.constant 0 : i32
    %c0_i32_4 = arith.constant 0 : i32
    return %c0_i32, %c0_i32_0, %c0_i32_1, %c0_i32_2, %c0_i32_3 : i32, i32, i32, i32, i32
  }
  func.func @transform_3(%arg0: i32) -> (i32, i32, i32, i32) {
    %c0_i32 = arith.constant 0 : i32
    %c0_i32_0 = arith.constant 0 : i32
    %c0_i32_1 = arith.constant 0 : i32
    %c0_i32_2 = arith.constant 0 : i32
    %c0_i32_3 = arith.constant 0 : i32
    return %c0_i32, %c0_i32_0, %c0_i32_1, %c0_i32_2 : i32, i32, i32, i32
  }
  func.func @transform_4(%arg0: i32) -> (i32, i32, i32) {
    %c0_i32 = arith.constant 0 : i32
    %c0_i32_0 = arith.constant 0 : i32
    %c0_i32_1 = arith.constant 0 : i32
    %c0_i32_2 = arith.constant 0 : i32
    return %c0_i32, %c0_i32_0, %c0_i32_1 : i32, i32, i32
  }
  func.func @transform_5(%arg0: i32) -> (i32, i32, i32) {
    %c0_i32 = arith.constant 0 : i32
    %c0_i32_0 = arith.constant 0 : i32
    %c0_i32_1 = arith.constant 0 : i32
    %c0_i32_2 = arith.constant 0 : i32
    return %c0_i32, %c0_i32_0, %c0_i32_1 : i32, i32, i32
  }
  func.func @transform_6(%arg0: i32) -> (i32, i32, i32) {
    %c0_i32 = arith.constant 0 : i32
    %c0_i32_0 = arith.constant 0 : i32
    %c0_i32_1 = arith.constant 0 : i32
    %c0_i32_2 = arith.constant 0 : i32
    return %c0_i32, %c0_i32_0, %c0_i32_1 : i32, i32, i32
  }
  func.func @transform_7(%arg0: i32) -> (i32, i32, i32) {
    %c0_i32 = arith.constant 0 : i32
    %c0_i32_0 = arith.constant 0 : i32
    %c0_i32_1 = arith.constant 0 : i32
    return %arg0, %c0_i32, %c0_i32_0 : i32, i32, i32
  }
}

</mosaic_0001>

<llo_original>
// kernel: tpu_custom_call.1
$region0: #{tpu_custom_call.1}
  #allocation0 [shape = 'u32[]', space=smem, size = 0x4, offset = 0x4, fixed_abs, tag = 'smem constant byte address 0x4 - core index']
  #allocation1 [shape = 'u32[144,128]{1,0:T(1,128)}', space=vmem, size = 0x12000, scoped, tag = 'internal scratch']
  %s0 = inlined_call_operand.vmem [shape: f32[2,8,32], index: 0, kind: input, shape index: {}]
  %s1 = inlined_call_operand.vmem [shape: f32[2,1,8], index: 1, kind: input, shape index: {}]
  %s2 = inlined_call_operand.vmem [shape: f32[2,3,4,32,8], index: 2, kind: input, shape index: {}]
  %s3 = inlined_call_operand.vmem [shape: f32[2,4,8,32], index: 3, kind: input, shape index: {}]
  %s4 = inlined_call_operand.vmem [shape: f32[2,32,64], index: 4, kind: input, shape index: {}]
  %s5 = inlined_call_operand.vmem [shape: f32[2,64,32], index: 5, kind: input, shape index: {}]
  %s6 = inlined_call_operand.vmem [shape: f32[2,19,64], index: 6, kind: input, shape index: {}]
  %s7 = inlined_call_operand.hbm [shape: f32[2,1,32], index: 7, kind: output, shape index: {}]
  %s8 = sld [smem:[#allocation0]]
  $region61: #{tpu_custom_call.1} parent=0
    _
  %s10 = ssub.s32 1, %s8
  %s11 = scalar_select 0, %s10, %s8
  $region1: #{tpu_custom_call.1} parent=0
    #allocation2 [shape = 'u8[1024]{0}', space=vmem, size = 0x400, scoped, tag = 'output window, operand 0']
    #allocation3 [shape = 's32[2]{0}', space=sflag, size = 0x8, scoped, tag = 'scoped memory for tpu_custom_call.1']
    %12 = vsyncpa [#allocation3], 0
    %s13 = scalar_lea.sflag [#allocation3], 1
    %14 = vsyncpa %s13, 0
    loop: start=0, step=1, limit=4
    $region2: #{tpu_custom_call.1} parent=1 // loop_pre_header
      _
    $region3: #{tpu_custom_call.1} parent=1 // loop_header
      %s16 = sphi 0, %s20
      %p17 = scmp.ge.s32.totalorder %s16, 4
      %s26 = sphi 0, %s28
      %s29 = sphi 0, %s26
      %s30 = sphi 0, %s29
      %s46 = sphi 0, %s30
      %s52 = sphi 0, %s54
      %s55 = sphi 0, %s52
      %s56 = sphi 0, %s55
      %s72 = sphi 0, %s56
      %s76 = sphi 0, %s76
      %s78 = sphi 0, %s76
      %s79 = sphi 0, %s78
      %s93 = sphi 0, %s79
      %s97 = sphi 0, %s97
      %s99 = sphi 0, %s97
      %s100 = sphi 0, %s99
      %s114 = sphi 0, %s100
      %s118 = sphi 0, %s118
      %s120 = sphi 0, %s118
      %s121 = sphi 0, %s120
      %s135 = sphi 0, %s121
      %s139 = sphi 0, %s139
      %s141 = sphi 0, %s139
      %s142 = sphi 0, %s141
      %s156 = sphi 0, %s142
      %s160 = sphi 0, %s160
      %s162 = sphi 0, %s160
      %s163 = sphi 0, %s162
      %s177 = sphi 0, %s163
      %s183 = sphi 0, %s185
      %s186 = sphi 0, %s183
      %s187 = sphi 0, %s186
      %s203 = sphi 0, %s187
    $region4: #{tpu_custom_call.1} parent=1 // loop_header_branch
      %19 = sbr.rel (%p17) target = $region8
    $region5: #{tpu_custom_call.1} parent=1 // loop_body
      %s21 = ssub.s32 %s16, 1
      %s22 = ssub.s32 %s16, 2
      %s23 = sadd.s32 %s16, 1
      %s24 = ssub.s32 %s16, %s23
      %p25 = scmp.eq.s32.totalorder %s24, 0
      %s27 = sadd.s32 %s26, 1
      %s28 = scalar_select %p25, %s26, %s27
      %p31 = pneg %p25
      %p32 = scmp.eq.s32.totalorder %s16, 1
      %p33 = por %p31, %p32
      %p34 = scmp.ne.s32.totalorder %s26, %s29
      %p35 = scmp.eq.s32.totalorder %s16, 0
      %p36 = por %p34, %p35
      %p37 = scmp.ne.s32.totalorder %s26, %s29
      %p38 = scmp.eq.s32.totalorder %s21, 1
      %p39 = por %p37, %p38
      %p40 = scmp.ne.s32.totalorder %s29, %s30
      %p41 = scmp.eq.s32.totalorder %s21, 0
      %p42 = por %p40, %p41
      %p43 = scmp.ne.s32.totalorder %s29, %s30
      %p44 = scmp.eq.s32.totalorder %s22, 1
      %p45 = por %p43, %p44
      %p47 = scmp.ne.s32.totalorder %s30, %s46
      %p48 = scmp.eq.s32.totalorder %s22, 0
      %p49 = por %p47, %p48
      %s50 = ssub.s32 %s16, %s23
      %p51 = scmp.eq.s32.totalorder %s50, 0
      %s53 = sadd.s32 %s52, 1
      %s54 = scalar_select %p51, %s52, %s53
      %p57 = pneg %p51
      %p58 = scmp.eq.s32.totalorder %s16, 1
      %p59 = por %p57, %p58
      %p60 = scmp.ne.s32.totalorder %s52, %s55
      %p61 = scmp.eq.s32.totalorder %s16, 0
      %p62 = por %p60, %p61
      %p63 = scmp.ne.s32.totalorder %s52, %s55
      %p64 = scmp.eq.s32.totalorder %s21, 1
      %p65 = por %p63, %p64
      %p66 = scmp.ne.s32.totalorder %s55, %s56
      %p67 = scmp.eq.s32.totalorder %s21, 0
      %p68 = por %p66, %p67
      %p69 = scmp.ne.s32.totalorder %s55, %s56
      %p70 = scmp.eq.s32.totalorder %s22, 1
      %p71 = por %p69, %p70
      %p73 = scmp.ne.s32.totalorder %s56, %s72
      %p74 = scmp.eq.s32.totalorder %s22, 0
      %p75 = por %p73, %p74
      %s77 = sadd.s32 %s76, 1
      %p80 = scmp.eq.s32.totalorder %s16, 1
      %p81 = scmp.ne.s32.totalorder %s76, %s78
      %p82 = scmp.eq.s32.totalorder %s16, 0
      %p83 = por %p81, %p82
      %p84 = scmp.ne.s32.totalorder %s76, %s78
      %p85 = scmp.eq.s32.totalorder %s21, 1
      %p86 = por %p84, %p85
      %p87 = scmp.ne.s32.totalorder %s78, %s79
      %p88 = scmp.eq.s32.totalorder %s21, 0
      %p89 = por %p87, %p88
      %p90 = scmp.ne.s32.totalorder %s78, %s79
      %p91 = scmp.eq.s32.totalorder %s22, 1
      %p92 = por %p90, %p91
      %p94 = scmp.ne.s32.totalorder %s79, %s93
      %p95 = scmp.eq.s32.totalorder %s22, 0
      %p96 = por %p94, %p95
      %s98 = sadd.s32 %s97, 1
      %p101 = scmp.eq.s32.totalorder %s16, 1
      %p102 = scmp.ne.s32.totalorder %s97, %s99
      %p103 = scmp.eq.s32.totalorder %s16, 0
      %p104 = por %p102, %p103
      %p105 = scmp.ne.s32.totalorder %s97, %s99
      %p106 = scmp.eq.s32.totalorder %s21, 1
      %p107 = por %p105, %p106
      %p108 = scmp.ne.s32.totalorder %s99, %s100
      %p109 = scmp.eq.s32.totalorder %s21, 0
      %p110 = por %p108, %p109
      %p111 = scmp.ne.s32.totalorder %s99, %s100
      %p112 = scmp.eq.s32.totalorder %s22, 1
      %p113 = por %p111, %p112
      %p115 = scmp.ne.s32.totalorder %s100, %s114
      %p116 = scmp.eq.s32.totalorder %s22, 0
      %p117 = por %p115, %p116
      %s119 = sadd.s32 %s118, 1
      %p122 = scmp.eq.s32.totalorder %s16, 1
      %p123 = scmp.ne.s32.totalorder %s118, %s120
      %p124 = scmp.eq.s32.totalorder %s16, 0
      %p125 = por %p123, %p124
      %p126 = scmp.ne.s32.totalorder %s118, %s120
      %p127 = scmp.eq.s32.totalorder %s21, 1
      %p128 = por %p126, %p127
      %p129 = scmp.ne.s32.totalorder %s120, %s121
      %p130 = scmp.eq.s32.totalorder %s21, 0
      %p131 = por %p129, %p130
      %p132 = scmp.ne.s32.totalorder %s120, %s121
      %p133 = scmp.eq.s32.totalorder %s22, 1
      %p134 = por %p132, %p133
      %p136 = scmp.ne.s32.totalorder %s121, %s135
      %p137 = scmp.eq.s32.totalorder %s22, 0
      %p138 = por %p136, %p137
      %s140 = sadd.s32 %s139, 1
      %p143 = scmp.eq.s32.totalorder %s16, 1
      %p144 = scmp.ne.s32.totalorder %s139, %s141
      %p145 = scmp.eq.s32.totalorder %s16, 0
      %p146 = por %p144, %p145
      %p147 = scmp.ne.s32.totalorder %s139, %s141
      %p148 = scmp.eq.s32.totalorder %s21, 1
      %p149 = por %p147, %p148
      %p150 = scmp.ne.s32.totalorder %s141, %s142
      %p151 = scmp.eq.s32.totalorder %s21, 0
      %p152 = por %p150, %p151
      %p153 = scmp.ne.s32.totalorder %s141, %s142
      %p154 = scmp.eq.s32.totalorder %s22, 1
      %p155 = por %p153, %p154
      %p157 = scmp.ne.s32.totalorder %s142, %s156
      %p158 = scmp.eq.s32.totalorder %s22, 0
      %p159 = por %p157, %p158
      %s161 = sadd.s32 %s160, 1
      %p164 = scmp.eq.s32.totalorder %s16, 1
      %p165 = scmp.ne.s32.totalorder %s160, %s162
      %p166 = scmp.eq.s32.totalorder %s16, 0
      %p167 = por %p165, %p166
      %p168 = scmp.ne.s32.totalorder %s160, %s162
      %p169 = scmp.eq.s32.totalorder %s21, 1
      %p170 = por %p168, %p169
      %p171 = scmp.ne.s32.totalorder %s162, %s163
      %p172 = scmp.eq.s32.totalorder %s21, 0
      %p173 = por %p171, %p172
      %p174 = scmp.ne.s32.totalorder %s162, %s163
      %p175 = scmp.eq.s32.totalorder %s22, 1
      %p176 = por %p174, %p175
      %p178 = scmp.ne.s32.totalorder %s163, %s177
      %p179 = scmp.eq.s32.totalorder %s22, 0
      %p180 = por %p178, %p179
      %s181 = ssub.s32 %s16, %s23
      %p182 = scmp.eq.s32.totalorder %s181, 0
      %s184 = sadd.s32 %s183, 1
      %s185 = scalar_select %p182, %s183, %s184
      %p188 = pneg %p182
      %p189 = scmp.eq.s32.totalorder %s16, 1
      %p190 = por %p188, %p189
      %p191 = scmp.ne.s32.totalorder %s183, %s186
      %p192 = scmp.eq.s32.totalorder %s16, 0
      %p193 = por %p191, %p192
      %p194 = scmp.ne.s32.totalorder %s183, %s186
      %p195 = scmp.eq.s32.totalorder %s21, 1
      %p196 = por %p194, %p195
      %p197 = scmp.ne.s32.totalorder %s186, %s187
      %p198 = scmp.eq.s32.totalorder %s21, 0
      %p199 = por %p197, %p198
      %p200 = scmp.ne.s32.totalorder %s186, %s187
      %p201 = scmp.eq.s32.totalorder %s22, 1
      %p202 = por %p200, %p201
      %p204 = scmp.ne.s32.totalorder %s187, %s203
      %p205 = scmp.eq.s32.totalorder %s22, 0
      %p206 = por %p204, %p205
      %p207 = scmp.le.s32.totalorder 1, %s16
      %p208 = scmp.lt.s32.totalorder %s16, 3
      %p209 = pnand %p207, %p208
      %p210 = pneg %p209
      // Predicated region
      $region9: #{tpu_custom_call.1} parent=5 // pred_check
        _
      $region10: #{tpu_custom_call.1} parent=5 // pred_check_branch
        %212 = sbr.rel (%p209) target = $region12
      $region11: #{tpu_custom_call.1} parent=5 // pred_region
        %s213 = ssub.s32 %s16, 1
        // Predicated region
        $region13: #{tpu_custom_call.1} parent=11 // pred_check
          %p214 = pneg %p89
        $region14: #{tpu_custom_call.1} parent=11 // pred_check_branch
          %216 = sbr.rel (%p214) target = $region16
        $region15: #{tpu_custom_call.1} parent=11 // pred_region
          _
        $region16: #{tpu_custom_call.1} parent=11 // pred_fallthru
          _
        // Predicated region
        $region17: #{tpu_custom_call.1} parent=11 // pred_check
          %p217 = pneg %p110
        $region18: #{tpu_custom_call.1} parent=11 // pred_check_branch
          %219 = sbr.rel (%p217) target = $region20
        $region19: #{tpu_custom_call.1} parent=11 // pred_region
          _
        $region20: #{tpu_custom_call.1} parent=11 // pred_fallthru
          _
        // Predicated region
        $region21: #{tpu_custom_call.1} parent=11 // pred_check
          %p220 = pneg %p131
        $region22: #{tpu_custom_call.1} parent=11 // pred_check_branch
          %222 = sbr.rel (%p220) target = $region24
        $region23: #{tpu_custom_call.1} parent=11 // pred_region
          _
        $region24: #{tpu_custom_call.1} parent=11 // pred_fallthru
          _
        // Predicated region
        $region25: #{tpu_custom_call.1} parent=11 // pred_check
          %p223 = pneg %p152
        $region26: #{tpu_custom_call.1} parent=11 // pred_check_branch
          %225 = sbr.rel (%p223) target = $region28
        $region27: #{tpu_custom_call.1} parent=11 // pred_region
          _
        $region28: #{tpu_custom_call.1} parent=11 // pred_fallthru
          _
        // Predicated region
        $region29: #{tpu_custom_call.1} parent=11 // pred_check
          %p226 = pneg %p173
        $region30: #{tpu_custom_call.1} parent=11 // pred_check_branch
          %228 = sbr.rel (%p226) target = $region32
        $region31: #{tpu_custom_call.1} parent=11 // pred_region
          _
        $region32: #{tpu_custom_call.1} parent=11 // pred_fallthru
          _
      $region12: #{tpu_custom_call.1} parent=5 // pred_fallthru
        _
      %p229 = scmp.lt.s32.totalorder %s16, 2
      // Predicated region
      $region33: #{tpu_custom_call.1} parent=5 // pred_check
        %p230 = pneg %p229
      $region34: #{tpu_custom_call.1} parent=5 // pred_check_branch
        %232 = sbr.rel (%p230) target = $region36
      $region35: #{tpu_custom_call.1} parent=5 // pred_region
        // Predicated region
        $region37: #{tpu_custom_call.1} parent=35 // pred_check
          %p233 = pneg %p36
        $region38: #{tpu_custom_call.1} parent=35 // pred_check_branch
          %235 = sbr.rel (%p233) target = $region40
        $region39: #{tpu_custom_call.1} parent=35 // pred_region
          %p236 = scmp.lt.s32.totalorder %s16, 1
          %s237 = scalar_select %p236, %s16, 1
          %s238 = smul.addr %s237, 8
          %s239 = scalar_lea.vmem %s0, %s238
        $region40: #{tpu_custom_call.1} parent=35 // pred_fallthru
          _
        // Predicated region
        $region41: #{tpu_custom_call.1} parent=35 // pred_check
          %p240 = pneg %p62
        $region42: #{tpu_custom_call.1} parent=35 // pred_check_branch
          %242 = sbr.rel (%p240) target = $region44
        $region43: #{tpu_custom_call.1} parent=35 // pred_region
          %p243 = scmp.lt.s32.totalorder %s16, 1
          %s244 = scalar_select %p243, %s16, 1
          %s245 = scalar_lea.vmem %s1, %s244
        $region44: #{tpu_custom_call.1} parent=35 // pred_fallthru
          _
      $region36: #{tpu_custom_call.1} parent=5 // pred_fallthru
        _
      %p246 = scmp.le.s32.totalorder 1, %s16
      %p247 = scmp.lt.s32.totalorder %s16, 3
      %p248 = pnand %p246, %p247
      %p249 = pneg %p248
      // Predicated region
      $region45: #{tpu_custom_call.1} parent=5 // pred_check
        _
      $region46: #{tpu_custom_call.1} parent=5 // pred_check_branch
        %251 = sbr.rel (%p248) target = $region48
      $region47: #{tpu_custom_call.1} parent=5 // pred_region
        %s252 = ssub.s32 %s16, 1
        %p253 = scmp.lt.s32.totalorder %s21, 1
        %s254 = scalar_select %p253, %s21, 1
        %s255 = smul.addr %s254, 8
        %s256 = scalar_lea.vmem %s0, %s255
        %p257 = pneg %p42
        %p258 = pneg %p39
        %p259 = scmp.lt.s32.totalorder %s21, 1
        %s260 = scalar_select %p259, %s21, 1
        %s261 = scalar_lea.vmem %s1, %s260
        %p262 = pneg %p68
        %p263 = pneg %p65
        %p264 = pneg %p89
        %p265 = pneg %p86
        %p266 = pneg %p110
        %p267 = pneg %p107
        %p268 = pneg %p131
        %p269 = pneg %p128
        %p270 = pneg %p152
        %p271 = pneg %p149
        %p272 = pneg %p173
        %p273 = pneg %p170
        %p274 = pneg %p199
        %p275 = pneg %p196
        %s276 = sand.u32 %s186, 1
        %s277 = scalar_lea.sflag [#allocation3], %s276
        %s278 = sand.u32 %s186, 1
        %s279 = scalar_lea.vmem [#allocation2], %s278
        %p280 = scmp.lt.s32.totalorder %s21, 1
        %s281 = scalar_select %p280, %s21, 1
        %s282 = smul.addr %s281, 8
        %s283 = scalar_lea.vmem %s0, %s282
        %p284 = scmp.lt.s32.totalorder %s21, 1
        %s285 = scalar_select %p284, %s21, 1
        %s286 = scalar_lea.vmem %s1, %s285
        %v287 = vld [vmem:[%s283] sm:$0xff]
        %v288 = vld [vmem:[%s286] sm:$0x1]
        %v289 = vld [vmem:[%s2] sm:$0xff]
        %v290 = vld [vmem:[%s2 + $0x8] sm:$0xff]
        %v291 = vld [vmem:[%s2 + $0x10] sm:$0xff]
        %v292 = vld [vmem:[%s2 + $0x18] sm:$0xff]
        %v293 = vld [vmem:[%s6 + $0x7] sm:$0x1]
        %v294 = vlaneseq
        %v295 = vshrl.u32 %v294, 7
        %v296 = vsub.s32 0, %v295
        %v297 = vrot.slane %v293, %v296
        %vm298 = vcmask 261120
        %v300 = vsel %vm298, %v287, 0
        %302 = vmatprep.subr.mxu0 0.0
        %303 = vmatpush1.msra.mxu0 0.0
        %304 = vmatprep.subr.mxu0 0.0
        %305 = vmatpush1.msra.mxu0 0.0
        %306 = vmatprep.subr.mxu0 0.0
        %307 = vmatpush1.msra.mxu0 0.0
        %308 = vmatprep.subr.mxu0 0.0
        %309 = vmatpush1.msra.mxu0 0.0
        %310 = vmatprep.subr.mxu0 0.0
        %311 = vmatpush1.msra.mxu0 0.0
        %312 = vmatprep.subr.mxu0 0.0
        %313 = vmatpush1.msra.mxu0 0.0
        %314 = vmatprep.subr.mxu0 0.0
        %315 = vmatpush1.msra.mxu0 0.0
        %316 = vmatprep.subr.mxu0 0.0
        %317 = vmatpush1.msra.mxu0 0.0
        %318 = vmatprep.subr.mxu0 0.0
        %319 = vmatpush1.msra.mxu0 0.0
        %320 = vmatprep.subr.mxu0 0.0
        %321 = vmatpush1.msra.mxu0 0.0
        %322 = vmatprep.subr.mxu0 0.0
        %323 = vmatpush1.msra.mxu0 0.0
        %324 = vmatprep.subr.mxu0 0.0
        %325 = vmatpush1.msra.mxu0 0.0
        %326 = vmatprep.subr.mxu0 0.0
        %327 = vmatpush1.msra.mxu0 %v292
        %328 = vmatprep.subr.mxu0 0.0
        %329 = vmatpush1.msra.mxu0 %v291
        %330 = vmatprep.subr.mxu0 0.0
        %331 = vmatpush1.msra.mxu0 %v290
        %332 = vmatprep.subr.mxu0 0.0
        %333 = vmatpush1.msra.mxu0 %v289
        %334 = vmatprep.subr.mxu0 0.0
        %335 = vmatpush2.msra.mxu0 0.0
        %336 = vmatprep.subr.mxu0 0.0
        %337 = vmatpush2.msra.mxu0 0.0
        %338 = vmatprep.subr.mxu0 0.0
        %339 = vmatpush2.msra.mxu0 0.0
        %340 = vmatprep.subr.mxu0 0.0
        %341 = vmatpush2.msra.mxu0 0.0
        %342 = vmatprep.subr.mxu0 0.0
        %343 = vmatpush2.msra.mxu0 0.0
        %344 = vmatprep.subr.mxu0 0.0
        %345 = vmatpush2.msra.mxu0 0.0
        %346 = vmatprep.subr.mxu0 0.0
        %347 = vmatpush2.msra.mxu0 0.0
        %348 = vmatprep.subr.mxu0 0.0
        %349 = vmatpush2.msra.mxu0 0.0
        %350 = vmatprep.subr.mxu0 0.0
        %351 = vmatpush2.msra.mxu0 0.0
        %352 = vmatprep.subr.mxu0 0.0
        %353 = vmatpush2.msra.mxu0 0.0
        %354 = vmatprep.subr.mxu0 0.0
        %355 = vmatpush2.msra.mxu0 0.0
        %356 = vmatprep.subr.mxu0 0.0
        %357 = vmatpush2.msra.mxu0 0.0
        %358 = vmatprep.subr.mxu0 0.0
        %359 = vmatpush2.msra.mxu0 0.0
        %360 = vmatprep.subr.mxu0 0.0
        %361 = vmatpush2.msra.mxu0 0.0
        %362 = vmatprep.subr.mxu0 0.0
        %363 = vmatpush2.msra.mxu0 0.0
        %364 = vmatprep.subr.mxu0 0.0
        %365 = vmatpush2.msra.mxu0 0.0
        %366 = vmatprep.mubr.f32.mxu0 0.0
        %367 = vmatmul.mubr.f32.gmra.mxu0 %v300
        %v368 = vpop.f32.mrf.mxu0
        %v369 = vadd.f32 %v297, %v368
        %v370 = vpop.f32.mrf.mxu0
        %371 = vdwg.mxu0
        %s372 = scalar_lea.vmem %s2, 128
        %v373 = vld [vmem:[%s372] sm:$0xff]
        %v374 = vld [vmem:[%s372 + $0x8] sm:$0xff]
        %v375 = vld [vmem:[%s372 + $0x10] sm:$0xff]
        %v376 = vld [vmem:[%s372 + $0x18] sm:$0xff]
        %v377 = vld [vmem:[%s6 + $0xb] sm:$0x1]
        %v378 = vlaneseq
        %v379 = vshrl.u32 %v378, 7
        %v380 = vsub.s32 0, %v379
        %v381 = vrot.slane %v377, %v380
        %382 = vmatprep.subr.mxu0 0.0
        %383 = vmatpush1.msra.mxu0 0.0
        %384 = vmatprep.subr.mxu0 0.0
        %385 = vmatpush1.msra.mxu0 0.0
        %386 = vmatprep.subr.mxu0 0.0
        %387 = vmatpush1.msra.mxu0 0.0
        %388 = vmatprep.subr.mxu0 0.0
        %389 = vmatpush1.msra.mxu0 0.0
        %390 = vmatprep.subr.mxu0 0.0
        %391 = vmatpush1.msra.mxu0 0.0
        %392 = vmatprep.subr.mxu0 0.0
        %393 = vmatpush1.msra.mxu0 0.0
        %394 = vmatprep.subr.mxu0 0.0
        %395 = vmatpush1.msra.mxu0 0.0
        %396 = vmatprep.subr.mxu0 0.0
        %397 = vmatpush1.msra.mxu0 0.0
        %398 = vmatprep.subr.mxu0 0.0
        %399 = vmatpush1.msra.mxu0 0.0
        %400 = vmatprep.subr.mxu0 0.0
        %401 = vmatpush1.msra.mxu0 0.0
        %402 = vmatprep.subr.mxu0 0.0
        %403 = vmatpush1.msra.mxu0 0.0
        %404 = vmatprep.subr.mxu0 0.0
        %405 = vmatpush1.msra.mxu0 0.0
        %406 = vmatprep.subr.mxu0 0.0
        %407 = vmatpush1.msra.mxu0 %v376
        %408 = vmatprep.subr.mxu0 0.0
        %409 = vmatpush1.msra.mxu0 %v375
        %410 = vmatprep.subr.mxu0 0.0
        %411 = vmatpush1.msra.mxu0 %v374
        %412 = vmatprep.subr.mxu0 0.0
        %413 = vmatpush1.msra.mxu0 %v373
        %414 = vmatprep.subr.mxu0 0.0
        %415 = vmatpush2.msra.mxu0 0.0
        %416 = vmatprep.subr.mxu0 0.0
        %417 = vmatpush2.msra.mxu0 0.0
        %418 = vmatprep.subr.mxu0 0.0
        %419 = vmatpush2.msra.mxu0 0.0
        %420 = vmatprep.subr.mxu0 0.0
        %421 = vmatpush2.msra.mxu0 0.0
        %422 = vmatprep.subr.mxu0 0.0
        %423 = vmatpush2.msra.mxu0 0.0
        %424 = vmatprep.subr.mxu0 0.0
        %425 = vmatpush2.msra.mxu0 0.0
        %426 = vmatprep.subr.mxu0 0.0
        %427 = vmatpush2.msra.mxu0 0.0
        %428 = vmatprep.subr.mxu0 0.0
        %429 = vmatpush2.msra.mxu0 0.0
        %430 = vmatprep.subr.mxu0 0.0
        %431 = vmatpush2.msra.mxu0 0.0
        %432 = vmatprep.subr.mxu0 0.0
        %433 = vmatpush2.msra.mxu0 0.0
        %434 = vmatprep.subr.mxu0 0.0
        %435 = vmatpush2.msra.mxu0 0.0
        %436 = vmatprep.subr.mxu0 0.0
        %437 = vmatpush2.msra.mxu0 0.0
        %438 = vmatprep.subr.mxu0 0.0
        %439 = vmatpush2.msra.mxu0 0.0
        %440 = vmatprep.subr.mxu0 0.0
        %441 = vmatpush2.msra.mxu0 0.0
        %442 = vmatprep.subr.mxu0 0.0
        %443 = vmatpush2.msra.mxu0 0.0
        %444 = vmatprep.subr.mxu0 0.0
        %445 = vmatpush2.msra.mxu0 0.0
        %446 = vmatprep.mubr.f32.mxu0 0.0
        %447 = vmatmul.mubr.f32.gmra.mxu0 %v300
        %v448 = vpop.f32.mrf.mxu0
        %v449 = vadd.f32 %v381, %v448
        %v450 = vpop.f32.mrf.mxu0
        %451 = vdwg.mxu0
        %s452 = scalar_lea.vmem %s2, 256
        %v453 = vld [vmem:[%s452] sm:$0xff]
        %v454 = vld [vmem:[%s452 + $0x8] sm:$0xff]
        %v455 = vld [vmem:[%s452 + $0x10] sm:$0xff]
        %v456 = vld [vmem:[%s452 + $0x18] sm:$0xff]
        %v457 = vld [vmem:[%s6 + $0xf] sm:$0x1]
        %v458 = vlaneseq
        %v459 = vshrl.u32 %v458, 7
        %v460 = vsub.s32 0, %v459
        %v461 = vrot.slane %v457, %v460
        %462 = vmatprep.subr.mxu0 0.0
        %463 = vmatpush1.msra.mxu0 0.0
        %464 = vmatprep.subr.mxu0 0.0
        %465 = vmatpush1.msra.mxu0 0.0
        %466 = vmatprep.subr.mxu0 0.0
        %467 = vmatpush1.msra.mxu0 0.0
        %468 = vmatprep.subr.mxu0 0.0
        %469 = vmatpush1.msra.mxu0 0.0
        %470 = vmatprep.subr.mxu0 0.0
        %471 = vmatpush1.msra.mxu0 0.0
        %472 = vmatprep.subr.mxu0 0.0
        %473 = vmatpush1.msra.mxu0 0.0
        %474 = vmatprep.subr.mxu0 0.0
        %475 = vmatpush1.msra.mxu0 0.0
        %476 = vmatprep.subr.mxu0 0.0
        %477 = vmatpush1.msra.mxu0 0.0
        %478 = vmatprep.subr.mxu0 0.0
        %479 = vmatpush1.msra.mxu0 0.0
        %480 = vmatprep.subr.mxu0 0.0
        %481 = vmatpush1.msra.mxu0 0.0
        %482 = vmatprep.subr.mxu0 0.0
        %483 = vmatpush1.msra.mxu0 0.0
        %484 = vmatprep.subr.mxu0 0.0
        %485 = vmatpush1.msra.mxu0 0.0
        %486 = vmatprep.subr.mxu0 0.0
        %487 = vmatpush1.msra.mxu0 %v456
        %488 = vmatprep.subr.mxu0 0.0
        %489 = vmatpush1.msra.mxu0 %v455
        %490 = vmatprep.subr.mxu0 0.0
        %491 = vmatpush1.msra.mxu0 %v454
        %492 = vmatprep.subr.mxu0 0.0
        %493 = vmatpush1.msra.mxu0 %v453
        %494 = vmatprep.subr.mxu0 0.0
        %495 = vmatpush2.msra.mxu0 0.0
        %496 = vmatprep.subr.mxu0 0.0
        %497 = vmatpush2.msra.mxu0 0.0
        %498 = vmatprep.subr.mxu0 0.0
        %499 = vmatpush2.msra.mxu0 0.0
        %500 = vmatprep.subr.mxu0 0.0
        %501 = vmatpush2.msra.mxu0 0.0
        %502 = vmatprep.subr.mxu0 0.0
        %503 = vmatpush2.msra.mxu0 0.0
        %504 = vmatprep.subr.mxu0 0.0
        %505 = vmatpush2.msra.mxu0 0.0
        %506 = vmatprep.subr.mxu0 0.0
        %507 = vmatpush2.msra.mxu0 0.0
        %508 = vmatprep.subr.mxu0 0.0
        %509 = vmatpush2.msra.mxu0 0.0
        %510 = vmatprep.subr.mxu0 0.0
        %511 = vmatpush2.msra.mxu0 0.0
        %512 = vmatprep.subr.mxu0 0.0
        %513 = vmatpush2.msra.mxu0 0.0
        %514 = vmatprep.subr.mxu0 0.0
        %515 = vmatpush2.msra.mxu0 0.0
        %516 = vmatprep.subr.mxu0 0.0
        %517 = vmatpush2.msra.mxu0 0.0
        %518 = vmatprep.subr.mxu0 0.0
        %519 = vmatpush2.msra.mxu0 0.0
        %520 = vmatprep.subr.mxu0 0.0
        %521 = vmatpush2.msra.mxu0 0.0
        %522 = vmatprep.subr.mxu0 0.0
        %523 = vmatpush2.msra.mxu0 0.0
        %524 = vmatprep.subr.mxu0 0.0
        %525 = vmatpush2.msra.mxu0 0.0
        %526 = vmatprep.mubr.f32.mxu0 0.0
        %527 = vmatmul.mubr.f32.gmra.mxu0 %v300
        %v528 = vpop.f32.mrf.mxu0
        %v529 = vadd.f32 %v461, %v528
        %v530 = vpop.f32.mrf.mxu0
        %531 = vdwg.mxu0
        %v533 = vlaneseq
        %v534 = vshrl.u32 %v533, 7
        %v535 = vsub.s32 0, %v534
        %v536 = vrot.slane %v288, %v535
        %vm538 = vcmask 64512
        %v540 = vsel %vm538, %v369, 0
        %v543 = vsel %vm538, %v449, 0
        %545 = vmatprep.subr.mxu0 0.0
        %546 = vmatpush1.xpose.msra.mxu0 0.0
        %547 = vmatprep.subr.mxu0 0.0
        %548 = vmatpush1.xpose.msra.mxu0 0.0
        %549 = vmatprep.subr.mxu0 0.0
        %550 = vmatpush1.xpose.msra.mxu0 0.0
        %551 = vmatprep.subr.mxu0 0.0
        %552 = vmatpush1.xpose.msra.mxu0 0.0
        %553 = vmatprep.subr.mxu0 0.0
        %554 = vmatpush1.xpose.msra.mxu0 0.0
        %555 = vmatprep.subr.mxu0 0.0
        %556 = vmatpush1.xpose.msra.mxu0 0.0
        %557 = vmatprep.subr.mxu0 0.0
        %558 = vmatpush1.xpose.msra.mxu0 0.0
        %559 = vmatprep.subr.mxu0 0.0
        %560 = vmatpush1.xpose.msra.mxu0 0.0
        %561 = vmatprep.subr.mxu0 0.0
        %562 = vmatpush1.xpose.msra.mxu0 0.0
        %563 = vmatprep.subr.mxu0 0.0
        %564 = vmatpush1.xpose.msra.mxu0 0.0
        %565 = vmatprep.subr.mxu0 0.0
        %566 = vmatpush1.xpose.msra.mxu0 0.0
        %567 = vmatprep.subr.mxu0 0.0
        %568 = vmatpush1.xpose.msra.mxu0 0.0
        %569 = vmatprep.subr.mxu0 0.0
        %570 = vmatpush1.xpose.msra.mxu0 0.0
        %571 = vmatprep.subr.mxu0 0.0
        %572 = vmatpush1.xpose.msra.mxu0 0.0
        %573 = vmatprep.subr.mxu0 0.0
        %574 = vmatpush1.xpose.msra.mxu0 0.0
        %575 = vmatprep.subr.mxu0 0.0
        %576 = vmatpush1.xpose.msra.mxu0 %v543
        %577 = vmatprep.subr.mxu0 0.0
        %578 = vmatpush2.xpose.msra.mxu0 0.0
        %579 = vmatprep.subr.mxu0 0.0
        %580 = vmatpush2.xpose.msra.mxu0 0.0
        %581 = vmatprep.subr.mxu0 0.0
        %582 = vmatpush2.xpose.msra.mxu0 0.0
        %583 = vmatprep.subr.mxu0 0.0
        %584 = vmatpush2.xpose.msra.mxu0 0.0
        %585 = vmatprep.subr.mxu0 0.0
        %586 = vmatpush2.xpose.msra.mxu0 0.0
        %587 = vmatprep.subr.mxu0 0.0
        %588 = vmatpush2.xpose.msra.mxu0 0.0
        %589 = vmatprep.subr.mxu0 0.0
        %590 = vmatpush2.xpose.msra.mxu0 0.0
        %591 = vmatprep.subr.mxu0 0.0
        %592 = vmatpush2.xpose.msra.mxu0 0.0
        %593 = vmatprep.subr.mxu0 0.0
        %594 = vmatpush2.xpose.msra.mxu0 0.0
        %595 = vmatprep.subr.mxu0 0.0
        %596 = vmatpush2.xpose.msra.mxu0 0.0
        %597 = vmatprep.subr.mxu0 0.0
        %598 = vmatpush2.xpose.msra.mxu0 0.0
        %599 = vmatprep.subr.mxu0 0.0
        %600 = vmatpush2.xpose.msra.mxu0 0.0
        %601 = vmatprep.subr.mxu0 0.0
        %602 = vmatpush2.xpose.msra.mxu0 0.0
        %603 = vmatprep.subr.mxu0 0.0
        %604 = vmatpush2.xpose.msra.mxu0 0.0
        %605 = vmatprep.subr.mxu0 0.0
        %606 = vmatpush2.xpose.msra.mxu0 0.0
        %607 = vmatprep.subr.mxu0 0.0
        %608 = vmatpush2.xpose.msra.mxu0 0.0
        %609 = vmatprep.mubr.f32.mxu0 0.0
        %610 = vmatmul.mubr.f32.gmra.mxu0 %v540
        %v611 = vpop.f32.mrf.mxu0
        %v612 = vadd.f32 %v536, %v611
        %v613 = vpop.f32.mrf.mxu0
        %614 = vdwg.mxu0
        %v615 = vsel %vm538, %v612, -inf
        %616 = vmax.xlane.f32.xlu0 %v615
        %v617 = vpop.xlane.xlu0 %616
        %v618 = vsub.f32 %v612, %v617
        %v619 = vmul.f32 %v618, 1.442695
        %v620 = vpow.pop %v619
        %v621 = vsel %vm538, %v620, 0.0
        %622 = vadd.xlane.f32.xlu0 %v621
        %v623 = vpop.xlane.xlu0 %622
        %v624 = vrcp.pop %v623
        %v625 = vmul.f32 %v620, %v624
        %v627 = vsel %vm538, %v625, 0
        %629 = vmatprep.subr.mxu0 0.0
        %630 = vmatpush1.msra.mxu0 0.0
        %631 = vmatprep.subr.mxu0 0.0
        %632 = vmatpush1.msra.mxu0 0.0
        %633 = vmatprep.subr.mxu0 0.0
        %634 = vmatpush1.msra.mxu0 0.0
        %635 = vmatprep.subr.mxu0 0.0
        %636 = vmatpush1.msra.mxu0 0.0
        %637 = vmatprep.subr.mxu0 0.0
        %638 = vmatpush1.msra.mxu0 0.0
        %639 = vmatprep.subr.mxu0 0.0
        %640 = vmatpush1.msra.mxu0 0.0
        %641 = vmatprep.subr.mxu0 0.0
        %642 = vmatpush1.msra.mxu0 0.0
        %643 = vmatprep.subr.mxu0 0.0
        %644 = vmatpush1.msra.mxu0 0.0
        %645 = vmatprep.subr.mxu0 0.0
        %646 = vmatpush1.msra.mxu0 0.0
        %647 = vmatprep.subr.mxu0 0.0
        %648 = vmatpush1.msra.mxu0 0.0
        %649 = vmatprep.subr.mxu0 0.0
        %650 = vmatpush1.msra.mxu0 0.0
        %651 = vmatprep.subr.mxu0 0.0
        %652 = vmatpush1.msra.mxu0 0.0
        %653 = vmatprep.subr.mxu0 0.0
        %654 = vmatpush1.msra.mxu0 0.0
        %655 = vmatprep.subr.mxu0 0.0
        %656 = vmatpush1.msra.mxu0 0.0
        %657 = vmatprep.subr.mxu0 0.0
        %658 = vmatpush1.msra.mxu0 0.0
        %659 = vmatprep.subr.mxu0 0.0
        %660 = vmatpush1.msra.mxu0 %v529
        %661 = vmatprep.subr.mxu0 0.0
        %662 = vmatpush2.msra.mxu0 0.0
        %663 = vmatprep.subr.mxu0 0.0
        %664 = vmatpush2.msra.mxu0 0.0
        %665 = vmatprep.subr.mxu0 0.0
        %666 = vmatpush2.msra.mxu0 0.0
        %667 = vmatprep.subr.mxu0 0.0
        %668 = vmatpush2.msra.mxu0 0.0
        %669 = vmatprep.subr.mxu0 0.0
        %670 = vmatpush2.msra.mxu0 0.0
        %671 = vmatprep.subr.mxu0 0.0
        %672 = vmatpush2.msra.mxu0 0.0
        %673 = vmatprep.subr.mxu0 0.0
        %674 = vmatpush2.msra.mxu0 0.0
        %675 = vmatprep.subr.mxu0 0.0
        %676 = vmatpush2.msra.mxu0 0.0
        %677 = vmatprep.subr.mxu0 0.0
        %678 = vmatpush2.msra.mxu0 0.0
        %679 = vmatprep.subr.mxu0 0.0
        %680 = vmatpush2.msra.mxu0 0.0
        %681 = vmatprep.subr.mxu0 0.0
        %682 = vmatpush2.msra.mxu0 0.0
        %683 = vmatprep.subr.mxu0 0.0
        %684 = vmatpush2.msra.mxu0 0.0
        %685 = vmatprep.subr.mxu0 0.0
        %686 = vmatpush2.msra.mxu0 0.0
        %687 = vmatprep.subr.mxu0 0.0
        %688 = vmatpush2.msra.mxu0 0.0
        %689 = vmatprep.subr.mxu0 0.0
        %690 = vmatpush2.msra.mxu0 0.0
        %691 = vmatprep.subr.mxu0 0.0
        %692 = vmatpush2.msra.mxu0 0.0
        %693 = vmatprep.mubr.f32.mxu0 0.0
        %694 = vmatmul.mubr.f32.gmra.mxu0 %v627
        %v695 = vpop.f32.mrf.mxu0
        %v696 = vadd.f32 0.0, %v695
        %v697 = vpop.f32.mrf.mxu0
        %698 = vdwg.mxu0
        %v699 = vld [vmem:[%s3] sm:$0xff]
        %s700 = scalar_lea.vmem %s2, 32
        %v701 = vld [vmem:[%s700] sm:$0xff]
        %v702 = vld [vmem:[%s700 + $0x8] sm:$0xff]
        %v703 = vld [vmem:[%s700 + $0x10] sm:$0xff]
        %v704 = vld [vmem:[%s700 + $0x18] sm:$0xff]
        %v705 = vld [vmem:[%s6 + $0x8] sm:$0x1]
        %v706 = vlaneseq
        %v707 = vshrl.u32 %v706, 7
        %v708 = vsub.s32 0, %v707
        %v709 = vrot.slane %v705, %v708
        %710 = vmatprep.subr.mxu0 0.0
        %711 = vmatpush1.msra.mxu0 0.0
        %712 = vmatprep.subr.mxu0 0.0
        %713 = vmatpush1.msra.mxu0 0.0
        %714 = vmatprep.subr.mxu0 0.0
        %715 = vmatpush1.msra.mxu0 0.0
        %716 = vmatprep.subr.mxu0 0.0
        %717 = vmatpush1.msra.mxu0 0.0
        %718 = vmatprep.subr.mxu0 0.0
        %719 = vmatpush1.msra.mxu0 0.0
        %720 = vmatprep.subr.mxu0 0.0
        %721 = vmatpush1.msra.mxu0 0.0
        %722 = vmatprep.subr.mxu0 0.0
        %723 = vmatpush1.msra.mxu0 0.0
        %724 = vmatprep.subr.mxu0 0.0
        %725 = vmatpush1.msra.mxu0 0.0
        %726 = vmatprep.subr.mxu0 0.0
        %727 = vmatpush1.msra.mxu0 0.0
        %728 = vmatprep.subr.mxu0 0.0
        %729 = vmatpush1.msra.mxu0 0.0
        %730 = vmatprep.subr.mxu0 0.0
        %731 = vmatpush1.msra.mxu0 0.0
        %732 = vmatprep.subr.mxu0 0.0
        %733 = vmatpush1.msra.mxu0 0.0
        %734 = vmatprep.subr.mxu0 0.0
        %735 = vmatpush1.msra.mxu0 %v704
        %736 = vmatprep.subr.mxu0 0.0
        %737 = vmatpush1.msra.mxu0 %v703
        %738 = vmatprep.subr.mxu0 0.0
        %739 = vmatpush1.msra.mxu0 %v702
        %740 = vmatprep.subr.mxu0 0.0
        %741 = vmatpush1.msra.mxu0 %v701
        %742 = vmatprep.subr.mxu0 0.0
        %743 = vmatpush2.msra.mxu0 0.0
        %744 = vmatprep.subr.mxu0 0.0
        %745 = vmatpush2.msra.mxu0 0.0
        %746 = vmatprep.subr.mxu0 0.0
        %747 = vmatpush2.msra.mxu0 0.0
        %748 = vmatprep.subr.mxu0 0.0
        %749 = vmatpush2.msra.mxu0 0.0
        %750 = vmatprep.subr.mxu0 0.0
        %751 = vmatpush2.msra.mxu0 0.0
        %752 = vmatprep.subr.mxu0 0.0
        %753 = vmatpush2.msra.mxu0 0.0
        %754 = vmatprep.subr.mxu0 0.0
        %755 = vmatpush2.msra.mxu0 0.0
        %756 = vmatprep.subr.mxu0 0.0
        %757 = vmatpush2.msra.mxu0 0.0
        %758 = vmatprep.subr.mxu0 0.0
        %759 = vmatpush2.msra.mxu0 0.0
        %760 = vmatprep.subr.mxu0 0.0
        %761 = vmatpush2.msra.mxu0 0.0
        %762 = vmatprep.subr.mxu0 0.0
        %763 = vmatpush2.msra.mxu0 0.0
        %764 = vmatprep.subr.mxu0 0.0
        %765 = vmatpush2.msra.mxu0 0.0
        %766 = vmatprep.subr.mxu0 0.0
        %767 = vmatpush2.msra.mxu0 0.0
        %768 = vmatprep.subr.mxu0 0.0
        %769 = vmatpush2.msra.mxu0 0.0
        %770 = vmatprep.subr.mxu0 0.0
        %771 = vmatpush2.msra.mxu0 0.0
        %772 = vmatprep.subr.mxu0 0.0
        %773 = vmatpush2.msra.mxu0 0.0
        %774 = vmatprep.mubr.f32.mxu0 0.0
        %775 = vmatmul.mubr.f32.gmra.mxu0 %v300
        %v776 = vpop.f32.mrf.mxu0
        %v777 = vadd.f32 %v709, %v776
        %v778 = vpop.f32.mrf.mxu0
        %779 = vdwg.mxu0
        %s780 = scalar_lea.vmem %s2, 160
        %v781 = vld [vmem:[%s780] sm:$0xff]
        %v782 = vld [vmem:[%s780 + $0x8] sm:$0xff]
        %v783 = vld [vmem:[%s780 + $0x10] sm:$0xff]
        %v784 = vld [vmem:[%s780 + $0x18] sm:$0xff]
        %v785 = vld [vmem:[%s6 + $0xc] sm:$0x1]
        %v786 = vlaneseq
        %v787 = vshrl.u32 %v786, 7
        %v788 = vsub.s32 0, %v787
        %v789 = vrot.slane %v785, %v788
        %790 = vmatprep.subr.mxu0 0.0
        %791 = vmatpush1.msra.mxu0 0.0
        %792 = vmatprep.subr.mxu0 0.0
        %793 = vmatpush1.msra.mxu0 0.0
        %794 = vmatprep.subr.mxu0 0.0
        %795 = vmatpush1.msra.mxu0 0.0
        %796 = vmatprep.subr.mxu0 0.0
        %797 = vmatpush1.msra.mxu0 0.0
        %798 = vmatprep.subr.mxu0 0.0
        %799 = vmatpush1.msra.mxu0 0.0
        %800 = vmatprep.subr.mxu0 0.0
        %801 = vmatpush1.msra.mxu0 0.0
        %802 = vmatprep.subr.mxu0 0.0
        %803 = vmatpush1.msra.mxu0 0.0
        %804 = vmatprep.subr.mxu0 0.0
        %805 = vmatpush1.msra.mxu0 0.0
        %806 = vmatprep.subr.mxu0 0.0
        %807 = vmatpush1.msra.mxu0 0.0
        %808 = vmatprep.subr.mxu0 0.0
        %809 = vmatpush1.msra.mxu0 0.0
        %810 = vmatprep.subr.mxu0 0.0
        %811 = vmatpush1.msra.mxu0 0.0
        %812 = vmatprep.subr.mxu0 0.0
        %813 = vmatpush1.msra.mxu0 0.0
        %814 = vmatprep.subr.mxu0 0.0
        %815 = vmatpush1.msra.mxu0 %v784
        %816 = vmatprep.subr.mxu0 0.0
        %817 = vmatpush1.msra.mxu0 %v783
        %818 = vmatprep.subr.mxu0 0.0
        %819 = vmatpush1.msra.mxu0 %v782
        %820 = vmatprep.subr.mxu0 0.0
        %821 = vmatpush1.msra.mxu0 %v781
        %822 = vmatprep.subr.mxu0 0.0
        %823 = vmatpush2.msra.mxu0 0.0
        %824 = vmatprep.subr.mxu0 0.0
        %825 = vmatpush2.msra.mxu0 0.0
        %826 = vmatprep.subr.mxu0 0.0
        %827 = vmatpush2.msra.mxu0 0.0
        %828 = vmatprep.subr.mxu0 0.0
        %829 = vmatpush2.msra.mxu0 0.0
        %830 = vmatprep.subr.mxu0 0.0
        %831 = vmatpush2.msra.mxu0 0.0
        %832 = vmatprep.subr.mxu0 0.0
        %833 = vmatpush2.msra.mxu0 0.0
        %834 = vmatprep.subr.mxu0 0.0
        %835 = vmatpush2.msra.mxu0 0.0
        %836 = vmatprep.subr.mxu0 0.0
        %837 = vmatpush2.msra.mxu0 0.0
        %838 = vmatprep.subr.mxu0 0.0
        %839 = vmatpush2.msra.mxu0 0.0
        %840 = vmatprep.subr.mxu0 0.0
        %841 = vmatpush2.msra.mxu0 0.0
        %842 = vmatprep.subr.mxu0 0.0
        %843 = vmatpush2.msra.mxu0 0.0
        %844 = vmatprep.subr.mxu0 0.0
        %845 = vmatpush2.msra.mxu0 0.0
        %846 = vmatprep.subr.mxu0 0.0
        %847 = vmatpush2.msra.mxu0 0.0
        %848 = vmatprep.subr.mxu0 0.0
        %849 = vmatpush2.msra.mxu0 0.0
        %850 = vmatprep.subr.mxu0 0.0
        %851 = vmatpush2.msra.mxu0 0.0
        %852 = vmatprep.subr.mxu0 0.0
        %853 = vmatpush2.msra.mxu0 0.0
        %854 = vmatprep.mubr.f32.mxu0 0.0
        %855 = vmatmul.mubr.f32.gmra.mxu0 %v300
        %v856 = vpop.f32.mrf.mxu0
        %v857 = vadd.f32 %v789, %v856
        %v858 = vpop.f32.mrf.mxu0
        %859 = vdwg.mxu0
        %s860 = scalar_lea.vmem %s2, 288
        %v861 = vld [vmem:[%s860] sm:$0xff]
        %v862 = vld [vmem:[%s860 + $0x8] sm:$0xff]
        %v863 = vld [vmem:[%s860 + $0x10] sm:$0xff]
        %v864 = vld [vmem:[%s860 + $0x18] sm:$0xff]
        %v865 = vld [vmem:[%s6 + $0x10] sm:$0x1]
        %v866 = vlaneseq
        %v867 = vshrl.u32 %v866, 7
        %v868 = vsub.s32 0, %v867
        %v869 = vrot.slane %v865, %v868
        %870 = vmatprep.subr.mxu0 0.0
        %871 = vmatpush1.msra.mxu0 0.0
        %872 = vmatprep.subr.mxu0 0.0
        %873 = vmatpush1.msra.mxu0 0.0
        %874 = vmatprep.subr.mxu0 0.0
        %875 = vmatpush1.msra.mxu0 0.0
        %876 = vmatprep.subr.mxu0 0.0
        %877 = vmatpush1.msra.mxu0 0.0
        %878 = vmatprep.subr.mxu0 0.0
        %879 = vmatpush1.msra.mxu0 0.0
        %880 = vmatprep.subr.mxu0 0.0
        %881 = vmatpush1.msra.mxu0 0.0
        %882 = vmatprep.subr.mxu0 0.0
        %883 = vmatpush1.msra.mxu0 0.0
        %884 = vmatprep.subr.mxu0 0.0
        %885 = vmatpush1.msra.mxu0 0.0
        %886 = vmatprep.subr.mxu0 0.0
        %887 = vmatpush1.msra.mxu0 0.0
        %888 = vmatprep.subr.mxu0 0.0
        %889 = vmatpush1.msra.mxu0 0.0
        %890 = vmatprep.subr.mxu0 0.0
        %891 = vmatpush1.msra.mxu0 0.0
        %892 = vmatprep.subr.mxu0 0.0
        %893 = vmatpush1.msra.mxu0 0.0
        %894 = vmatprep.subr.mxu0 0.0
        %895 = vmatpush1.msra.mxu0 %v864
        %896 = vmatprep.subr.mxu0 0.0
        %897 = vmatpush1.msra.mxu0 %v863
        %898 = vmatprep.subr.mxu0 0.0
        %899 = vmatpush1.msra.mxu0 %v862
        %900 = vmatprep.subr.mxu0 0.0
        %901 = vmatpush1.msra.mxu0 %v861
        %902 = vmatprep.subr.mxu0 0.0
        %903 = vmatpush2.msra.mxu0 0.0
        %904 = vmatprep.subr.mxu0 0.0
        %905 = vmatpush2.msra.mxu0 0.0
        %906 = vmatprep.subr.mxu0 0.0
        %907 = vmatpush2.msra.mxu0 0.0
        %908 = vmatprep.subr.mxu0 0.0
        %909 = vmatpush2.msra.mxu0 0.0
        %910 = vmatprep.subr.mxu0 0.0
        %911 = vmatpush2.msra.mxu0 0.0
        %912 = vmatprep.subr.mxu0 0.0
        %913 = vmatpush2.msra.mxu0 0.0
        %914 = vmatprep.subr.mxu0 0.0
        %915 = vmatpush2.msra.mxu0 0.0
        %916 = vmatprep.subr.mxu0 0.0
        %917 = vmatpush2.msra.mxu0 0.0
        %918 = vmatprep.subr.mxu0 0.0
        %919 = vmatpush2.msra.mxu0 0.0
        %920 = vmatprep.subr.mxu0 0.0
        %921 = vmatpush2.msra.mxu0 0.0
        %922 = vmatprep.subr.mxu0 0.0
        %923 = vmatpush2.msra.mxu0 0.0
        %924 = vmatprep.subr.mxu0 0.0
        %925 = vmatpush2.msra.mxu0 0.0
        %926 = vmatprep.subr.mxu0 0.0
        %927 = vmatpush2.msra.mxu0 0.0
        %928 = vmatprep.subr.mxu0 0.0
        %929 = vmatpush2.msra.mxu0 0.0
        %930 = vmatprep.subr.mxu0 0.0
        %931 = vmatpush2.msra.mxu0 0.0
        %932 = vmatprep.subr.mxu0 0.0
        %933 = vmatpush2.msra.mxu0 0.0
        %934 = vmatprep.mubr.f32.mxu0 0.0
        %935 = vmatmul.mubr.f32.gmra.mxu0 %v300
        %v936 = vpop.f32.mrf.mxu0
        %v937 = vadd.f32 %v869, %v936
        %v938 = vpop.f32.mrf.mxu0
        %939 = vdwg.mxu0
        %v941 = vsel %vm538, %v777, 0
        %v944 = vsel %vm538, %v857, 0
        %946 = vmatprep.subr.mxu0 0.0
        %947 = vmatpush1.xpose.msra.mxu0 0.0
        %948 = vmatprep.subr.mxu0 0.0
        %949 = vmatpush1.xpose.msra.mxu0 0.0
        %950 = vmatprep.subr.mxu0 0.0
        %951 = vmatpush1.xpose.msra.mxu0 0.0
        %952 = vmatprep.subr.mxu0 0.0
        %953 = vmatpush1.xpose.msra.mxu0 0.0
        %954 = vmatprep.subr.mxu0 0.0
        %955 = vmatpush1.xpose.msra.mxu0 0.0
        %956 = vmatprep.subr.mxu0 0.0
        %957 = vmatpush1.xpose.msra.mxu0 0.0
        %958 = vmatprep.subr.mxu0 0.0
        %959 = vmatpush1.xpose.msra.mxu0 0.0
        %960 = vmatprep.subr.mxu0 0.0
        %961 = vmatpush1.xpose.msra.mxu0 0.0
        %962 = vmatprep.subr.mxu0 0.0
        %963 = vmatpush1.xpose.msra.mxu0 0.0
        %964 = vmatprep.subr.mxu0 0.0
        %965 = vmatpush1.xpose.msra.mxu0 0.0
        %966 = vmatprep.subr.mxu0 0.0
        %967 = vmatpush1.xpose.msra.mxu0 0.0
        %968 = vmatprep.subr.mxu0 0.0
        %969 = vmatpush1.xpose.msra.mxu0 0.0
        %970 = vmatprep.subr.mxu0 0.0
        %971 = vmatpush1.xpose.msra.mxu0 0.0
        %972 = vmatprep.subr.mxu0 0.0
        %973 = vmatpush1.xpose.msra.mxu0 0.0
        %974 = vmatprep.subr.mxu0 0.0
        %975 = vmatpush1.xpose.msra.mxu0 0.0
        %976 = vmatprep.subr.mxu0 0.0
        %977 = vmatpush1.xpose.msra.mxu0 %v944
        %978 = vmatprep.subr.mxu0 0.0
        %979 = vmatpush2.xpose.msra.mxu0 0.0
        %980 = vmatprep.subr.mxu0 0.0
        %981 = vmatpush2.xpose.msra.mxu0 0.0
        %982 = vmatprep.subr.mxu0 0.0
        %983 = vmatpush2.xpose.msra.mxu0 0.0
        %984 = vmatprep.subr.mxu0 0.0
        %985 = vmatpush2.xpose.msra.mxu0 0.0
        %986 = vmatprep.subr.mxu0 0.0
        %987 = vmatpush2.xpose.msra.mxu0 0.0
        %988 = vmatprep.subr.mxu0 0.0
        %989 = vmatpush2.xpose.msra.mxu0 0.0
        %990 = vmatprep.subr.mxu0 0.0
        %991 = vmatpush2.xpose.msra.mxu0 0.0
        %992 = vmatprep.subr.mxu0 0.0
        %993 = vmatpush2.xpose.msra.mxu0 0.0
        %994 = vmatprep.subr.mxu0 0.0
        %995 = vmatpush2.xpose.msra.mxu0 0.0
        %996 = vmatprep.subr.mxu0 0.0
        %997 = vmatpush2.xpose.msra.mxu0 0.0
        %998 = vmatprep.subr.mxu0 0.0
        %999 = vmatpush2.xpose.msra.mxu0 0.0
        %1000 = vmatprep.subr.mxu0 0.0
        %1001 = vmatpush2.xpose.msra.mxu0 0.0
        %1002 = vmatprep.subr.mxu0 0.0
        %1003 = vmatpush2.xpose.msra.mxu0 0.0
        %1004 = vmatprep.subr.mxu0 0.0
        %1005 = vmatpush2.xpose.msra.mxu0 0.0
        %1006 = vmatprep.subr.mxu0 0.0
        %1007 = vmatpush2.xpose.msra.mxu0 0.0
        %1008 = vmatprep.subr.mxu0 0.0
        %1009 = vmatpush2.xpose.msra.mxu0 0.0
        %1010 = vmatprep.mubr.f32.mxu0 0.0
        %1011 = vmatmul.mubr.f32.gmra.mxu0 %v941
        %v1012 = vpop.f32.mrf.mxu0
        %v1013 = vadd.f32 %v536, %v1012
        %v1014 = vpop.f32.mrf.mxu0
        %1015 = vdwg.mxu0
        %v1016 = vsel %vm538, %v1013, -inf
        %1017 = vmax.xlane.f32.xlu0 %v1016
        %v1018 = vpop.xlane.xlu0 %1017
        %v1019 = vsub.f32 %v1013, %v1018
        %v1020 = vmul.f32 %v1019, 1.442695
        %v1021 = vpow.pop %v1020
        %v1022 = vsel %vm538, %v1021, 0.0
        %1023 = vadd.xlane.f32.xlu0 %v1022
        %v1024 = vpop.xlane.xlu0 %1023
        %v1025 = vrcp.pop %v1024
        %v1026 = vmul.f32 %v1021, %v1025
        %v1028 = vsel %vm538, %v1026, 0
        %1030 = vmatprep.subr.mxu0 0.0
        %1031 = vmatpush1.msra.mxu0 0.0
        %1032 = vmatprep.subr.mxu0 0.0
        %1033 = vmatpush1.msra.mxu0 0.0
        %1034 = vmatprep.subr.mxu0 0.0
        %1035 = vmatpush1.msra.mxu0 0.0
        %1036 = vmatprep.subr.mxu0 0.0
        %1037 = vmatpush1.msra.mxu0 0.0
        %1038 = vmatprep.subr.mxu0 0.0
        %1039 = vmatpush1.msra.mxu0 0.0
        %1040 = vmatprep.subr.mxu0 0.0
        %1041 = vmatpush1.msra.mxu0 0.0
        %1042 = vmatprep.subr.mxu0 0.0
        %1043 = vmatpush1.msra.mxu0 0.0
        %1044 = vmatprep.subr.mxu0 0.0
        %1045 = vmatpush1.msra.mxu0 0.0
        %1046 = vmatprep.subr.mxu0 0.0
        %1047 = vmatpush1.msra.mxu0 0.0
        %1048 = vmatprep.subr.mxu0 0.0
        %1049 = vmatpush1.msra.mxu0 0.0
        %1050 = vmatprep.subr.mxu0 0.0
        %1051 = vmatpush1.msra.mxu0 0.0
        %1052 = vmatprep.subr.mxu0 0.0
        %1053 = vmatpush1.msra.mxu0 0.0
        %1054 = vmatprep.subr.mxu0 0.0
        %1055 = vmatpush1.msra.mxu0 0.0
        %1056 = vmatprep.subr.mxu0 0.0
        %1057 = vmatpush1.msra.mxu0 0.0
        %1058 = vmatprep.subr.mxu0 0.0
        %1059 = vmatpush1.msra.mxu0 0.0
        %1060 = vmatprep.subr.mxu0 0.0
        %1061 = vmatpush1.msra.mxu0 %v937
        %1062 = vmatprep.subr.mxu0 0.0
        %1063 = vmatpush2.msra.mxu0 0.0
        %1064 = vmatprep.subr.mxu0 0.0
        %1065 = vmatpush2.msra.mxu0 0.0
        %1066 = vmatprep.subr.mxu0 0.0
        %1067 = vmatpush2.msra.mxu0 0.0
        %1068 = vmatprep.subr.mxu0 0.0
        %1069 = vmatpush2.msra.mxu0 0.0
        %1070 = vmatprep.subr.mxu0 0.0
        %1071 = vmatpush2.msra.mxu0 0.0
        %1072 = vmatprep.subr.mxu0 0.0
        %1073 = vmatpush2.msra.mxu0 0.0
        %1074 = vmatprep.subr.mxu0 0.0
        %1075 = vmatpush2.msra.mxu0 0.0
        %1076 = vmatprep.subr.mxu0 0.0
        %1077 = vmatpush2.msra.mxu0 0.0
        %1078 = vmatprep.subr.mxu0 0.0
        %1079 = vmatpush2.msra.mxu0 0.0
        %1080 = vmatprep.subr.mxu0 0.0
        %1081 = vmatpush2.msra.mxu0 0.0
        %1082 = vmatprep.subr.mxu0 0.0
        %1083 = vmatpush2.msra.mxu0 0.0
        %1084 = vmatprep.subr.mxu0 0.0
        %1085 = vmatpush2.msra.mxu0 0.0
        %1086 = vmatprep.subr.mxu0 0.0
        %1087 = vmatpush2.msra.mxu0 0.0
        %1088 = vmatprep.subr.mxu0 0.0
        %1089 = vmatpush2.msra.mxu0 0.0
        %1090 = vmatprep.subr.mxu0 0.0
        %1091 = vmatpush2.msra.mxu0 0.0
        %1092 = vmatprep.subr.mxu0 0.0
        %1093 = vmatpush2.msra.mxu0 0.0
        %1094 = vmatprep.mubr.f32.mxu0 0.0
        %1095 = vmatmul.mubr.f32.gmra.mxu0 %v1028
        %v1096 = vpop.f32.mrf.mxu0
        %v1097 = vadd.f32 0.0, %v1096
        %v1098 = vpop.f32.mrf.mxu0
        %1099 = vdwg.mxu0
        %s1100 = scalar_lea.vmem %s3, 8
        %v1101 = vld [vmem:[%s1100] sm:$0xff]
        %v1103 = vsel %vm538, %v1097, 0
        %1105 = vmatprep.subr.mxu0 0.0
        %1106 = vmatpush1.msra.mxu0 0.0
        %1107 = vmatprep.subr.mxu0 0.0
        %1108 = vmatpush1.msra.mxu0 0.0
        %1109 = vmatprep.subr.mxu0 0.0
        %1110 = vmatpush1.msra.mxu0 0.0
        %1111 = vmatprep.subr.mxu0 0.0
        %1112 = vmatpush1.msra.mxu0 0.0
        %1113 = vmatprep.subr.mxu0 0.0
        %1114 = vmatpush1.msra.mxu0 0.0
        %1115 = vmatprep.subr.mxu0 0.0
        %1116 = vmatpush1.msra.mxu0 0.0
        %1117 = vmatprep.subr.mxu0 0.0
        %1118 = vmatpush1.msra.mxu0 0.0
        %1119 = vmatprep.subr.mxu0 0.0
        %1120 = vmatpush1.msra.mxu0 0.0
        %1121 = vmatprep.subr.mxu0 0.0
        %1122 = vmatpush1.msra.mxu0 0.0
        %1123 = vmatprep.subr.mxu0 0.0
        %1124 = vmatpush1.msra.mxu0 0.0
        %1125 = vmatprep.subr.mxu0 0.0
        %1126 = vmatpush1.msra.mxu0 0.0
        %1127 = vmatprep.subr.mxu0 0.0
        %1128 = vmatpush1.msra.mxu0 0.0
        %1129 = vmatprep.subr.mxu0 0.0
        %1130 = vmatpush1.msra.mxu0 0.0
        %1131 = vmatprep.subr.mxu0 0.0
        %1132 = vmatpush1.msra.mxu0 0.0
        %1133 = vmatprep.subr.mxu0 0.0
        %1134 = vmatpush1.msra.mxu0 0.0
        %1135 = vmatprep.subr.mxu0 0.0
        %1136 = vmatpush1.msra.mxu0 %v1101
        %1137 = vmatprep.subr.mxu0 0.0
        %1138 = vmatpush2.msra.mxu0 0.0
        %1139 = vmatprep.subr.mxu0 0.0
        %1140 = vmatpush2.msra.mxu0 0.0
        %1141 = vmatprep.subr.mxu0 0.0
        %1142 = vmatpush2.msra.mxu0 0.0
        %1143 = vmatprep.subr.mxu0 0.0
        %1144 = vmatpush2.msra.mxu0 0.0
        %1145 = vmatprep.subr.mxu0 0.0
        %1146 = vmatpush2.msra.mxu0 0.0
        %1147 = vmatprep.subr.mxu0 0.0
        %1148 = vmatpush2.msra.mxu0 0.0
        %1149 = vmatprep.subr.mxu0 0.0
        %1150 = vmatpush2.msra.mxu0 0.0
        %1151 = vmatprep.subr.mxu0 0.0
        %1152 = vmatpush2.msra.mxu0 0.0
        %1153 = vmatprep.subr.mxu0 0.0
        %1154 = vmatpush2.msra.mxu0 0.0
        %1155 = vmatprep.subr.mxu0 0.0
        %1156 = vmatpush2.msra.mxu0 0.0
        %1157 = vmatprep.subr.mxu0 0.0
        %1158 = vmatpush2.msra.mxu0 0.0
        %1159 = vmatprep.subr.mxu0 0.0
        %1160 = vmatpush2.msra.mxu0 0.0
        %1161 = vmatprep.subr.mxu0 0.0
        %1162 = vmatpush2.msra.mxu0 0.0
        %1163 = vmatprep.subr.mxu0 0.0
        %1164 = vmatpush2.msra.mxu0 0.0
        %1165 = vmatprep.subr.mxu0 0.0
        %1166 = vmatpush2.msra.mxu0 0.0
        %1167 = vmatprep.subr.mxu0 0.0
        %1168 = vmatpush2.msra.mxu0 0.0
        %1169 = vmatprep.mubr.f32.mxu0 0.0
        %1170 = vmatmul.mubr.f32.gmra.mxu0 %v1103
        %v1171 = vpop.f32.mrf.mxu0
        %v1172 = vadd.f32 0.0, %v1171
        %v1173 = vpop.f32.mrf.mxu0
        %1174 = vdwg.mxu0
        %v1176 = vsel %vm538, %v696, 0
        %1178 = vmatprep.subr.mxu0 0.0
        %1179 = vmatpush1.msra.mxu0 0.0
        %1180 = vmatprep.subr.mxu0 0.0
        %1181 = vmatpush1.msra.mxu0 0.0
        %1182 = vmatprep.subr.mxu0 0.0
        %1183 = vmatpush1.msra.mxu0 0.0
        %1184 = vmatprep.subr.mxu0 0.0
        %1185 = vmatpush1.msra.mxu0 0.0
        %1186 = vmatprep.subr.mxu0 0.0
        %1187 = vmatpush1.msra.mxu0 0.0
        %1188 = vmatprep.subr.mxu0 0.0
        %1189 = vmatpush1.msra.mxu0 0.0
        %1190 = vmatprep.subr.mxu0 0.0
        %1191 = vmatpush1.msra.mxu0 0.0
        %1192 = vmatprep.subr.mxu0 0.0
        %1193 = vmatpush1.msra.mxu0 0.0
        %1194 = vmatprep.subr.mxu0 0.0
        %1195 = vmatpush1.msra.mxu0 0.0
        %1196 = vmatprep.subr.mxu0 0.0
        %1197 = vmatpush1.msra.mxu0 0.0
        %1198 = vmatprep.subr.mxu0 0.0
        %1199 = vmatpush1.msra.mxu0 0.0
        %1200 = vmatprep.subr.mxu0 0.0
        %1201 = vmatpush1.msra.mxu0 0.0
        %1202 = vmatprep.subr.mxu0 0.0
        %1203 = vmatpush1.msra.mxu0 0.0
        %1204 = vmatprep.subr.mxu0 0.0
        %1205 = vmatpush1.msra.mxu0 0.0
        %1206 = vmatprep.subr.mxu0 0.0
        %1207 = vmatpush1.msra.mxu0 0.0
        %1208 = vmatprep.subr.mxu0 0.0
        %1209 = vmatpush1.msra.mxu0 %v699
        %1210 = vmatprep.subr.mxu0 0.0
        %1211 = vmatpush2.msra.mxu0 0.0
        %1212 = vmatprep.subr.mxu0 0.0
        %1213 = vmatpush2.msra.mxu0 0.0
        %1214 = vmatprep.subr.mxu0 0.0
        %1215 = vmatpush2.msra.mxu0 0.0
        %1216 = vmatprep.subr.mxu0 0.0
        %1217 = vmatpush2.msra.mxu0 0.0
        %1218 = vmatprep.subr.mxu0 0.0
        %1219 = vmatpush2.msra.mxu0 0.0
        %1220 = vmatprep.subr.mxu0 0.0
        %1221 = vmatpush2.msra.mxu0 0.0
        %1222 = vmatprep.subr.mxu0 0.0
        %1223 = vmatpush2.msra.mxu0 0.0
        %1224 = vmatprep.subr.mxu0 0.0
        %1225 = vmatpush2.msra.mxu0 0.0
        %1226 = vmatprep.subr.mxu0 0.0
        %1227 = vmatpush2.msra.mxu0 0.0
        %1228 = vmatprep.subr.mxu0 0.0
        %1229 = vmatpush2.msra.mxu0 0.0
        %1230 = vmatprep.subr.mxu0 0.0
        %1231 = vmatpush2.msra.mxu0 0.0
        %1232 = vmatprep.subr.mxu0 0.0
        %1233 = vmatpush2.msra.mxu0 0.0
        %1234 = vmatprep.subr.mxu0 0.0
        %1235 = vmatpush2.msra.mxu0 0.0
        %1236 = vmatprep.subr.mxu0 0.0
        %1237 = vmatpush2.msra.mxu0 0.0
        %1238 = vmatprep.subr.mxu0 0.0
        %1239 = vmatpush2.msra.mxu0 0.0
        %1240 = vmatprep.subr.mxu0 0.0
        %1241 = vmatpush2.msra.mxu0 0.0
        %1242 = vmatprep.mubr.f32.mxu0 0.0
        %1243 = vmatmul.mubr.f32.gmra.mxu0 %v1176
        %v1244 = vpop.f32.mrf.mxu0
        %v1245 = vadd.f32 %v1172, %v1244
        %v1246 = vpop.f32.mrf.mxu0
        %1247 = vdwg.mxu0
        %s1248 = scalar_lea.vmem %s2, 64
        %v1249 = vld [vmem:[%s1248] sm:$0xff]
        %v1250 = vld [vmem:[%s1248 + $0x8] sm:$0xff]
        %v1251 = vld [vmem:[%s1248 + $0x10] sm:$0xff]
        %v1252 = vld [vmem:[%s1248 + $0x18] sm:$0xff]
        %v1253 = vld [vmem:[%s6 + $0x9] sm:$0x1]
        %v1254 = vlaneseq
        %v1255 = vshrl.u32 %v1254, 7
        %v1256 = vsub.s32 0, %v1255
        %v1257 = vrot.slane %v1253, %v1256
        %1258 = vmatprep.subr.mxu0 0.0
        %1259 = vmatpush1.msra.mxu0 0.0
        %1260 = vmatprep.subr.mxu0 0.0
        %1261 = vmatpush1.msra.mxu0 0.0
        %1262 = vmatprep.subr.mxu0 0.0
        %1263 = vmatpush1.msra.mxu0 0.0
        %1264 = vmatprep.subr.mxu0 0.0
        %1265 = vmatpush1.msra.mxu0 0.0
        %1266 = vmatprep.subr.mxu0 0.0
        %1267 = vmatpush1.msra.mxu0 0.0
        %1268 = vmatprep.subr.mxu0 0.0
        %1269 = vmatpush1.msra.mxu0 0.0
        %1270 = vmatprep.subr.mxu0 0.0
        %1271 = vmatpush1.msra.mxu0 0.0
        %1272 = vmatprep.subr.mxu0 0.0
        %1273 = vmatpush1.msra.mxu0 0.0
        %1274 = vmatprep.subr.mxu0 0.0
        %1275 = vmatpush1.msra.mxu0 0.0
        %1276 = vmatprep.subr.mxu0 0.0
        %1277 = vmatpush1.msra.mxu0 0.0
        %1278 = vmatprep.subr.mxu0 0.0
        %1279 = vmatpush1.msra.mxu0 0.0
        %1280 = vmatprep.subr.mxu0 0.0
        %1281 = vmatpush1.msra.mxu0 0.0
        %1282 = vmatprep.subr.mxu0 0.0
        %1283 = vmatpush1.msra.mxu0 %v1252
        %1284 = vmatprep.subr.mxu0 0.0
        %1285 = vmatpush1.msra.mxu0 %v1251
        %1286 = vmatprep.subr.mxu0 0.0
        %1287 = vmatpush1.msra.mxu0 %v1250
        %1288 = vmatprep.subr.mxu0 0.0
        %1289 = vmatpush1.msra.mxu0 %v1249
        %1290 = vmatprep.subr.mxu0 0.0
        %1291 = vmatpush2.msra.mxu0 0.0
        %1292 = vmatprep.subr.mxu0 0.0
        %1293 = vmatpush2.msra.mxu0 0.0
        %1294 = vmatprep.subr.mxu0 0.0
        %1295 = vmatpush2.msra.mxu0 0.0
        %1296 = vmatprep.subr.mxu0 0.0
        %1297 = vmatpush2.msra.mxu0 0.0
        %1298 = vmatprep.subr.mxu0 0.0
        %1299 = vmatpush2.msra.mxu0 0.0
        %1300 = vmatprep.subr.mxu0 0.0
        %1301 = vmatpush2.msra.mxu0 0.0
        %1302 = vmatprep.subr.mxu0 0.0
        %1303 = vmatpush2.msra.mxu0 0.0
        %1304 = vmatprep.subr.mxu0 0.0
        %1305 = vmatpush2.msra.mxu0 0.0
        %1306 = vmatprep.subr.mxu0 0.0
        %1307 = vmatpush2.msra.mxu0 0.0
        %1308 = vmatprep.subr.mxu0 0.0
        %1309 = vmatpush2.msra.mxu0 0.0
        %1310 = vmatprep.subr.mxu0 0.0
        %1311 = vmatpush2.msra.mxu0 0.0
        %1312 = vmatprep.subr.mxu0 0.0
        %1313 = vmatpush2.msra.mxu0 0.0
        %1314 = vmatprep.subr.mxu0 0.0
        %1315 = vmatpush2.msra.mxu0 0.0
        %1316 = vmatprep.subr.mxu0 0.0
        %1317 = vmatpush2.msra.mxu0 0.0
        %1318 = vmatprep.subr.mxu0 0.0
        %1319 = vmatpush2.msra.mxu0 0.0
        %1320 = vmatprep.subr.mxu0 0.0
        %1321 = vmatpush2.msra.mxu0 0.0
        %1322 = vmatprep.mubr.f32.mxu0 0.0
        %1323 = vmatmul.mubr.f32.gmra.mxu0 %v300
        %v1324 = vpop.f32.mrf.mxu0
        %v1325 = vadd.f32 %v1257, %v1324
        %v1326 = vpop.f32.mrf.mxu0
        %1327 = vdwg.mxu0
        %s1328 = scalar_lea.vmem %s2, 192
        %v1329 = vld [vmem:[%s1328] sm:$0xff]
        %v1330 = vld [vmem:[%s1328 + $0x8] sm:$0xff]
        %v1331 = vld [vmem:[%s1328 + $0x10] sm:$0xff]
        %v1332 = vld [vmem:[%s1328 + $0x18] sm:$0xff]
        %v1333 = vld [vmem:[%s6 + $0xd] sm:$0x1]
        %v1334 = vlaneseq
        %v1335 = vshrl.u32 %v1334, 7
        %v1336 = vsub.s32 0, %v1335
        %v1337 = vrot.slane %v1333, %v1336
        %1338 = vmatprep.subr.mxu0 0.0
        %1339 = vmatpush1.msra.mxu0 0.0
        %1340 = vmatprep.subr.mxu0 0.0
        %1341 = vmatpush1.msra.mxu0 0.0
        %1342 = vmatprep.subr.mxu0 0.0
        %1343 = vmatpush1.msra.mxu0 0.0
        %1344 = vmatprep.subr.mxu0 0.0
        %1345 = vmatpush1.msra.mxu0 0.0
        %1346 = vmatprep.subr.mxu0 0.0
        %1347 = vmatpush1.msra.mxu0 0.0
        %1348 = vmatprep.subr.mxu0 0.0
        %1349 = vmatpush1.msra.mxu0 0.0
        %1350 = vmatprep.subr.mxu0 0.0
        %1351 = vmatpush1.msra.mxu0 0.0
        %1352 = vmatprep.subr.mxu0 0.0
        %1353 = vmatpush1.msra.mxu0 0.0
        %1354 = vmatprep.subr.mxu0 0.0
        %1355 = vmatpush1.msra.mxu0 0.0
        %1356 = vmatprep.subr.mxu0 0.0
        %1357 = vmatpush1.msra.mxu0 0.0
        %1358 = vmatprep.subr.mxu0 0.0
        %1359 = vmatpush1.msra.mxu0 0.0
        %1360 = vmatprep.subr.mxu0 0.0
        %1361 = vmatpush1.msra.mxu0 0.0
        %1362 = vmatprep.subr.mxu0 0.0
        %1363 = vmatpush1.msra.mxu0 %v1332
        %1364 = vmatprep.subr.mxu0 0.0
        %1365 = vmatpush1.msra.mxu0 %v1331
        %1366 = vmatprep.subr.mxu0 0.0
        %1367 = vmatpush1.msra.mxu0 %v1330
        %1368 = vmatprep.subr.mxu0 0.0
        %1369 = vmatpush1.msra.mxu0 %v1329
        %1370 = vmatprep.subr.mxu0 0.0
        %1371 = vmatpush2.msra.mxu0 0.0
        %1372 = vmatprep.subr.mxu0 0.0
        %1373 = vmatpush2.msra.mxu0 0.0
        %1374 = vmatprep.subr.mxu0 0.0
        %1375 = vmatpush2.msra.mxu0 0.0
        %1376 = vmatprep.subr.mxu0 0.0
        %1377 = vmatpush2.msra.mxu0 0.0
        %1378 = vmatprep.subr.mxu0 0.0
        %1379 = vmatpush2.msra.mxu0 0.0
        %1380 = vmatprep.subr.mxu0 0.0
        %1381 = vmatpush2.msra.mxu0 0.0
        %1382 = vmatprep.subr.mxu0 0.0
        %1383 = vmatpush2.msra.mxu0 0.0
        %1384 = vmatprep.subr.mxu0 0.0
        %1385 = vmatpush2.msra.mxu0 0.0
        %1386 = vmatprep.subr.mxu0 0.0
        %1387 = vmatpush2.msra.mxu0 0.0
        %1388 = vmatprep.subr.mxu0 0.0
        %1389 = vmatpush2.msra.mxu0 0.0
        %1390 = vmatprep.subr.mxu0 0.0
        %1391 = vmatpush2.msra.mxu0 0.0
        %1392 = vmatprep.subr.mxu0 0.0
        %1393 = vmatpush2.msra.mxu0 0.0
        %1394 = vmatprep.subr.mxu0 0.0
        %1395 = vmatpush2.msra.mxu0 0.0
        %1396 = vmatprep.subr.mxu0 0.0
        %1397 = vmatpush2.msra.mxu0 0.0
        %1398 = vmatprep.subr.mxu0 0.0
        %1399 = vmatpush2.msra.mxu0 0.0
        %1400 = vmatprep.subr.mxu0 0.0
        %1401 = vmatpush2.msra.mxu0 0.0
        %1402 = vmatprep.mubr.f32.mxu0 0.0
        %1403 = vmatmul.mubr.f32.gmra.mxu0 %v300
        %v1404 = vpop.f32.mrf.mxu0
        %v1405 = vadd.f32 %v1337, %v1404
        %v1406 = vpop.f32.mrf.mxu0
        %1407 = vdwg.mxu0
        %s1408 = scalar_lea.vmem %s2, 320
        %v1409 = vld [vmem:[%s1408] sm:$0xff]
        %v1410 = vld [vmem:[%s1408 + $0x8] sm:$0xff]
        %v1411 = vld [vmem:[%s1408 + $0x10] sm:$0xff]
        %v1412 = vld [vmem:[%s1408 + $0x18] sm:$0xff]
        %v1413 = vld [vmem:[%s6 + $0x11] sm:$0x1]
        %v1414 = vlaneseq
        %v1415 = vshrl.u32 %v1414, 7
        %v1416 = vsub.s32 0, %v1415
        %v1417 = vrot.slane %v1413, %v1416
        %1418 = vmatprep.subr.mxu0 0.0
        %1419 = vmatpush1.msra.mxu0 0.0
        %1420 = vmatprep.subr.mxu0 0.0
        %1421 = vmatpush1.msra.mxu0 0.0
        %1422 = vmatprep.subr.mxu0 0.0
        %1423 = vmatpush1.msra.mxu0 0.0
        %1424 = vmatprep.subr.mxu0 0.0
        %1425 = vmatpush1.msra.mxu0 0.0
        %1426 = vmatprep.subr.mxu0 0.0
        %1427 = vmatpush1.msra.mxu0 0.0
        %1428 = vmatprep.subr.mxu0 0.0
        %1429 = vmatpush1.msra.mxu0 0.0
        %1430 = vmatprep.subr.mxu0 0.0
        %1431 = vmatpush1.msra.mxu0 0.0
        %1432 = vmatprep.subr.mxu0 0.0
        %1433 = vmatpush1.msra.mxu0 0.0
        %1434 = vmatprep.subr.mxu0 0.0
        %1435 = vmatpush1.msra.mxu0 0.0
        %1436 = vmatprep.subr.mxu0 0.0
        %1437 = vmatpush1.msra.mxu0 0.0
        %1438 = vmatprep.subr.mxu0 0.0
        %1439 = vmatpush1.msra.mxu0 0.0
        %1440 = vmatprep.subr.mxu0 0.0
        %1441 = vmatpush1.msra.mxu0 0.0
        %1442 = vmatprep.subr.mxu0 0.0
        %1443 = vmatpush1.msra.mxu0 %v1412
        %1444 = vmatprep.subr.mxu0 0.0
        %1445 = vmatpush1.msra.mxu0 %v1411
        %1446 = vmatprep.subr.mxu0 0.0
        %1447 = vmatpush1.msra.mxu0 %v1410
        %1448 = vmatprep.subr.mxu0 0.0
        %1449 = vmatpush1.msra.mxu0 %v1409
        %1450 = vmatprep.subr.mxu0 0.0
        %1451 = vmatpush2.msra.mxu0 0.0
        %1452 = vmatprep.subr.mxu0 0.0
        %1453 = vmatpush2.msra.mxu0 0.0
        %1454 = vmatprep.subr.mxu0 0.0
        %1455 = vmatpush2.msra.mxu0 0.0
        %1456 = vmatprep.subr.mxu0 0.0
        %1457 = vmatpush2.msra.mxu0 0.0
        %1458 = vmatprep.subr.mxu0 0.0
        %1459 = vmatpush2.msra.mxu0 0.0
        %1460 = vmatprep.subr.mxu0 0.0
        %1461 = vmatpush2.msra.mxu0 0.0
        %1462 = vmatprep.subr.mxu0 0.0
        %1463 = vmatpush2.msra.mxu0 0.0
        %1464 = vmatprep.subr.mxu0 0.0
        %1465 = vmatpush2.msra.mxu0 0.0
        %1466 = vmatprep.subr.mxu0 0.0
        %1467 = vmatpush2.msra.mxu0 0.0
        %1468 = vmatprep.subr.mxu0 0.0
        %1469 = vmatpush2.msra.mxu0 0.0
        %1470 = vmatprep.subr.mxu0 0.0
        %1471 = vmatpush2.msra.mxu0 0.0
        %1472 = vmatprep.subr.mxu0 0.0
        %1473 = vmatpush2.msra.mxu0 0.0
        %1474 = vmatprep.subr.mxu0 0.0
        %1475 = vmatpush2.msra.mxu0 0.0
        %1476 = vmatprep.subr.mxu0 0.0
        %1477 = vmatpush2.msra.mxu0 0.0
        %1478 = vmatprep.subr.mxu0 0.0
        %1479 = vmatpush2.msra.mxu0 0.0
        %1480 = vmatprep.subr.mxu0 0.0
        %1481 = vmatpush2.msra.mxu0 0.0
        %1482 = vmatprep.mubr.f32.mxu0 0.0
        %1483 = vmatmul.mubr.f32.gmra.mxu0 %v300
        %v1484 = vpop.f32.mrf.mxu0
        %v1485 = vadd.f32 %v1417, %v1484
        %v1486 = vpop.f32.mrf.mxu0
        %1487 = vdwg.mxu0
        %v1489 = vsel %vm538, %v1325, 0
        %v1492 = vsel %vm538, %v1405, 0
        %1494 = vmatprep.subr.mxu0 0.0
        %1495 = vmatpush1.xpose.msra.mxu0 0.0
        %1496 = vmatprep.subr.mxu0 0.0
        %1497 = vmatpush1.xpose.msra.mxu0 0.0
        %1498 = vmatprep.subr.mxu0 0.0
        %1499 = vmatpush1.xpose.msra.mxu0 0.0
        %1500 = vmatprep.subr.mxu0 0.0
        %1501 = vmatpush1.xpose.msra.mxu0 0.0
        %1502 = vmatprep.subr.mxu0 0.0
        %1503 = vmatpush1.xpose.msra.mxu0 0.0
        %1504 = vmatprep.subr.mxu0 0.0
        %1505 = vmatpush1.xpose.msra.mxu0 0.0
        %1506 = vmatprep.subr.mxu0 0.0
        %1507 = vmatpush1.xpose.msra.mxu0 0.0
        %1508 = vmatprep.subr.mxu0 0.0
        %1509 = vmatpush1.xpose.msra.mxu0 0.0
        %1510 = vmatprep.subr.mxu0 0.0
        %1511 = vmatpush1.xpose.msra.mxu0 0.0
        %1512 = vmatprep.subr.mxu0 0.0
        %1513 = vmatpush1.xpose.msra.mxu0 0.0
        %1514 = vmatprep.subr.mxu0 0.0
        %1515 = vmatpush1.xpose.msra.mxu0 0.0
        %1516 = vmatprep.subr.mxu0 0.0
        %1517 = vmatpush1.xpose.msra.mxu0 0.0
        %1518 = vmatprep.subr.mxu0 0.0
        %1519 = vmatpush1.xpose.msra.mxu0 0.0
        %1520 = vmatprep.subr.mxu0 0.0
        %1521 = vmatpush1.xpose.msra.mxu0 0.0
        %1522 = vmatprep.subr.mxu0 0.0
        %1523 = vmatpush1.xpose.msra.mxu0 0.0
        %1524 = vmatprep.subr.mxu0 0.0
        %1525 = vmatpush1.xpose.msra.mxu0 %v1492
        %1526 = vmatprep.subr.mxu0 0.0
        %1527 = vmatpush2.xpose.msra.mxu0 0.0
        %1528 = vmatprep.subr.mxu0 0.0
        %1529 = vmatpush2.xpose.msra.mxu0 0.0
        %1530 = vmatprep.subr.mxu0 0.0
        %1531 = vmatpush2.xpose.msra.mxu0 0.0
        %1532 = vmatprep.subr.mxu0 0.0
        %1533 = vmatpush2.xpose.msra.mxu0 0.0
        %1534 = vmatprep.subr.mxu0 0.0
        %1535 = vmatpush2.xpose.msra.mxu0 0.0
        %1536 = vmatprep.subr.mxu0 0.0
        %1537 = vmatpush2.xpose.msra.mxu0 0.0
        %1538 = vmatprep.subr.mxu0 0.0
        %1539 = vmatpush2.xpose.msra.mxu0 0.0
        %1540 = vmatprep.subr.mxu0 0.0
        %1541 = vmatpush2.xpose.msra.mxu0 0.0
        %1542 = vmatprep.subr.mxu0 0.0
        %1543 = vmatpush2.xpose.msra.mxu0 0.0
        %1544 = vmatprep.subr.mxu0 0.0
        %1545 = vmatpush2.xpose.msra.mxu0 0.0
        %1546 = vmatprep.subr.mxu0 0.0
        %1547 = vmatpush2.xpose.msra.mxu0 0.0
        %1548 = vmatprep.subr.mxu0 0.0
        %1549 = vmatpush2.xpose.msra.mxu0 0.0
        %1550 = vmatprep.subr.mxu0 0.0
        %1551 = vmatpush2.xpose.msra.mxu0 0.0
        %1552 = vmatprep.subr.mxu0 0.0
        %1553 = vmatpush2.xpose.msra.mxu0 0.0
        %1554 = vmatprep.subr.mxu0 0.0
        %1555 = vmatpush2.xpose.msra.mxu0 0.0
        %1556 = vmatprep.subr.mxu0 0.0
        %1557 = vmatpush2.xpose.msra.mxu0 0.0
        %1558 = vmatprep.mubr.f32.mxu0 0.0
        %1559 = vmatmul.mubr.f32.gmra.mxu0 %v1489
        %v1560 = vpop.f32.mrf.mxu0
        %v1561 = vadd.f32 %v536, %v1560
        %v1562 = vpop.f32.mrf.mxu0
        %1563 = vdwg.mxu0
        %v1564 = vsel %vm538, %v1561, -inf
        %1565 = vmax.xlane.f32.xlu0 %v1564
        %v1566 = vpop.xlane.xlu0 %1565
        %v1567 = vsub.f32 %v1561, %v1566
        %v1568 = vmul.f32 %v1567, 1.442695
        %v1569 = vpow.pop %v1568
        %v1570 = vsel %vm538, %v1569, 0.0
        %1571 = vadd.xlane.f32.xlu0 %v1570
        %v1572 = vpop.xlane.xlu0 %1571
        %v1573 = vrcp.pop %v1572
        %v1574 = vmul.f32 %v1569, %v1573
        %v1576 = vsel %vm538, %v1574, 0
        %1578 = vmatprep.subr.mxu0 0.0
        %1579 = vmatpush1.msra.mxu0 0.0
        %1580 = vmatprep.subr.mxu0 0.0
        %1581 = vmatpush1.msra.mxu0 0.0
        %1582 = vmatprep.subr.mxu0 0.0
        %1583 = vmatpush1.msra.mxu0 0.0
        %1584 = vmatprep.subr.mxu0 0.0
        %1585 = vmatpush1.msra.mxu0 0.0
        %1586 = vmatprep.subr.mxu0 0.0
        %1587 = vmatpush1.msra.mxu0 0.0
        %1588 = vmatprep.subr.mxu0 0.0
        %1589 = vmatpush1.msra.mxu0 0.0
        %1590 = vmatprep.subr.mxu0 0.0
        %1591 = vmatpush1.msra.mxu0 0.0
        %1592 = vmatprep.subr.mxu0 0.0
        %1593 = vmatpush1.msra.mxu0 0.0
        %1594 = vmatprep.subr.mxu0 0.0
        %1595 = vmatpush1.msra.mxu0 0.0
        %1596 = vmatprep.subr.mxu0 0.0
        %1597 = vmatpush1.msra.mxu0 0.0
        %1598 = vmatprep.subr.mxu0 0.0
        %1599 = vmatpush1.msra.mxu0 0.0
        %1600 = vmatprep.subr.mxu0 0.0
        %1601 = vmatpush1.msra.mxu0 0.0
        %1602 = vmatprep.subr.mxu0 0.0
        %1603 = vmatpush1.msra.mxu0 0.0
        %1604 = vmatprep.subr.mxu0 0.0
        %1605 = vmatpush1.msra.mxu0 0.0
        %1606 = vmatprep.subr.mxu0 0.0
        %1607 = vmatpush1.msra.mxu0 0.0
        %1608 = vmatprep.subr.mxu0 0.0
        %1609 = vmatpush1.msra.mxu0 %v1485
        %1610 = vmatprep.subr.mxu0 0.0
        %1611 = vmatpush2.msra.mxu0 0.0
        %1612 = vmatprep.subr.mxu0 0.0
        %1613 = vmatpush2.msra.mxu0 0.0
        %1614 = vmatprep.subr.mxu0 0.0
        %1615 = vmatpush2.msra.mxu0 0.0
        %1616 = vmatprep.subr.mxu0 0.0
        %1617 = vmatpush2.msra.mxu0 0.0
        %1618 = vmatprep.subr.mxu0 0.0
        %1619 = vmatpush2.msra.mxu0 0.0
        %1620 = vmatprep.subr.mxu0 0.0
        %1621 = vmatpush2.msra.mxu0 0.0
        %1622 = vmatprep.subr.mxu0 0.0
        %1623 = vmatpush2.msra.mxu0 0.0
        %1624 = vmatprep.subr.mxu0 0.0
        %1625 = vmatpush2.msra.mxu0 0.0
        %1626 = vmatprep.subr.mxu0 0.0
        %1627 = vmatpush2.msra.mxu0 0.0
        %1628 = vmatprep.subr.mxu0 0.0
        %1629 = vmatpush2.msra.mxu0 0.0
        %1630 = vmatprep.subr.mxu0 0.0
        %1631 = vmatpush2.msra.mxu0 0.0
        %1632 = vmatprep.subr.mxu0 0.0
        %1633 = vmatpush2.msra.mxu0 0.0
        %1634 = vmatprep.subr.mxu0 0.0
        %1635 = vmatpush2.msra.mxu0 0.0
        %1636 = vmatprep.subr.mxu0 0.0
        %1637 = vmatpush2.msra.mxu0 0.0
        %1638 = vmatprep.subr.mxu0 0.0
        %1639 = vmatpush2.msra.mxu0 0.0
        %1640 = vmatprep.subr.mxu0 0.0
        %1641 = vmatpush2.msra.mxu0 0.0
        %1642 = vmatprep.mubr.f32.mxu0 0.0
        %1643 = vmatmul.mubr.f32.gmra.mxu0 %v1576
        %v1644 = vpop.f32.mrf.mxu0
        %v1645 = vadd.f32 0.0, %v1644
        %v1646 = vpop.f32.mrf.mxu0
        %1647 = vdwg.mxu0
        %s1648 = scalar_lea.vmem %s3, 16
        %v1649 = vld [vmem:[%s1648] sm:$0xff]
        %v1651 = vsel %vm538, %v1645, 0
        %1653 = vmatprep.subr.mxu0 0.0
        %1654 = vmatpush1.msra.mxu0 0.0
        %1655 = vmatprep.subr.mxu0 0.0
        %1656 = vmatpush1.msra.mxu0 0.0
        %1657 = vmatprep.subr.mxu0 0.0
        %1658 = vmatpush1.msra.mxu0 0.0
        %1659 = vmatprep.subr.mxu0 0.0
        %1660 = vmatpush1.msra.mxu0 0.0
        %1661 = vmatprep.subr.mxu0 0.0
        %1662 = vmatpush1.msra.mxu0 0.0
        %1663 = vmatprep.subr.mxu0 0.0
        %1664 = vmatpush1.msra.mxu0 0.0
        %1665 = vmatprep.subr.mxu0 0.0
        %1666 = vmatpush1.msra.mxu0 0.0
        %1667 = vmatprep.subr.mxu0 0.0
        %1668 = vmatpush1.msra.mxu0 0.0
        %1669 = vmatprep.subr.mxu0 0.0
        %1670 = vmatpush1.msra.mxu0 0.0
        %1671 = vmatprep.subr.mxu0 0.0
        %1672 = vmatpush1.msra.mxu0 0.0
        %1673 = vmatprep.subr.mxu0 0.0
        %1674 = vmatpush1.msra.mxu0 0.0
        %1675 = vmatprep.subr.mxu0 0.0
        %1676 = vmatpush1.msra.mxu0 0.0
        %1677 = vmatprep.subr.mxu0 0.0
        %1678 = vmatpush1.msra.mxu0 0.0
        %1679 = vmatprep.subr.mxu0 0.0
        %1680 = vmatpush1.msra.mxu0 0.0
        %1681 = vmatprep.subr.mxu0 0.0
        %1682 = vmatpush1.msra.mxu0 0.0
        %1683 = vmatprep.subr.mxu0 0.0
        %1684 = vmatpush1.msra.mxu0 %v1649
        %1685 = vmatprep.subr.mxu0 0.0
        %1686 = vmatpush2.msra.mxu0 0.0
        %1687 = vmatprep.subr.mxu0 0.0
        %1688 = vmatpush2.msra.mxu0 0.0
        %1689 = vmatprep.subr.mxu0 0.0
        %1690 = vmatpush2.msra.mxu0 0.0
        %1691 = vmatprep.subr.mxu0 0.0
        %1692 = vmatpush2.msra.mxu0 0.0
        %1693 = vmatprep.subr.mxu0 0.0
        %1694 = vmatpush2.msra.mxu0 0.0
        %1695 = vmatprep.subr.mxu0 0.0
        %1696 = vmatpush2.msra.mxu0 0.0
        %1697 = vmatprep.subr.mxu0 0.0
        %1698 = vmatpush2.msra.mxu0 0.0
        %1699 = vmatprep.subr.mxu0 0.0
        %1700 = vmatpush2.msra.mxu0 0.0
        %1701 = vmatprep.subr.mxu0 0.0
        %1702 = vmatpush2.msra.mxu0 0.0
        %1703 = vmatprep.subr.mxu0 0.0
        %1704 = vmatpush2.msra.mxu0 0.0
        %1705 = vmatprep.subr.mxu0 0.0
        %1706 = vmatpush2.msra.mxu0 0.0
        %1707 = vmatprep.subr.mxu0 0.0
        %1708 = vmatpush2.msra.mxu0 0.0
        %1709 = vmatprep.subr.mxu0 0.0
        %1710 = vmatpush2.msra.mxu0 0.0
        %1711 = vmatprep.subr.mxu0 0.0
        %1712 = vmatpush2.msra.mxu0 0.0
        %1713 = vmatprep.subr.mxu0 0.0
        %1714 = vmatpush2.msra.mxu0 0.0
        %1715 = vmatprep.subr.mxu0 0.0
        %1716 = vmatpush2.msra.mxu0 0.0
        %1717 = vmatprep.mubr.f32.mxu0 0.0
        %1718 = vmatmul.mubr.f32.gmra.mxu0 %v1651
        %v1719 = vpop.f32.mrf.mxu0
        %v1720 = vadd.f32 0.0, %v1719
        %v1721 = vpop.f32.mrf.mxu0
        %1722 = vdwg.mxu0
        %v1723 = vadd.f32 %v1245, %v1720
        %s1724 = scalar_lea.vmem %s2, 96
        %v1725 = vld [vmem:[%s1724] sm:$0xff]
        %v1726 = vld [vmem:[%s1724 + $0x8] sm:$0xff]
        %v1727 = vld [vmem:[%s1724 + $0x10] sm:$0xff]
        %v1728 = vld [vmem:[%s1724 + $0x18] sm:$0xff]
        %v1729 = vld [vmem:[%s6 + $0xa] sm:$0x1]
        %v1730 = vlaneseq
        %v1731 = vshrl.u32 %v1730, 7
        %v1732 = vsub.s32 0, %v1731
        %v1733 = vrot.slane %v1729, %v1732
        %1734 = vmatprep.subr.mxu0 0.0
        %1735 = vmatpush1.msra.mxu0 0.0
        %1736 = vmatprep.subr.mxu0 0.0
        %1737 = vmatpush1.msra.mxu0 0.0
        %1738 = vmatprep.subr.mxu0 0.0
        %1739 = vmatpush1.msra.mxu0 0.0
        %1740 = vmatprep.subr.mxu0 0.0
        %1741 = vmatpush1.msra.mxu0 0.0
        %1742 = vmatprep.subr.mxu0 0.0
        %1743 = vmatpush1.msra.mxu0 0.0
        %1744 = vmatprep.subr.mxu0 0.0
        %1745 = vmatpush1.msra.mxu0 0.0
        %1746 = vmatprep.subr.mxu0 0.0
        %1747 = vmatpush1.msra.mxu0 0.0
        %1748 = vmatprep.subr.mxu0 0.0
        %1749 = vmatpush1.msra.mxu0 0.0
        %1750 = vmatprep.subr.mxu0 0.0
        %1751 = vmatpush1.msra.mxu0 0.0
        %1752 = vmatprep.subr.mxu0 0.0
        %1753 = vmatpush1.msra.mxu0 0.0
        %1754 = vmatprep.subr.mxu0 0.0
        %1755 = vmatpush1.msra.mxu0 0.0
        %1756 = vmatprep.subr.mxu0 0.0
        %1757 = vmatpush1.msra.mxu0 0.0
        %1758 = vmatprep.subr.mxu0 0.0
        %1759 = vmatpush1.msra.mxu0 %v1728
        %1760 = vmatprep.subr.mxu0 0.0
        %1761 = vmatpush1.msra.mxu0 %v1727
        %1762 = vmatprep.subr.mxu0 0.0
        %1763 = vmatpush1.msra.mxu0 %v1726
        %1764 = vmatprep.subr.mxu0 0.0
        %1765 = vmatpush1.msra.mxu0 %v1725
        %1766 = vmatprep.subr.mxu0 0.0
        %1767 = vmatpush2.msra.mxu0 0.0
        %1768 = vmatprep.subr.mxu0 0.0
        %1769 = vmatpush2.msra.mxu0 0.0
        %1770 = vmatprep.subr.mxu0 0.0
        %1771 = vmatpush2.msra.mxu0 0.0
        %1772 = vmatprep.subr.mxu0 0.0
        %1773 = vmatpush2.msra.mxu0 0.0
        %1774 = vmatprep.subr.mxu0 0.0
        %1775 = vmatpush2.msra.mxu0 0.0
        %1776 = vmatprep.subr.mxu0 0.0
        %1777 = vmatpush2.msra.mxu0 0.0
        %1778 = vmatprep.subr.mxu0 0.0
        %1779 = vmatpush2.msra.mxu0 0.0
        %1780 = vmatprep.subr.mxu0 0.0
        %1781 = vmatpush2.msra.mxu0 0.0
        %1782 = vmatprep.subr.mxu0 0.0
        %1783 = vmatpush2.msra.mxu0 0.0
        %1784 = vmatprep.subr.mxu0 0.0
        %1785 = vmatpush2.msra.mxu0 0.0
        %1786 = vmatprep.subr.mxu0 0.0
        %1787 = vmatpush2.msra.mxu0 0.0
        %1788 = vmatprep.subr.mxu0 0.0
        %1789 = vmatpush2.msra.mxu0 0.0
        %1790 = vmatprep.subr.mxu0 0.0
        %1791 = vmatpush2.msra.mxu0 0.0
        %1792 = vmatprep.subr.mxu0 0.0
        %1793 = vmatpush2.msra.mxu0 0.0
        %1794 = vmatprep.subr.mxu0 0.0
        %1795 = vmatpush2.msra.mxu0 0.0
        %1796 = vmatprep.subr.mxu0 0.0
        %1797 = vmatpush2.msra.mxu0 0.0
        %1798 = vmatprep.mubr.f32.mxu0 0.0
        %1799 = vmatmul.mubr.f32.gmra.mxu0 %v300
        %v1800 = vpop.f32.mrf.mxu0
        %v1801 = vadd.f32 %v1733, %v1800
        %v1802 = vpop.f32.mrf.mxu0
        %1803 = vdwg.mxu0
        %s1804 = scalar_lea.vmem %s2, 224
        %v1805 = vld [vmem:[%s1804] sm:$0xff]
        %v1806 = vld [vmem:[%s1804 + $0x8] sm:$0xff]
        %v1807 = vld [vmem:[%s1804 + $0x10] sm:$0xff]
        %v1808 = vld [vmem:[%s1804 + $0x18] sm:$0xff]
        %v1809 = vld [vmem:[%s6 + $0xe] sm:$0x1]
        %v1810 = vlaneseq
        %v1811 = vshrl.u32 %v1810, 7
        %v1812 = vsub.s32 0, %v1811
        %v1813 = vrot.slane %v1809, %v1812
        %1814 = vmatprep.subr.mxu0 0.0
        %1815 = vmatpush1.msra.mxu0 0.0
        %1816 = vmatprep.subr.mxu0 0.0
        %1817 = vmatpush1.msra.mxu0 0.0
        %1818 = vmatprep.subr.mxu0 0.0
        %1819 = vmatpush1.msra.mxu0 0.0
        %1820 = vmatprep.subr.mxu0 0.0
        %1821 = vmatpush1.msra.mxu0 0.0
        %1822 = vmatprep.subr.mxu0 0.0
        %1823 = vmatpush1.msra.mxu0 0.0
        %1824 = vmatprep.subr.mxu0 0.0
        %1825 = vmatpush1.msra.mxu0 0.0
        %1826 = vmatprep.subr.mxu0 0.0
        %1827 = vmatpush1.msra.mxu0 0.0
        %1828 = vmatprep.subr.mxu0 0.0
        %1829 = vmatpush1.msra.mxu0 0.0
        %1830 = vmatprep.subr.mxu0 0.0
        %1831 = vmatpush1.msra.mxu0 0.0
        %1832 = vmatprep.subr.mxu0 0.0
        %1833 = vmatpush1.msra.mxu0 0.0
        %1834 = vmatprep.subr.mxu0 0.0
        %1835 = vmatpush1.msra.mxu0 0.0
        %1836 = vmatprep.subr.mxu0 0.0
        %1837 = vmatpush1.msra.mxu0 0.0
        %1838 = vmatprep.subr.mxu0 0.0
        %1839 = vmatpush1.msra.mxu0 %v1808
        %1840 = vmatprep.subr.mxu0 0.0
        %1841 = vmatpush1.msra.mxu0 %v1807
        %1842 = vmatprep.subr.mxu0 0.0
        %1843 = vmatpush1.msra.mxu0 %v1806
        %1844 = vmatprep.subr.mxu0 0.0
        %1845 = vmatpush1.msra.mxu0 %v1805
        %1846 = vmatprep.subr.mxu0 0.0
        %1847 = vmatpush2.msra.mxu0 0.0
        %1848 = vmatprep.subr.mxu0 0.0
        %1849 = vmatpush2.msra.mxu0 0.0
        %1850 = vmatprep.subr.mxu0 0.0
        %1851 = vmatpush2.msra.mxu0 0.0
        %1852 = vmatprep.subr.mxu0 0.0
        %1853 = vmatpush2.msra.mxu0 0.0
        %1854 = vmatprep.subr.mxu0 0.0
        %1855 = vmatpush2.msra.mxu0 0.0
        %1856 = vmatprep.subr.mxu0 0.0
        %1857 = vmatpush2.msra.mxu0 0.0
        %1858 = vmatprep.subr.mxu0 0.0
        %1859 = vmatpush2.msra.mxu0 0.0
        %1860 = vmatprep.subr.mxu0 0.0
        %1861 = vmatpush2.msra.mxu0 0.0
        %1862 = vmatprep.subr.mxu0 0.0
        %1863 = vmatpush2.msra.mxu0 0.0
        %1864 = vmatprep.subr.mxu0 0.0
        %1865 = vmatpush2.msra.mxu0 0.0
        %1866 = vmatprep.subr.mxu0 0.0
        %1867 = vmatpush2.msra.mxu0 0.0
        %1868 = vmatprep.subr.mxu0 0.0
        %1869 = vmatpush2.msra.mxu0 0.0
        %1870 = vmatprep.subr.mxu0 0.0
        %1871 = vmatpush2.msra.mxu0 0.0
        %1872 = vmatprep.subr.mxu0 0.0
        %1873 = vmatpush2.msra.mxu0 0.0
        %1874 = vmatprep.subr.mxu0 0.0
        %1875 = vmatpush2.msra.mxu0 0.0
        %1876 = vmatprep.subr.mxu0 0.0
        %1877 = vmatpush2.msra.mxu0 0.0
        %1878 = vmatprep.mubr.f32.mxu0 0.0
        %1879 = vmatmul.mubr.f32.gmra.mxu0 %v300
        %v1880 = vpop.f32.mrf.mxu0
        %v1881 = vadd.f32 %v1813, %v1880
        %v1882 = vpop.f32.mrf.mxu0
        %1883 = vdwg.mxu0
        %s1884 = scalar_lea.vmem %s2, 352
        %v1885 = vld [vmem:[%s1884] sm:$0xff]
        %v1886 = vld [vmem:[%s1884 + $0x8] sm:$0xff]
        %v1887 = vld [vmem:[%s1884 + $0x10] sm:$0xff]
        %v1888 = vld [vmem:[%s1884 + $0x18] sm:$0xff]
        %v1889 = vld [vmem:[%s6 + $0x12] sm:$0x1]
        %v1890 = vlaneseq
        %v1891 = vshrl.u32 %v1890, 7
        %v1892 = vsub.s32 0, %v1891
        %v1893 = vrot.slane %v1889, %v1892
        %1894 = vmatprep.subr.mxu0 0.0
        %1895 = vmatpush1.msra.mxu0 0.0
        %1896 = vmatprep.subr.mxu0 0.0
        %1897 = vmatpush1.msra.mxu0 0.0
        %1898 = vmatprep.subr.mxu0 0.0
        %1899 = vmatpush1.msra.mxu0 0.0
        %1900 = vmatprep.subr.mxu0 0.0
        %1901 = vmatpush1.msra.mxu0 0.0
        %1902 = vmatprep.subr.mxu0 0.0
        %1903 = vmatpush1.msra.mxu0 0.0
        %1904 = vmatprep.subr.mxu0 0.0
        %1905 = vmatpush1.msra.mxu0 0.0
        %1906 = vmatprep.subr.mxu0 0.0
        %1907 = vmatpush1.msra.mxu0 0.0
        %1908 = vmatprep.subr.mxu0 0.0
        %1909 = vmatpush1.msra.mxu0 0.0
        %1910 = vmatprep.subr.mxu0 0.0
        %1911 = vmatpush1.msra.mxu0 0.0
        %1912 = vmatprep.subr.mxu0 0.0
        %1913 = vmatpush1.msra.mxu0 0.0
        %1914 = vmatprep.subr.mxu0 0.0
        %1915 = vmatpush1.msra.mxu0 0.0
        %1916 = vmatprep.subr.mxu0 0.0
        %1917 = vmatpush1.msra.mxu0 0.0
        %1918 = vmatprep.subr.mxu0 0.0
        %1919 = vmatpush1.msra.mxu0 %v1888
        %1920 = vmatprep.subr.mxu0 0.0
        %1921 = vmatpush1.msra.mxu0 %v1887
        %1922 = vmatprep.subr.mxu0 0.0
        %1923 = vmatpush1.msra.mxu0 %v1886
        %1924 = vmatprep.subr.mxu0 0.0
        %1925 = vmatpush1.msra.mxu0 %v1885
        %1926 = vmatprep.subr.mxu0 0.0
        %1927 = vmatpush2.msra.mxu0 0.0
        %1928 = vmatprep.subr.mxu0 0.0
        %1929 = vmatpush2.msra.mxu0 0.0
        %1930 = vmatprep.subr.mxu0 0.0
        %1931 = vmatpush2.msra.mxu0 0.0
        %1932 = vmatprep.subr.mxu0 0.0
        %1933 = vmatpush2.msra.mxu0 0.0
        %1934 = vmatprep.subr.mxu0 0.0
        %1935 = vmatpush2.msra.mxu0 0.0
        %1936 = vmatprep.subr.mxu0 0.0
        %1937 = vmatpush2.msra.mxu0 0.0
        %1938 = vmatprep.subr.mxu0 0.0
        %1939 = vmatpush2.msra.mxu0 0.0
        %1940 = vmatprep.subr.mxu0 0.0
        %1941 = vmatpush2.msra.mxu0 0.0
        %1942 = vmatprep.subr.mxu0 0.0
        %1943 = vmatpush2.msra.mxu0 0.0
        %1944 = vmatprep.subr.mxu0 0.0
        %1945 = vmatpush2.msra.mxu0 0.0
        %1946 = vmatprep.subr.mxu0 0.0
        %1947 = vmatpush2.msra.mxu0 0.0
        %1948 = vmatprep.subr.mxu0 0.0
        %1949 = vmatpush2.msra.mxu0 0.0
        %1950 = vmatprep.subr.mxu0 0.0
        %1951 = vmatpush2.msra.mxu0 0.0
        %1952 = vmatprep.subr.mxu0 0.0
        %1953 = vmatpush2.msra.mxu0 0.0
        %1954 = vmatprep.subr.mxu0 0.0
        %1955 = vmatpush2.msra.mxu0 0.0
        %1956 = vmatprep.subr.mxu0 0.0
        %1957 = vmatpush2.msra.mxu0 0.0
        %1958 = vmatprep.mubr.f32.mxu0 0.0
        %1959 = vmatmul.mubr.f32.gmra.mxu0 %v300
        %v1960 = vpop.f32.mrf.mxu0
        %v1961 = vadd.f32 %v1893, %v1960
        %v1962 = vpop.f32.mrf.mxu0
        %1963 = vdwg.mxu0
        %v1965 = vsel %vm538, %v1801, 0
        %v1968 = vsel %vm538, %v1881, 0
        %1970 = vmatprep.subr.mxu0 0.0
        %1971 = vmatpush1.xpose.msra.mxu0 0.0
        %1972 = vmatprep.subr.mxu0 0.0
        %1973 = vmatpush1.xpose.msra.mxu0 0.0
        %1974 = vmatprep.subr.mxu0 0.0
        %1975 = vmatpush1.xpose.msra.mxu0 0.0
        %1976 = vmatprep.subr.mxu0 0.0
        %1977 = vmatpush1.xpose.msra.mxu0 0.0
        %1978 = vmatprep.subr.mxu0 0.0
        %1979 = vmatpush1.xpose.msra.mxu0 0.0
        %1980 = vmatprep.subr.mxu0 0.0
        %1981 = vmatpush1.xpose.msra.mxu0 0.0
        %1982 = vmatprep.subr.mxu0 0.0
        %1983 = vmatpush1.xpose.msra.mxu0 0.0
        %1984 = vmatprep.subr.mxu0 0.0
        %1985 = vmatpush1.xpose.msra.mxu0 0.0
        %1986 = vmatprep.subr.mxu0 0.0
        %1987 = vmatpush1.xpose.msra.mxu0 0.0
        %1988 = vmatprep.subr.mxu0 0.0
        %1989 = vmatpush1.xpose.msra.mxu0 0.0
        %1990 = vmatprep.subr.mxu0 0.0
        %1991 = vmatpush1.xpose.msra.mxu0 0.0
        %1992 = vmatprep.subr.mxu0 0.0
        %1993 = vmatpush1.xpose.msra.mxu0 0.0
        %1994 = vmatprep.subr.mxu0 0.0
        %1995 = vmatpush1.xpose.msra.mxu0 0.0
        %1996 = vmatprep.subr.mxu0 0.0
        %1997 = vmatpush1.xpose.msra.mxu0 0.0
        %1998 = vmatprep.subr.mxu0 0.0
        %1999 = vmatpush1.xpose.msra.mxu0 0.0
        %2000 = vmatprep.subr.mxu0 0.0
        %2001 = vmatpush1.xpose.msra.mxu0 %v1968
        %2002 = vmatprep.subr.mxu0 0.0
        %2003 = vmatpush2.xpose.msra.mxu0 0.0
        %2004 = vmatprep.subr.mxu0 0.0
        %2005 = vmatpush2.xpose.msra.mxu0 0.0
        %2006 = vmatprep.subr.mxu0 0.0
        %2007 = vmatpush2.xpose.msra.mxu0 0.0
        %2008 = vmatprep.subr.mxu0 0.0
        %2009 = vmatpush2.xpose.msra.mxu0 0.0
        %2010 = vmatprep.subr.mxu0 0.0
        %2011 = vmatpush2.xpose.msra.mxu0 0.0
        %2012 = vmatprep.subr.mxu0 0.0
        %2013 = vmatpush2.xpose.msra.mxu0 0.0
        %2014 = vmatprep.subr.mxu0 0.0
        %2015 = vmatpush2.xpose.msra.mxu0 0.0
        %2016 = vmatprep.subr.mxu0 0.0
        %2017 = vmatpush2.xpose.msra.mxu0 0.0
        %2018 = vmatprep.subr.mxu0 0.0
        %2019 = vmatpush2.xpose.msra.mxu0 0.0
        %2020 = vmatprep.subr.mxu0 0.0
        %2021 = vmatpush2.xpose.msra.mxu0 0.0
        %2022 = vmatprep.subr.mxu0 0.0
        %2023 = vmatpush2.xpose.msra.mxu0 0.0
        %2024 = vmatprep.subr.mxu0 0.0
        %2025 = vmatpush2.xpose.msra.mxu0 0.0
        %2026 = vmatprep.subr.mxu0 0.0
        %2027 = vmatpush2.xpose.msra.mxu0 0.0
        %2028 = vmatprep.subr.mxu0 0.0
        %2029 = vmatpush2.xpose.msra.mxu0 0.0
        %2030 = vmatprep.subr.mxu0 0.0
        %2031 = vmatpush2.xpose.msra.mxu0 0.0
        %2032 = vmatprep.subr.mxu0 0.0
        %2033 = vmatpush2.xpose.msra.mxu0 0.0
        %2034 = vmatprep.mubr.f32.mxu0 0.0
        %2035 = vmatmul.mubr.f32.gmra.mxu0 %v1965
        %v2036 = vpop.f32.mrf.mxu0
        %v2037 = vadd.f32 %v536, %v2036
        %v2038 = vpop.f32.mrf.mxu0
        %2039 = vdwg.mxu0
        %v2040 = vsel %vm538, %v2037, -inf
        %2041 = vmax.xlane.f32.xlu0 %v2040
        %v2042 = vpop.xlane.xlu0 %2041
        %v2043 = vsub.f32 %v2037, %v2042
        %v2044 = vmul.f32 %v2043, 1.442695
        %v2045 = vpow.pop %v2044
        %v2046 = vsel %vm538, %v2045, 0.0
        %2047 = vadd.xlane.f32.xlu0 %v2046
        %v2048 = vpop.xlane.xlu0 %2047
        %v2049 = vrcp.pop %v2048
        %v2050 = vmul.f32 %v2045, %v2049
        %v2052 = vsel %vm538, %v2050, 0
        %2054 = vmatprep.subr.mxu0 0.0
        %2055 = vmatpush1.msra.mxu0 0.0
        %2056 = vmatprep.subr.mxu0 0.0
        %2057 = vmatpush1.msra.mxu0 0.0
        %2058 = vmatprep.subr.mxu0 0.0
        %2059 = vmatpush1.msra.mxu0 0.0
        %2060 = vmatprep.subr.mxu0 0.0
        %2061 = vmatpush1.msra.mxu0 0.0
        %2062 = vmatprep.subr.mxu0 0.0
        %2063 = vmatpush1.msra.mxu0 0.0
        %2064 = vmatprep.subr.mxu0 0.0
        %2065 = vmatpush1.msra.mxu0 0.0
        %2066 = vmatprep.subr.mxu0 0.0
        %2067 = vmatpush1.msra.mxu0 0.0
        %2068 = vmatprep.subr.mxu0 0.0
        %2069 = vmatpush1.msra.mxu0 0.0
        %2070 = vmatprep.subr.mxu0 0.0
        %2071 = vmatpush1.msra.mxu0 0.0
        %2072 = vmatprep.subr.mxu0 0.0
        %2073 = vmatpush1.msra.mxu0 0.0
        %2074 = vmatprep.subr.mxu0 0.0
        %2075 = vmatpush1.msra.mxu0 0.0
        %2076 = vmatprep.subr.mxu0 0.0
        %2077 = vmatpush1.msra.mxu0 0.0
        %2078 = vmatprep.subr.mxu0 0.0
        %2079 = vmatpush1.msra.mxu0 0.0
        %2080 = vmatprep.subr.mxu0 0.0
        %2081 = vmatpush1.msra.mxu0 0.0
        %2082 = vmatprep.subr.mxu0 0.0
        %2083 = vmatpush1.msra.mxu0 0.0
        %2084 = vmatprep.subr.mxu0 0.0
        %2085 = vmatpush1.msra.mxu0 %v1961
        %2086 = vmatprep.subr.mxu0 0.0
        %2087 = vmatpush2.msra.mxu0 0.0
        %2088 = vmatprep.subr.mxu0 0.0
        %2089 = vmatpush2.msra.mxu0 0.0
        %2090 = vmatprep.subr.mxu0 0.0
        %2091 = vmatpush2.msra.mxu0 0.0
        %2092 = vmatprep.subr.mxu0 0.0
        %2093 = vmatpush2.msra.mxu0 0.0
        %2094 = vmatprep.subr.mxu0 0.0
        %2095 = vmatpush2.msra.mxu0 0.0
        %2096 = vmatprep.subr.mxu0 0.0
        %2097 = vmatpush2.msra.mxu0 0.0
        %2098 = vmatprep.subr.mxu0 0.0
        %2099 = vmatpush2.msra.mxu0 0.0
        %2100 = vmatprep.subr.mxu0 0.0
        %2101 = vmatpush2.msra.mxu0 0.0
        %2102 = vmatprep.subr.mxu0 0.0
        %2103 = vmatpush2.msra.mxu0 0.0
        %2104 = vmatprep.subr.mxu0 0.0
        %2105 = vmatpush2.msra.mxu0 0.0
        %2106 = vmatprep.subr.mxu0 0.0
        %2107 = vmatpush2.msra.mxu0 0.0
        %2108 = vmatprep.subr.mxu0 0.0
        %2109 = vmatpush2.msra.mxu0 0.0
        %2110 = vmatprep.subr.mxu0 0.0
        %2111 = vmatpush2.msra.mxu0 0.0
        %2112 = vmatprep.subr.mxu0 0.0
        %2113 = vmatpush2.msra.mxu0 0.0
        %2114 = vmatprep.subr.mxu0 0.0
        %2115 = vmatpush2.msra.mxu0 0.0
        %2116 = vmatprep.subr.mxu0 0.0
        %2117 = vmatpush2.msra.mxu0 0.0
        %2118 = vmatprep.mubr.f32.mxu0 0.0
        %2119 = vmatmul.mubr.f32.gmra.mxu0 %v2052
        %v2120 = vpop.f32.mrf.mxu0
        %v2121 = vadd.f32 0.0, %v2120
        %v2122 = vpop.f32.mrf.mxu0
        %2123 = vdwg.mxu0
        %s2124 = scalar_lea.vmem %s3, 24
        %v2125 = vld [vmem:[%s2124] sm:$0xff]
        %v2127 = vsel %vm538, %v2121, 0
        %2129 = vmatprep.subr.mxu0 0.0
        %2130 = vmatpush1.msra.mxu0 0.0
        %2131 = vmatprep.subr.mxu0 0.0
        %2132 = vmatpush1.msra.mxu0 0.0
        %2133 = vmatprep.subr.mxu0 0.0
        %2134 = vmatpush1.msra.mxu0 0.0
        %2135 = vmatprep.subr.mxu0 0.0
        %2136 = vmatpush1.msra.mxu0 0.0
        %2137 = vmatprep.subr.mxu0 0.0
        %2138 = vmatpush1.msra.mxu0 0.0
        %2139 = vmatprep.subr.mxu0 0.0
        %2140 = vmatpush1.msra.mxu0 0.0
        %2141 = vmatprep.subr.mxu0 0.0
        %2142 = vmatpush1.msra.mxu0 0.0
        %2143 = vmatprep.subr.mxu0 0.0
        %2144 = vmatpush1.msra.mxu0 0.0
        %2145 = vmatprep.subr.mxu0 0.0
        %2146 = vmatpush1.msra.mxu0 0.0
        %2147 = vmatprep.subr.mxu0 0.0
        %2148 = vmatpush1.msra.mxu0 0.0
        %2149 = vmatprep.subr.mxu0 0.0
        %2150 = vmatpush1.msra.mxu0 0.0
        %2151 = vmatprep.subr.mxu0 0.0
        %2152 = vmatpush1.msra.mxu0 0.0
        %2153 = vmatprep.subr.mxu0 0.0
        %2154 = vmatpush1.msra.mxu0 0.0
        %2155 = vmatprep.subr.mxu0 0.0
        %2156 = vmatpush1.msra.mxu0 0.0
        %2157 = vmatprep.subr.mxu0 0.0
        %2158 = vmatpush1.msra.mxu0 0.0
        %2159 = vmatprep.subr.mxu0 0.0
        %2160 = vmatpush1.msra.mxu0 %v2125
        %2161 = vmatprep.subr.mxu0 0.0
        %2162 = vmatpush2.msra.mxu0 0.0
        %2163 = vmatprep.subr.mxu0 0.0
        %2164 = vmatpush2.msra.mxu0 0.0
        %2165 = vmatprep.subr.mxu0 0.0
        %2166 = vmatpush2.msra.mxu0 0.0
        %2167 = vmatprep.subr.mxu0 0.0
        %2168 = vmatpush2.msra.mxu0 0.0
        %2169 = vmatprep.subr.mxu0 0.0
        %2170 = vmatpush2.msra.mxu0 0.0
        %2171 = vmatprep.subr.mxu0 0.0
        %2172 = vmatpush2.msra.mxu0 0.0
        %2173 = vmatprep.subr.mxu0 0.0
        %2174 = vmatpush2.msra.mxu0 0.0
        %2175 = vmatprep.subr.mxu0 0.0
        %2176 = vmatpush2.msra.mxu0 0.0
        %2177 = vmatprep.subr.mxu0 0.0
        %2178 = vmatpush2.msra.mxu0 0.0
        %2179 = vmatprep.subr.mxu0 0.0
        %2180 = vmatpush2.msra.mxu0 0.0
        %2181 = vmatprep.subr.mxu0 0.0
        %2182 = vmatpush2.msra.mxu0 0.0
        %2183 = vmatprep.subr.mxu0 0.0
        %2184 = vmatpush2.msra.mxu0 0.0
        %2185 = vmatprep.subr.mxu0 0.0
        %2186 = vmatpush2.msra.mxu0 0.0
        %2187 = vmatprep.subr.mxu0 0.0
        %2188 = vmatpush2.msra.mxu0 0.0
        %2189 = vmatprep.subr.mxu0 0.0
        %2190 = vmatpush2.msra.mxu0 0.0
        %2191 = vmatprep.subr.mxu0 0.0
        %2192 = vmatpush2.msra.mxu0 0.0
        %2193 = vmatprep.mubr.f32.mxu0 0.0
        %2194 = vmatmul.mubr.f32.gmra.mxu0 %v2127
        %v2195 = vpop.f32.mrf.mxu0
        %v2196 = vadd.f32 0.0, %v2195
        %v2197 = vpop.f32.mrf.mxu0
        %2198 = vdwg.mxu0
        %v2199 = vadd.f32 %v1723, %v2196
        %v2200 = vld [vmem:[%s6] sm:$0x1]
        %v2201 = vlaneseq
        %v2202 = vshrl.u32 %v2201, 7
        %v2203 = vsub.s32 0, %v2202
        %v2204 = vrot.slane %v2200, %v2203
        %v2205 = vadd.f32 %v2199, %v2204
        %v2206 = vadd.f32 %v2205, %v287
        %v2207 = vld [vmem:[%s6 + $0x1] sm:$0x1]
        %v2208 = vld [vmem:[%s6 + $0x2] sm:$0x1]
        %v2209 = vsel %vm298, %v2206, 0.0
        %2210 = vadd.xlane.f32.xlu0 %v2209
        %v2211 = vpop.xlane.xlu0 %2210
        %v2212 = vrcp.pop 32.0
        %v2213 = vmul.f32 %v2211, %v2212
        %v2214 = vsub.f32 %v2206, %v2213
        %v2215 = vmul.f32 %v2214, %v2214
        %v2216 = vsel %vm298, %v2215, 0.0
        %2217 = vadd.xlane.f32.xlu0 %v2216
        %v2218 = vpop.xlane.xlu0 %2217
        %v2219 = vmul.f32 %v2218, %v2212
        %v2220 = vadd.f32 %v2219, 1e-12
        %v2221 = vrsqrt.pop %v2220
        %v2222 = vmul.f32 %v2214, %v2221
        %v2223 = vlaneseq
        %v2224 = vshrl.u32 %v2223, 7
        %v2225 = vsub.s32 0, %v2224
        %v2226 = vrot.slane %v2207, %v2225
        %v2227 = vmul.f32 %v2222, %v2226
        %v2228 = vlaneseq
        %v2229 = vshrl.u32 %v2228, 7
        %v2230 = vsub.s32 0, %v2229
        %v2231 = vrot.slane %v2208, %v2230
        %v2232 = vadd.f32 %v2227, %v2231
        %v2233 = vld [vmem:[%s4] sm:$0xff]
        %v2234 = vld [vmem:[%s4 + $0x8] sm:$0xff]
        %v2235 = vld [vmem:[%s4 + $0x10] sm:$0xff]
        %v2236 = vld [vmem:[%s4 + $0x18] sm:$0xff]
        %v2237 = vld [vmem:[%s6 + $0x3] sm:$0x1]
        %v2238 = vlaneseq
        %v2239 = vshrl.u32 %v2238, 7
        %v2240 = vsub.s32 0, %v2239
        %v2241 = vrot.slane %v2237, %v2240
        %v2243 = vsel %vm298, %v2232, 0
        %2245 = vmatprep.subr.mxu0 0.0
        %2246 = vmatpush1.msra.mxu0 0.0
        %2247 = vmatprep.subr.mxu0 0.0
        %2248 = vmatpush1.msra.mxu0 0.0
        %2249 = vmatprep.subr.mxu0 0.0
        %2250 = vmatpush1.msra.mxu0 0.0
        %2251 = vmatprep.subr.mxu0 0.0
        %2252 = vmatpush1.msra.mxu0 0.0
        %2253 = vmatprep.subr.mxu0 0.0
        %2254 = vmatpush1.msra.mxu0 0.0
        %2255 = vmatprep.subr.mxu0 0.0
        %2256 = vmatpush1.msra.mxu0 0.0
        %2257 = vmatprep.subr.mxu0 0.0
        %2258 = vmatpush1.msra.mxu0 0.0
        %2259 = vmatprep.subr.mxu0 0.0
        %2260 = vmatpush1.msra.mxu0 0.0
        %2261 = vmatprep.subr.mxu0 0.0
        %2262 = vmatpush1.msra.mxu0 0.0
        %2263 = vmatprep.subr.mxu0 0.0
        %2264 = vmatpush1.msra.mxu0 0.0
        %2265 = vmatprep.subr.mxu0 0.0
        %2266 = vmatpush1.msra.mxu0 0.0
        %2267 = vmatprep.subr.mxu0 0.0
        %2268 = vmatpush1.msra.mxu0 0.0
        %2269 = vmatprep.subr.mxu0 0.0
        %2270 = vmatpush1.msra.mxu0 %v2236
        %2271 = vmatprep.subr.mxu0 0.0
        %2272 = vmatpush1.msra.mxu0 %v2235
        %2273 = vmatprep.subr.mxu0 0.0
        %2274 = vmatpush1.msra.mxu0 %v2234
        %2275 = vmatprep.subr.mxu0 0.0
        %2276 = vmatpush1.msra.mxu0 %v2233
        %2277 = vmatprep.subr.mxu0 0.0
        %2278 = vmatpush2.msra.mxu0 0.0
        %2279 = vmatprep.subr.mxu0 0.0
        %2280 = vmatpush2.msra.mxu0 0.0
        %2281 = vmatprep.subr.mxu0 0.0
        %2282 = vmatpush2.msra.mxu0 0.0
        %2283 = vmatprep.subr.mxu0 0.0
        %2284 = vmatpush2.msra.mxu0 0.0
        %2285 = vmatprep.subr.mxu0 0.0
        %2286 = vmatpush2.msra.mxu0 0.0
        %2287 = vmatprep.subr.mxu0 0.0
        %2288 = vmatpush2.msra.mxu0 0.0
        %2289 = vmatprep.subr.mxu0 0.0
        %2290 = vmatpush2.msra.mxu0 0.0
        %2291 = vmatprep.subr.mxu0 0.0
        %2292 = vmatpush2.msra.mxu0 0.0
        %2293 = vmatprep.subr.mxu0 0.0
        %2294 = vmatpush2.msra.mxu0 0.0
        %2295 = vmatprep.subr.mxu0 0.0
        %2296 = vmatpush2.msra.mxu0 0.0
        %2297 = vmatprep.subr.mxu0 0.0
        %2298 = vmatpush2.msra.mxu0 0.0
        %2299 = vmatprep.subr.mxu0 0.0
        %2300 = vmatpush2.msra.mxu0 0.0
        %2301 = vmatprep.subr.mxu0 0.0
        %2302 = vmatpush2.msra.mxu0 0.0
        %2303 = vmatprep.subr.mxu0 0.0
        %2304 = vmatpush2.msra.mxu0 0.0
        %2305 = vmatprep.subr.mxu0 0.0
        %2306 = vmatpush2.msra.mxu0 0.0
        %2307 = vmatprep.subr.mxu0 0.0
        %2308 = vmatpush2.msra.mxu0 0.0
        %2309 = vmatprep.mubr.f32.mxu0 0.0
        %2310 = vmatmul.mubr.f32.gmra.mxu0 %v2243
        %v2311 = vpop.f32.mrf.mxu0
        %v2312 = vadd.f32 %v2241, %v2311
        %v2313 = vpop.f32.mrf.mxu0
        %2314 = vdwg.mxu0
        %v2315 = vmul.f32 %v2312, 0.5
        %v2316 = vmul.f32 %v2312, 0.70710677
        %vm2317 = vcmp.ge.f32.partialorder %v2316, 0.0
        %v2318 = vsel %vm2317, 1.0, -1.0
        %v2319 = vand.u32 2147483647, %v2316
        %v2320 = vmul.f32 %v2319, 0.3275911
        %v2321 = vadd.f32 %v2320, 1.0
        %v2322 = vrcp.pop %v2321
        %v2323 = vmul.f32 1.0, %v2322
        %v2324 = vmul.f32 %v2323, 1.0614054
        %v2325 = vadd.f32 %v2324, -1.4531521
        %v2326 = vmul.f32 %v2325, %v2323
        %v2327 = vadd.f32 %v2326, 1.4214138
        %v2328 = vmul.f32 %v2327, %v2323
        %v2329 = vadd.f32 %v2328, -0.28449672
        %v2330 = vmul.f32 %v2329, %v2323
        %v2331 = vadd.f32 %v2330, 0.2548296
        %v2332 = vmul.f32 %v2331, %v2323
        %v2333 = vsub.f32 0.0, %v2319
        %v2334 = vmul.f32 %v2333, %v2319
        %v2335 = vmul.f32 %v2334, 1.442695
        %v2336 = vpow.pop %v2335
        %v2337 = vmul.f32 %v2332, %v2336
        %v2338 = vsub.f32 1.0, %v2337
        %v2339 = vmul.f32 %v2318, %v2338
        %v2340 = vadd.f32 %v2339, 1.0
        %v2341 = vmul.f32 %v2315, %v2340
        %v2342 = vld [vmem:[%s5] sm:$0xff]
        %v2343 = vld [vmem:[%s5 + $0x8] sm:$0xff]
        %v2344 = vld [vmem:[%s5 + $0x10] sm:$0xff]
        %v2345 = vld [vmem:[%s5 + $0x18] sm:$0xff]
        %v2346 = vld [vmem:[%s5 + $0x20] sm:$0xff]
        %v2347 = vld [vmem:[%s5 + $0x28] sm:$0xff]
        %v2348 = vld [vmem:[%s5 + $0x30] sm:$0xff]
        %v2349 = vld [vmem:[%s5 + $0x38] sm:$0xff]
        %v2350 = vld [vmem:[%s6 + $0x4] sm:$0x1]
        %v2351 = vlaneseq
        %v2352 = vshrl.u32 %v2351, 7
        %v2353 = vsub.s32 0, %v2352
        %v2354 = vrot.slane %v2350, %v2353
        %vm2355 = vcmask 523264
        %v2357 = vsel %vm2355, %v2341, 0
        %2359 = vmatprep.subr.mxu0 0.0
        %2360 = vmatpush1.msra.mxu0 0.0
        %2361 = vmatprep.subr.mxu0 0.0
        %2362 = vmatpush1.msra.mxu0 0.0
        %2363 = vmatprep.subr.mxu0 0.0
        %2364 = vmatpush1.msra.mxu0 0.0
        %2365 = vmatprep.subr.mxu0 0.0
        %2366 = vmatpush1.msra.mxu0 0.0
        %2367 = vmatprep.subr.mxu0 0.0
        %2368 = vmatpush1.msra.mxu0 0.0
        %2369 = vmatprep.subr.mxu0 0.0
        %2370 = vmatpush1.msra.mxu0 0.0
        %2371 = vmatprep.subr.mxu0 0.0
        %2372 = vmatpush1.msra.mxu0 0.0
        %2373 = vmatprep.subr.mxu0 0.0
        %2374 = vmatpush1.msra.mxu0 0.0
        %2375 = vmatprep.subr.mxu0 0.0
        %2376 = vmatpush1.msra.mxu0 %v2349
        %2377 = vmatprep.subr.mxu0 0.0
        %2378 = vmatpush1.msra.mxu0 %v2348
        %2379 = vmatprep.subr.mxu0 0.0
        %2380 = vmatpush1.msra.mxu0 %v2347
        %2381 = vmatprep.subr.mxu0 0.0
        %2382 = vmatpush1.msra.mxu0 %v2346
        %2383 = vmatprep.subr.mxu0 0.0
        %2384 = vmatpush1.msra.mxu0 %v2345
        %2385 = vmatprep.subr.mxu0 0.0
        %2386 = vmatpush1.msra.mxu0 %v2344
        %2387 = vmatprep.subr.mxu0 0.0
        %2388 = vmatpush1.msra.mxu0 %v2343
        %2389 = vmatprep.subr.mxu0 0.0
        %2390 = vmatpush1.msra.mxu0 %v2342
        %2391 = vmatprep.subr.mxu0 0.0
        %2392 = vmatpush2.msra.mxu0 0.0
        %2393 = vmatprep.subr.mxu0 0.0
        %2394 = vmatpush2.msra.mxu0 0.0
        %2395 = vmatprep.subr.mxu0 0.0
        %2396 = vmatpush2.msra.mxu0 0.0
        %2397 = vmatprep.subr.mxu0 0.0
        %2398 = vmatpush2.msra.mxu0 0.0
        %2399 = vmatprep.subr.mxu0 0.0
        %2400 = vmatpush2.msra.mxu0 0.0
        %2401 = vmatprep.subr.mxu0 0.0
        %2402 = vmatpush2.msra.mxu0 0.0
        %2403 = vmatprep.subr.mxu0 0.0
        %2404 = vmatpush2.msra.mxu0 0.0
        %2405 = vmatprep.subr.mxu0 0.0
        %2406 = vmatpush2.msra.mxu0 0.0
        %2407 = vmatprep.subr.mxu0 0.0
        %2408 = vmatpush2.msra.mxu0 0.0
        %2409 = vmatprep.subr.mxu0 0.0
        %2410 = vmatpush2.msra.mxu0 0.0
        %2411 = vmatprep.subr.mxu0 0.0
        %2412 = vmatpush2.msra.mxu0 0.0
        %2413 = vmatprep.subr.mxu0 0.0
        %2414 = vmatpush2.msra.mxu0 0.0
        %2415 = vmatprep.subr.mxu0 0.0
        %2416 = vmatpush2.msra.mxu0 0.0
        %2417 = vmatprep.subr.mxu0 0.0
        %2418 = vmatpush2.msra.mxu0 0.0
        %2419 = vmatprep.subr.mxu0 0.0
        %2420 = vmatpush2.msra.mxu0 0.0
        %2421 = vmatprep.subr.mxu0 0.0
        %2422 = vmatpush2.msra.mxu0 0.0
        %2423 = vmatprep.mubr.f32.mxu0 0.0
        %2424 = vmatmul.mubr.f32.gmra.mxu0 %v2357
        %v2425 = vpop.f32.mrf.mxu0
        %v2426 = vadd.f32 %v2354, %v2425
        %v2427 = vpop.f32.mrf.mxu0
        %2428 = vdwg.mxu0
        %v2429 = vadd.f32 %v2426, %v2232
        %v2430 = vld [vmem:[%s6 + $0x5] sm:$0x1]
        %v2431 = vld [vmem:[%s6 + $0x6] sm:$0x1]
        %v2432 = vsel %vm298, %v2429, 0.0
        %2433 = vadd.xlane.f32.xlu0 %v2432
        %v2434 = vpop.xlane.xlu0 %2433
        %v2435 = vmul.f32 %v2434, %v2212
        %v2436 = vsub.f32 %v2429, %v2435
        %v2437 = vmul.f32 %v2436, %v2436
        %v2438 = vsel %vm298, %v2437, 0.0
        %2439 = vadd.xlane.f32.xlu0 %v2438
        %v2440 = vpop.xlane.xlu0 %2439
        %v2441 = vmul.f32 %v2440, %v2212
        %v2442 = vadd.f32 %v2441, 1e-12
        %v2443 = vrsqrt.pop %v2442
        %v2444 = vmul.f32 %v2436, %v2443
        %v2445 = vlaneseq
        %v2446 = vshrl.u32 %v2445, 7
        %v2447 = vsub.s32 0, %v2446
        %v2448 = vrot.slane %v2430, %v2447
        %v2449 = vmul.f32 %v2444, %v2448
        %v2450 = vlaneseq
        %v2451 = vshrl.u32 %v2450, 7
        %v2452 = vsub.s32 0, %v2451
        %v2453 = vrot.slane %v2431, %v2452
        %v2454 = vadd.f32 %v2449, %v2453
        %s2455 = scalar_lea.vmem %s2, 384
        %v2456 = vld [vmem:[%s2455] sm:$0xff]
        %v2457 = vld [vmem:[%s2455 + $0x8] sm:$0xff]
        %v2458 = vld [vmem:[%s2455 + $0x10] sm:$0xff]
        %v2459 = vld [vmem:[%s2455 + $0x18] sm:$0xff]
        %s2460 = scalar_lea.vmem %s6, 24
        %v2461 = vld [vmem:[%s2460 + $0x7] sm:$0x1]
        %v2462 = vlaneseq
        %v2463 = vshrl.u32 %v2462, 7
        %v2464 = vsub.s32 0, %v2463
        %v2465 = vrot.slane %v2461, %v2464
        %v2467 = vsel %vm298, %v2454, 0
        %2469 = vmatprep.subr.mxu0 0.0
        %2470 = vmatpush1.msra.mxu0 0.0
        %2471 = vmatprep.subr.mxu0 0.0
        %2472 = vmatpush1.msra.mxu0 0.0
        %2473 = vmatprep.subr.mxu0 0.0
        %2474 = vmatpush1.msra.mxu0 0.0
        %2475 = vmatprep.subr.mxu0 0.0
        %2476 = vmatpush1.msra.mxu0 0.0
        %2477 = vmatprep.subr.mxu0 0.0
        %2478 = vmatpush1.msra.mxu0 0.0
        %2479 = vmatprep.subr.mxu0 0.0
        %2480 = vmatpush1.msra.mxu0 0.0
        %2481 = vmatprep.subr.mxu0 0.0
        %2482 = vmatpush1.msra.mxu0 0.0
        %2483 = vmatprep.subr.mxu0 0.0
        %2484 = vmatpush1.msra.mxu0 0.0
        %2485 = vmatprep.subr.mxu0 0.0
        %2486 = vmatpush1.msra.mxu0 0.0
        %2487 = vmatprep.subr.mxu0 0.0
        %2488 = vmatpush1.msra.mxu0 0.0
        %2489 = vmatprep.subr.mxu0 0.0
        %2490 = vmatpush1.msra.mxu0 0.0
        %2491 = vmatprep.subr.mxu0 0.0
        %2492 = vmatpush1.msra.mxu0 0.0
        %2493 = vmatprep.subr.mxu0 0.0
        %2494 = vmatpush1.msra.mxu0 %v2459
        %2495 = vmatprep.subr.mxu0 0.0
        %2496 = vmatpush1.msra.mxu0 %v2458
        %2497 = vmatprep.subr.mxu0 0.0
        %2498 = vmatpush1.msra.mxu0 %v2457
        %2499 = vmatprep.subr.mxu0 0.0
        %2500 = vmatpush1.msra.mxu0 %v2456
        %2501 = vmatprep.subr.mxu0 0.0
        %2502 = vmatpush2.msra.mxu0 0.0
        %2503 = vmatprep.subr.mxu0 0.0
        %2504 = vmatpush2.msra.mxu0 0.0
        %2505 = vmatprep.subr.mxu0 0.0
        %2506 = vmatpush2.msra.mxu0 0.0
        %2507 = vmatprep.subr.mxu0 0.0
        %2508 = vmatpush2.msra.mxu0 0.0
        %2509 = vmatprep.subr.mxu0 0.0
        %2510 = vmatpush2.msra.mxu0 0.0
        %2511 = vmatprep.subr.mxu0 0.0
        %2512 = vmatpush2.msra.mxu0 0.0
        %2513 = vmatprep.subr.mxu0 0.0
        %2514 = vmatpush2.msra.mxu0 0.0
        %2515 = vmatprep.subr.mxu0 0.0
        %2516 = vmatpush2.msra.mxu0 0.0
        %2517 = vmatprep.subr.mxu0 0.0
        %2518 = vmatpush2.msra.mxu0 0.0
        %2519 = vmatprep.subr.mxu0 0.0
        %2520 = vmatpush2.msra.mxu0 0.0
        %2521 = vmatprep.subr.mxu0 0.0
        %2522 = vmatpush2.msra.mxu0 0.0
        %2523 = vmatprep.subr.mxu0 0.0
        %2524 = vmatpush2.msra.mxu0 0.0
        %2525 = vmatprep.subr.mxu0 0.0
        %2526 = vmatpush2.msra.mxu0 0.0
        %2527 = vmatprep.subr.mxu0 0.0
        %2528 = vmatpush2.msra.mxu0 0.0
        %2529 = vmatprep.subr.mxu0 0.0
        %2530 = vmatpush2.msra.mxu0 0.0
        %2531 = vmatprep.subr.mxu0 0.0
        %2532 = vmatpush2.msra.mxu0 0.0
        %2533 = vmatprep.mubr.f32.mxu0 0.0
        %2534 = vmatmul.mubr.f32.gmra.mxu0 %v2467
        %v2535 = vpop.f32.mrf.mxu0
        %v2536 = vadd.f32 %v2465, %v2535
        %v2537 = vpop.f32.mrf.mxu0
        %2538 = vdwg.mxu0
        %s2539 = scalar_lea.vmem %s2, 512
        %v2540 = vld [vmem:[%s2539] sm:$0xff]
        %v2541 = vld [vmem:[%s2539 + $0x8] sm:$0xff]
        %v2542 = vld [vmem:[%s2539 + $0x10] sm:$0xff]
        %v2543 = vld [vmem:[%s2539 + $0x18] sm:$0xff]
        %v2544 = vld [vmem:[%s2460 + $0xb] sm:$0x1]
        %v2545 = vlaneseq
        %v2546 = vshrl.u32 %v2545, 7
        %v2547 = vsub.s32 0, %v2546
        %v2548 = vrot.slane %v2544, %v2547
        %2549 = vmatprep.subr.mxu0 0.0
        %2550 = vmatpush1.msra.mxu0 0.0
        %2551 = vmatprep.subr.mxu0 0.0
        %2552 = vmatpush1.msra.mxu0 0.0
        %2553 = vmatprep.subr.mxu0 0.0
        %2554 = vmatpush1.msra.mxu0 0.0
        %2555 = vmatprep.subr.mxu0 0.0
        %2556 = vmatpush1.msra.mxu0 0.0
        %2557 = vmatprep.subr.mxu0 0.0
        %2558 = vmatpush1.msra.mxu0 0.0
        %2559 = vmatprep.subr.mxu0 0.0
        %2560 = vmatpush1.msra.mxu0 0.0
        %2561 = vmatprep.subr.mxu0 0.0
        %2562 = vmatpush1.msra.mxu0 0.0
        %2563 = vmatprep.subr.mxu0 0.0
        %2564 = vmatpush1.msra.mxu0 0.0
        %2565 = vmatprep.subr.mxu0 0.0
        %2566 = vmatpush1.msra.mxu0 0.0
        %2567 = vmatprep.subr.mxu0 0.0
        %2568 = vmatpush1.msra.mxu0 0.0
        %2569 = vmatprep.subr.mxu0 0.0
        %2570 = vmatpush1.msra.mxu0 0.0
        %2571 = vmatprep.subr.mxu0 0.0
        %2572 = vmatpush1.msra.mxu0 0.0
        %2573 = vmatprep.subr.mxu0 0.0
        %2574 = vmatpush1.msra.mxu0 %v2543
        %2575 = vmatprep.subr.mxu0 0.0
        %2576 = vmatpush1.msra.mxu0 %v2542
        %2577 = vmatprep.subr.mxu0 0.0
        %2578 = vmatpush1.msra.mxu0 %v2541
        %2579 = vmatprep.subr.mxu0 0.0
        %2580 = vmatpush1.msra.mxu0 %v2540
        %2581 = vmatprep.subr.mxu0 0.0
        %2582 = vmatpush2.msra.mxu0 0.0
        %2583 = vmatprep.subr.mxu0 0.0
        %2584 = vmatpush2.msra.mxu0 0.0
        %2585 = vmatprep.subr.mxu0 0.0
        %2586 = vmatpush2.msra.mxu0 0.0
        %2587 = vmatprep.subr.mxu0 0.0
        %2588 = vmatpush2.msra.mxu0 0.0
        %2589 = vmatprep.subr.mxu0 0.0
        %2590 = vmatpush2.msra.mxu0 0.0
        %2591 = vmatprep.subr.mxu0 0.0
        %2592 = vmatpush2.msra.mxu0 0.0
        %2593 = vmatprep.subr.mxu0 0.0
        %2594 = vmatpush2.msra.mxu0 0.0
        %2595 = vmatprep.subr.mxu0 0.0
        %2596 = vmatpush2.msra.mxu0 0.0
        %2597 = vmatprep.subr.mxu0 0.0
        %2598 = vmatpush2.msra.mxu0 0.0
        %2599 = vmatprep.subr.mxu0 0.0
        %2600 = vmatpush2.msra.mxu0 0.0
        %2601 = vmatprep.subr.mxu0 0.0
        %2602 = vmatpush2.msra.mxu0 0.0
        %2603 = vmatprep.subr.mxu0 0.0
        %2604 = vmatpush2.msra.mxu0 0.0
        %2605 = vmatprep.subr.mxu0 0.0
        %2606 = vmatpush2.msra.mxu0 0.0
        %2607 = vmatprep.subr.mxu0 0.0
        %2608 = vmatpush2.msra.mxu0 0.0
        %2609 = vmatprep.subr.mxu0 0.0
        %2610 = vmatpush2.msra.mxu0 0.0
        %2611 = vmatprep.subr.mxu0 0.0
        %2612 = vmatpush2.msra.mxu0 0.0
        %2613 = vmatprep.mubr.f32.mxu0 0.0
        %2614 = vmatmul.mubr.f32.gmra.mxu0 %v2467
        %v2615 = vpop.f32.mrf.mxu0
        %v2616 = vadd.f32 %v2548, %v2615
        %v2617 = vpop.f32.mrf.mxu0
        %2618 = vdwg.mxu0
        %s2619 = scalar_lea.vmem %s2, 640
        %v2620 = vld [vmem:[%s2619] sm:$0xff]
        %v2621 = vld [vmem:[%s2619 + $0x8] sm:$0xff]
        %v2622 = vld [vmem:[%s2619 + $0x10] sm:$0xff]
        %v2623 = vld [vmem:[%s2619 + $0x18] sm:$0xff]
        %v2624 = vld [vmem:[%s2460 + $0xf] sm:$0x1]
        %v2625 = vlaneseq
        %v2626 = vshrl.u32 %v2625, 7
        %v2627 = vsub.s32 0, %v2626
        %v2628 = vrot.slane %v2624, %v2627
        %2629 = vmatprep.subr.mxu0 0.0
        %2630 = vmatpush1.msra.mxu0 0.0
        %2631 = vmatprep.subr.mxu0 0.0
        %2632 = vmatpush1.msra.mxu0 0.0
        %2633 = vmatprep.subr.mxu0 0.0
        %2634 = vmatpush1.msra.mxu0 0.0
        %2635 = vmatprep.subr.mxu0 0.0
        %2636 = vmatpush1.msra.mxu0 0.0
        %2637 = vmatprep.subr.mxu0 0.0
        %2638 = vmatpush1.msra.mxu0 0.0
        %2639 = vmatprep.subr.mxu0 0.0
        %2640 = vmatpush1.msra.mxu0 0.0
        %2641 = vmatprep.subr.mxu0 0.0
        %2642 = vmatpush1.msra.mxu0 0.0
        %2643 = vmatprep.subr.mxu0 0.0
        %2644 = vmatpush1.msra.mxu0 0.0
        %2645 = vmatprep.subr.mxu0 0.0
        %2646 = vmatpush1.msra.mxu0 0.0
        %2647 = vmatprep.subr.mxu0 0.0
        %2648 = vmatpush1.msra.mxu0 0.0
        %2649 = vmatprep.subr.mxu0 0.0
        %2650 = vmatpush1.msra.mxu0 0.0
        %2651 = vmatprep.subr.mxu0 0.0
        %2652 = vmatpush1.msra.mxu0 0.0
        %2653 = vmatprep.subr.mxu0 0.0
        %2654 = vmatpush1.msra.mxu0 %v2623
        %2655 = vmatprep.subr.mxu0 0.0
        %2656 = vmatpush1.msra.mxu0 %v2622
        %2657 = vmatprep.subr.mxu0 0.0
        %2658 = vmatpush1.msra.mxu0 %v2621
        %2659 = vmatprep.subr.mxu0 0.0
        %2660 = vmatpush1.msra.mxu0 %v2620
        %2661 = vmatprep.subr.mxu0 0.0
        %2662 = vmatpush2.msra.mxu0 0.0
        %2663 = vmatprep.subr.mxu0 0.0
        %2664 = vmatpush2.msra.mxu0 0.0
        %2665 = vmatprep.subr.mxu0 0.0
        %2666 = vmatpush2.msra.mxu0 0.0
        %2667 = vmatprep.subr.mxu0 0.0
        %2668 = vmatpush2.msra.mxu0 0.0
        %2669 = vmatprep.subr.mxu0 0.0
        %2670 = vmatpush2.msra.mxu0 0.0
        %2671 = vmatprep.subr.mxu0 0.0
        %2672 = vmatpush2.msra.mxu0 0.0
        %2673 = vmatprep.subr.mxu0 0.0
        %2674 = vmatpush2.msra.mxu0 0.0
        %2675 = vmatprep.subr.mxu0 0.0
        %2676 = vmatpush2.msra.mxu0 0.0
        %2677 = vmatprep.subr.mxu0 0.0
        %2678 = vmatpush2.msra.mxu0 0.0
        %2679 = vmatprep.subr.mxu0 0.0
        %2680 = vmatpush2.msra.mxu0 0.0
        %2681 = vmatprep.subr.mxu0 0.0
        %2682 = vmatpush2.msra.mxu0 0.0
        %2683 = vmatprep.subr.mxu0 0.0
        %2684 = vmatpush2.msra.mxu0 0.0
        %2685 = vmatprep.subr.mxu0 0.0
        %2686 = vmatpush2.msra.mxu0 0.0
        %2687 = vmatprep.subr.mxu0 0.0
        %2688 = vmatpush2.msra.mxu0 0.0
        %2689 = vmatprep.subr.mxu0 0.0
        %2690 = vmatpush2.msra.mxu0 0.0
        %2691 = vmatprep.subr.mxu0 0.0
        %2692 = vmatpush2.msra.mxu0 0.0
        %2693 = vmatprep.mubr.f32.mxu0 0.0
        %2694 = vmatmul.mubr.f32.gmra.mxu0 %v2467
        %v2695 = vpop.f32.mrf.mxu0
        %v2696 = vadd.f32 %v2628, %v2695
        %v2697 = vpop.f32.mrf.mxu0
        %2698 = vdwg.mxu0
        %v2700 = vsel %vm538, %v2536, 0
        %v2703 = vsel %vm538, %v2616, 0
        %2705 = vmatprep.subr.mxu0 0.0
        %2706 = vmatpush1.xpose.msra.mxu0 0.0
        %2707 = vmatprep.subr.mxu0 0.0
        %2708 = vmatpush1.xpose.msra.mxu0 0.0
        %2709 = vmatprep.subr.mxu0 0.0
        %2710 = vmatpush1.xpose.msra.mxu0 0.0
        %2711 = vmatprep.subr.mxu0 0.0
        %2712 = vmatpush1.xpose.msra.mxu0 0.0
        %2713 = vmatprep.subr.mxu0 0.0
        %2714 = vmatpush1.xpose.msra.mxu0 0.0
        %2715 = vmatprep.subr.mxu0 0.0
        %2716 = vmatpush1.xpose.msra.mxu0 0.0
        %2717 = vmatprep.subr.mxu0 0.0
        %2718 = vmatpush1.xpose.msra.mxu0 0.0
        %2719 = vmatprep.subr.mxu0 0.0
        %2720 = vmatpush1.xpose.msra.mxu0 0.0
        %2721 = vmatprep.subr.mxu0 0.0
        %2722 = vmatpush1.xpose.msra.mxu0 0.0
        %2723 = vmatprep.subr.mxu0 0.0
        %2724 = vmatpush1.xpose.msra.mxu0 0.0
        %2725 = vmatprep.subr.mxu0 0.0
        %2726 = vmatpush1.xpose.msra.mxu0 0.0
        %2727 = vmatprep.subr.mxu0 0.0
        %2728 = vmatpush1.xpose.msra.mxu0 0.0
        %2729 = vmatprep.subr.mxu0 0.0
        %2730 = vmatpush1.xpose.msra.mxu0 0.0
        %2731 = vmatprep.subr.mxu0 0.0
        %2732 = vmatpush1.xpose.msra.mxu0 0.0
        %2733 = vmatprep.subr.mxu0 0.0
        %2734 = vmatpush1.xpose.msra.mxu0 0.0
        %2735 = vmatprep.subr.mxu0 0.0
        %2736 = vmatpush1.xpose.msra.mxu0 %v2703
        %2737 = vmatprep.subr.mxu0 0.0
        %2738 = vmatpush2.xpose.msra.mxu0 0.0
        %2739 = vmatprep.subr.mxu0 0.0
        %2740 = vmatpush2.xpose.msra.mxu0 0.0
        %2741 = vmatprep.subr.mxu0 0.0
        %2742 = vmatpush2.xpose.msra.mxu0 0.0
        %2743 = vmatprep.subr.mxu0 0.0
        %2744 = vmatpush2.xpose.msra.mxu0 0.0
        %2745 = vmatprep.subr.mxu0 0.0
        %2746 = vmatpush2.xpose.msra.mxu0 0.0
        %2747 = vmatprep.subr.mxu0 0.0
        %2748 = vmatpush2.xpose.msra.mxu0 0.0
        %2749 = vmatprep.subr.mxu0 0.0
        %2750 = vmatpush2.xpose.msra.mxu0 0.0
        %2751 = vmatprep.subr.mxu0 0.0
        %2752 = vmatpush2.xpose.msra.mxu0 0.0
        %2753 = vmatprep.subr.mxu0 0.0
        %2754 = vmatpush2.xpose.msra.mxu0 0.0
        %2755 = vmatprep.subr.mxu0 0.0
        %2756 = vmatpush2.xpose.msra.mxu0 0.0
        %2757 = vmatprep.subr.mxu0 0.0
        %2758 = vmatpush2.xpose.msra.mxu0 0.0
        %2759 = vmatprep.subr.mxu0 0.0
        %2760 = vmatpush2.xpose.msra.mxu0 0.0
        %2761 = vmatprep.subr.mxu0 0.0
        %2762 = vmatpush2.xpose.msra.mxu0 0.0
        %2763 = vmatprep.subr.mxu0 0.0
        %2764 = vmatpush2.xpose.msra.mxu0 0.0
        %2765 = vmatprep.subr.mxu0 0.0
        %2766 = vmatpush2.xpose.msra.mxu0 0.0
        %2767 = vmatprep.subr.mxu0 0.0
        %2768 = vmatpush2.xpose.msra.mxu0 0.0
        %2769 = vmatprep.mubr.f32.mxu0 0.0
        %2770 = vmatmul.mubr.f32.gmra.mxu0 %v2700
        %v2771 = vpop.f32.mrf.mxu0
        %v2772 = vadd.f32 %v536, %v2771
        %v2773 = vpop.f32.mrf.mxu0
        %2774 = vdwg.mxu0
        %v2775 = vsel %vm538, %v2772, -inf
        %2776 = vmax.xlane.f32.xlu0 %v2775
        %v2777 = vpop.xlane.xlu0 %2776
        %v2778 = vsub.f32 %v2772, %v2777
        %v2779 = vmul.f32 %v2778, 1.442695
        %v2780 = vpow.pop %v2779
        %v2781 = vsel %vm538, %v2780, 0.0
        %2782 = vadd.xlane.f32.xlu0 %v2781
        %v2783 = vpop.xlane.xlu0 %2782
        %v2784 = vrcp.pop %v2783
        %v2785 = vmul.f32 %v2780, %v2784
        %v2787 = vsel %vm538, %v2785, 0
        %2789 = vmatprep.subr.mxu0 0.0
        %2790 = vmatpush1.msra.mxu0 0.0
        %2791 = vmatprep.subr.mxu0 0.0
        %2792 = vmatpush1.msra.mxu0 0.0
        %2793 = vmatprep.subr.mxu0 0.0
        %2794 = vmatpush1.msra.mxu0 0.0
        %2795 = vmatprep.subr.mxu0 0.0
        %2796 = vmatpush1.msra.mxu0 0.0
        %2797 = vmatprep.subr.mxu0 0.0
        %2798 = vmatpush1.msra.mxu0 0.0
        %2799 = vmatprep.subr.mxu0 0.0
        %2800 = vmatpush1.msra.mxu0 0.0
        %2801 = vmatprep.subr.mxu0 0.0
        %2802 = vmatpush1.msra.mxu0 0.0
        %2803 = vmatprep.subr.mxu0 0.0
        %2804 = vmatpush1.msra.mxu0 0.0
        %2805 = vmatprep.subr.mxu0 0.0
        %2806 = vmatpush1.msra.mxu0 0.0
        %2807 = vmatprep.subr.mxu0 0.0
        %2808 = vmatpush1.msra.mxu0 0.0
        %2809 = vmatprep.subr.mxu0 0.0
        %2810 = vmatpush1.msra.mxu0 0.0
        %2811 = vmatprep.subr.mxu0 0.0
        %2812 = vmatpush1.msra.mxu0 0.0
        %2813 = vmatprep.subr.mxu0 0.0
        %2814 = vmatpush1.msra.mxu0 0.0
        %2815 = vmatprep.subr.mxu0 0.0
        %2816 = vmatpush1.msra.mxu0 0.0
        %2817 = vmatprep.subr.mxu0 0.0
        %2818 = vmatpush1.msra.mxu0 0.0
        %2819 = vmatprep.subr.mxu0 0.0
        %2820 = vmatpush1.msra.mxu0 %v2696
        %2821 = vmatprep.subr.mxu0 0.0
        %2822 = vmatpush2.msra.mxu0 0.0
        %2823 = vmatprep.subr.mxu0 0.0
        %2824 = vmatpush2.msra.mxu0 0.0
        %2825 = vmatprep.subr.mxu0 0.0
        %2826 = vmatpush2.msra.mxu0 0.0
        %2827 = vmatprep.subr.mxu0 0.0
        %2828 = vmatpush2.msra.mxu0 0.0
        %2829 = vmatprep.subr.mxu0 0.0
        %2830 = vmatpush2.msra.mxu0 0.0
        %2831 = vmatprep.subr.mxu0 0.0
        %2832 = vmatpush2.msra.mxu0 0.0
        %2833 = vmatprep.subr.mxu0 0.0
        %2834 = vmatpush2.msra.mxu0 0.0
        %2835 = vmatprep.subr.mxu0 0.0
        %2836 = vmatpush2.msra.mxu0 0.0
        %2837 = vmatprep.subr.mxu0 0.0
        %2838 = vmatpush2.msra.mxu0 0.0
        %2839 = vmatprep.subr.mxu0 0.0
        %2840 = vmatpush2.msra.mxu0 0.0
        %2841 = vmatprep.subr.mxu0 0.0
        %2842 = vmatpush2.msra.mxu0 0.0
        %2843 = vmatprep.subr.mxu0 0.0
        %2844 = vmatpush2.msra.mxu0 0.0
        %2845 = vmatprep.subr.mxu0 0.0
        %2846 = vmatpush2.msra.mxu0 0.0
        %2847 = vmatprep.subr.mxu0 0.0
        %2848 = vmatpush2.msra.mxu0 0.0
        %2849 = vmatprep.subr.mxu0 0.0
        %2850 = vmatpush2.msra.mxu0 0.0
        %2851 = vmatprep.subr.mxu0 0.0
        %2852 = vmatpush2.msra.mxu0 0.0
        %2853 = vmatprep.mubr.f32.mxu0 0.0
        %2854 = vmatmul.mubr.f32.gmra.mxu0 %v2787
        %v2855 = vpop.f32.mrf.mxu0
        %v2856 = vadd.f32 0.0, %v2855
        %v2857 = vpop.f32.mrf.mxu0
        %2858 = vdwg.mxu0
        %s2859 = scalar_lea.vmem %s3, 32
        %v2860 = vld [vmem:[%s2859] sm:$0xff]
        %s2861 = scalar_lea.vmem %s2, 416
        %v2862 = vld [vmem:[%s2861] sm:$0xff]
        %v2863 = vld [vmem:[%s2861 + $0x8] sm:$0xff]
        %v2864 = vld [vmem:[%s2861 + $0x10] sm:$0xff]
        %v2865 = vld [vmem:[%s2861 + $0x18] sm:$0xff]
        %v2866 = vld [vmem:[%s2460 + $0x8] sm:$0x1]
        %v2867 = vlaneseq
        %v2868 = vshrl.u32 %v2867, 7
        %v2869 = vsub.s32 0, %v2868
        %v2870 = vrot.slane %v2866, %v2869
        %2871 = vmatprep.subr.mxu0 0.0
        %2872 = vmatpush1.msra.mxu0 0.0
        %2873 = vmatprep.subr.mxu0 0.0
        %2874 = vmatpush1.msra.mxu0 0.0
        %2875 = vmatprep.subr.mxu0 0.0
        %2876 = vmatpush1.msra.mxu0 0.0
        %2877 = vmatprep.subr.mxu0 0.0
        %2878 = vmatpush1.msra.mxu0 0.0
        %2879 = vmatprep.subr.mxu0 0.0
        %2880 = vmatpush1.msra.mxu0 0.0
        %2881 = vmatprep.subr.mxu0 0.0
        %2882 = vmatpush1.msra.mxu0 0.0
        %2883 = vmatprep.subr.mxu0 0.0
        %2884 = vmatpush1.msra.mxu0 0.0
        %2885 = vmatprep.subr.mxu0 0.0
        %2886 = vmatpush1.msra.mxu0 0.0
        %2887 = vmatprep.subr.mxu0 0.0
        %2888 = vmatpush1.msra.mxu0 0.0
        %2889 = vmatprep.subr.mxu0 0.0
        %2890 = vmatpush1.msra.mxu0 0.0
        %2891 = vmatprep.subr.mxu0 0.0
        %2892 = vmatpush1.msra.mxu0 0.0
        %2893 = vmatprep.subr.mxu0 0.0
        %2894 = vmatpush1.msra.mxu0 0.0
        %2895 = vmatprep.subr.mxu0 0.0
        %2896 = vmatpush1.msra.mxu0 %v2865
        %2897 = vmatprep.subr.mxu0 0.0
        %2898 = vmatpush1.msra.mxu0 %v2864
        %2899 = vmatprep.subr.mxu0 0.0
        %2900 = vmatpush1.msra.mxu0 %v2863
        %2901 = vmatprep.subr.mxu0 0.0
        %2902 = vmatpush1.msra.mxu0 %v2862
        %2903 = vmatprep.subr.mxu0 0.0
        %2904 = vmatpush2.msra.mxu0 0.0
        %2905 = vmatprep.subr.mxu0 0.0
        %2906 = vmatpush2.msra.mxu0 0.0
        %2907 = vmatprep.subr.mxu0 0.0
        %2908 = vmatpush2.msra.mxu0 0.0
        %2909 = vmatprep.subr.mxu0 0.0
        %2910 = vmatpush2.msra.mxu0 0.0
        %2911 = vmatprep.subr.mxu0 0.0
        %2912 = vmatpush2.msra.mxu0 0.0
        %2913 = vmatprep.subr.mxu0 0.0
        %2914 = vmatpush2.msra.mxu0 0.0
        %2915 = vmatprep.subr.mxu0 0.0
        %2916 = vmatpush2.msra.mxu0 0.0
        %2917 = vmatprep.subr.mxu0 0.0
        %2918 = vmatpush2.msra.mxu0 0.0
        %2919 = vmatprep.subr.mxu0 0.0
        %2920 = vmatpush2.msra.mxu0 0.0
        %2921 = vmatprep.subr.mxu0 0.0
        %2922 = vmatpush2.msra.mxu0 0.0
        %2923 = vmatprep.subr.mxu0 0.0
        %2924 = vmatpush2.msra.mxu0 0.0
        %2925 = vmatprep.subr.mxu0 0.0
        %2926 = vmatpush2.msra.mxu0 0.0
        %2927 = vmatprep.subr.mxu0 0.0
        %2928 = vmatpush2.msra.mxu0 0.0
        %2929 = vmatprep.subr.mxu0 0.0
        %2930 = vmatpush2.msra.mxu0 0.0
        %2931 = vmatprep.subr.mxu0 0.0
        %2932 = vmatpush2.msra.mxu0 0.0
        %2933 = vmatprep.subr.mxu0 0.0
        %2934 = vmatpush2.msra.mxu0 0.0
        %2935 = vmatprep.mubr.f32.mxu0 0.0
        %2936 = vmatmul.mubr.f32.gmra.mxu0 %v2467
        %v2937 = vpop.f32.mrf.mxu0
        %v2938 = vadd.f32 %v2870, %v2937
        %v2939 = vpop.f32.mrf.mxu0
        %2940 = vdwg.mxu0
        %s2941 = scalar_lea.vmem %s2, 544
        %v2942 = vld [vmem:[%s2941] sm:$0xff]
        %v2943 = vld [vmem:[%s2941 + $0x8] sm:$0xff]
        %v2944 = vld [vmem:[%s2941 + $0x10] sm:$0xff]
        %v2945 = vld [vmem:[%s2941 + $0x18] sm:$0xff]
        %v2946 = vld [vmem:[%s2460 + $0xc] sm:$0x1]
        %v2947 = vlaneseq
        %v2948 = vshrl.u32 %v2947, 7
        %v2949 = vsub.s32 0, %v2948
        %v2950 = vrot.slane %v2946, %v2949
        %2951 = vmatprep.subr.mxu0 0.0
        %2952 = vmatpush1.msra.mxu0 0.0
        %2953 = vmatprep.subr.mxu0 0.0
        %2954 = vmatpush1.msra.mxu0 0.0
        %2955 = vmatprep.subr.mxu0 0.0
        %2956 = vmatpush1.msra.mxu0 0.0
        %2957 = vmatprep.subr.mxu0 0.0
        %2958 = vmatpush1.msra.mxu0 0.0
        %2959 = vmatprep.subr.mxu0 0.0
        %2960 = vmatpush1.msra.mxu0 0.0
        %2961 = vmatprep.subr.mxu0 0.0
        %2962 = vmatpush1.msra.mxu0 0.0
        %2963 = vmatprep.subr.mxu0 0.0
        %2964 = vmatpush1.msra.mxu0 0.0
        %2965 = vmatprep.subr.mxu0 0.0
        %2966 = vmatpush1.msra.mxu0 0.0
        %2967 = vmatprep.subr.mxu0 0.0
        %2968 = vmatpush1.msra.mxu0 0.0
        %2969 = vmatprep.subr.mxu0 0.0
        %2970 = vmatpush1.msra.mxu0 0.0
        %2971 = vmatprep.subr.mxu0 0.0
        %2972 = vmatpush1.msra.mxu0 0.0
        %2973 = vmatprep.subr.mxu0 0.0
        %2974 = vmatpush1.msra.mxu0 0.0
        %2975 = vmatprep.subr.mxu0 0.0
        %2976 = vmatpush1.msra.mxu0 %v2945
        %2977 = vmatprep.subr.mxu0 0.0
        %2978 = vmatpush1.msra.mxu0 %v2944
        %2979 = vmatprep.subr.mxu0 0.0
        %2980 = vmatpush1.msra.mxu0 %v2943
        %2981 = vmatprep.subr.mxu0 0.0
        %2982 = vmatpush1.msra.mxu0 %v2942
        %2983 = vmatprep.subr.mxu0 0.0
        %2984 = vmatpush2.msra.mxu0 0.0
        %2985 = vmatprep.subr.mxu0 0.0
        %2986 = vmatpush2.msra.mxu0 0.0
        %2987 = vmatprep.subr.mxu0 0.0
        %2988 = vmatpush2.msra.mxu0 0.0
        %2989 = vmatprep.subr.mxu0 0.0
        %2990 = vmatpush2.msra.mxu0 0.0
        %2991 = vmatprep.subr.mxu0 0.0
        %2992 = vmatpush2.msra.mxu0 0.0
        %2993 = vmatprep.subr.mxu0 0.0
        %2994 = vmatpush2.msra.mxu0 0.0
        %2995 = vmatprep.subr.mxu0 0.0
        %2996 = vmatpush2.msra.mxu0 0.0
        %2997 = vmatprep.subr.mxu0 0.0
        %2998 = vmatpush2.msra.mxu0 0.0
        %2999 = vmatprep.subr.mxu0 0.0
        %3000 = vmatpush2.msra.mxu0 0.0
        %3001 = vmatprep.subr.mxu0 0.0
        %3002 = vmatpush2.msra.mxu0 0.0
        %3003 = vmatprep.subr.mxu0 0.0
        %3004 = vmatpush2.msra.mxu0 0.0
        %3005 = vmatprep.subr.mxu0 0.0
        %3006 = vmatpush2.msra.mxu0 0.0
        %3007 = vmatprep.subr.mxu0 0.0
        %3008 = vmatpush2.msra.mxu0 0.0
        %3009 = vmatprep.subr.mxu0 0.0
        %3010 = vmatpush2.msra.mxu0 0.0
        %3011 = vmatprep.subr.mxu0 0.0
        %3012 = vmatpush2.msra.mxu0 0.0
        %3013 = vmatprep.subr.mxu0 0.0
        %3014 = vmatpush2.msra.mxu0 0.0
        %3015 = vmatprep.mubr.f32.mxu0 0.0
        %3016 = vmatmul.mubr.f32.gmra.mxu0 %v2467
        %v3017 = vpop.f32.mrf.mxu0
        %v3018 = vadd.f32 %v2950, %v3017
        %v3019 = vpop.f32.mrf.mxu0
        %3020 = vdwg.mxu0
        %s3021 = scalar_lea.vmem %s2, 672
        %v3022 = vld [vmem:[%s3021] sm:$0xff]
        %v3023 = vld [vmem:[%s3021 + $0x8] sm:$0xff]
        %v3024 = vld [vmem:[%s3021 + $0x10] sm:$0xff]
        %v3025 = vld [vmem:[%s3021 + $0x18] sm:$0xff]
        %v3026 = vld [vmem:[%s2460 + $0x10] sm:$0x1]
        %v3027 = vlaneseq
        %v3028 = vshrl.u32 %v3027, 7
        %v3029 = vsub.s32 0, %v3028
        %v3030 = vrot.slane %v3026, %v3029
        %3031 = vmatprep.subr.mxu0 0.0
        %3032 = vmatpush1.msra.mxu0 0.0
        %3033 = vmatprep.subr.mxu0 0.0
        %3034 = vmatpush1.msra.mxu0 0.0
        %3035 = vmatprep.subr.mxu0 0.0
        %3036 = vmatpush1.msra.mxu0 0.0
        %3037 = vmatprep.subr.mxu0 0.0
        %3038 = vmatpush1.msra.mxu0 0.0
        %3039 = vmatprep.subr.mxu0 0.0
        %3040 = vmatpush1.msra.mxu0 0.0
        %3041 = vmatprep.subr.mxu0 0.0
        %3042 = vmatpush1.msra.mxu0 0.0
        %3043 = vmatprep.subr.mxu0 0.0
        %3044 = vmatpush1.msra.mxu0 0.0
        %3045 = vmatprep.subr.mxu0 0.0
        %3046 = vmatpush1.msra.mxu0 0.0
        %3047 = vmatprep.subr.mxu0 0.0
        %3048 = vmatpush1.msra.mxu0 0.0
        %3049 = vmatprep.subr.mxu0 0.0
        %3050 = vmatpush1.msra.mxu0 0.0
        %3051 = vmatprep.subr.mxu0 0.0
        %3052 = vmatpush1.msra.mxu0 0.0
        %3053 = vmatprep.subr.mxu0 0.0
        %3054 = vmatpush1.msra.mxu0 0.0
        %3055 = vmatprep.subr.mxu0 0.0
        %3056 = vmatpush1.msra.mxu0 %v3025
        %3057 = vmatprep.subr.mxu0 0.0
        %3058 = vmatpush1.msra.mxu0 %v3024
        %3059 = vmatprep.subr.mxu0 0.0
        %3060 = vmatpush1.msra.mxu0 %v3023
        %3061 = vmatprep.subr.mxu0 0.0
        %3062 = vmatpush1.msra.mxu0 %v3022
        %3063 = vmatprep.subr.mxu0 0.0
        %3064 = vmatpush2.msra.mxu0 0.0
        %3065 = vmatprep.subr.mxu0 0.0
        %3066 = vmatpush2.msra.mxu0 0.0
        %3067 = vmatprep.subr.mxu0 0.0
        %3068 = vmatpush2.msra.mxu0 0.0
        %3069 = vmatprep.subr.mxu0 0.0
        %3070 = vmatpush2.msra.mxu0 0.0
        %3071 = vmatprep.subr.mxu0 0.0
        %3072 = vmatpush2.msra.mxu0 0.0
        %3073 = vmatprep.subr.mxu0 0.0
        %3074 = vmatpush2.msra.mxu0 0.0
        %3075 = vmatprep.subr.mxu0 0.0
        %3076 = vmatpush2.msra.mxu0 0.0
        %3077 = vmatprep.subr.mxu0 0.0
        %3078 = vmatpush2.msra.mxu0 0.0
        %3079 = vmatprep.subr.mxu0 0.0
        %3080 = vmatpush2.msra.mxu0 0.0
        %3081 = vmatprep.subr.mxu0 0.0
        %3082 = vmatpush2.msra.mxu0 0.0
        %3083 = vmatprep.subr.mxu0 0.0
        %3084 = vmatpush2.msra.mxu0 0.0
        %3085 = vmatprep.subr.mxu0 0.0
        %3086 = vmatpush2.msra.mxu0 0.0
        %3087 = vmatprep.subr.mxu0 0.0
        %3088 = vmatpush2.msra.mxu0 0.0
        %3089 = vmatprep.subr.mxu0 0.0
        %3090 = vmatpush2.msra.mxu0 0.0
        %3091 = vmatprep.subr.mxu0 0.0
        %3092 = vmatpush2.msra.mxu0 0.0
        %3093 = vmatprep.subr.mxu0 0.0
        %3094 = vmatpush2.msra.mxu0 0.0
        %3095 = vmatprep.mubr.f32.mxu0 0.0
        %3096 = vmatmul.mubr.f32.gmra.mxu0 %v2467
        %v3097 = vpop.f32.mrf.mxu0
        %v3098 = vadd.f32 %v3030, %v3097
        %v3099 = vpop.f32.mrf.mxu0
        %3100 = vdwg.mxu0
        %v3102 = vsel %vm538, %v2938, 0
        %v3105 = vsel %vm538, %v3018, 0
        %3107 = vmatprep.subr.mxu0 0.0
        %3108 = vmatpush1.xpose.msra.mxu0 0.0
        %3109 = vmatprep.subr.mxu0 0.0
        %3110 = vmatpush1.xpose.msra.mxu0 0.0
        %3111 = vmatprep.subr.mxu0 0.0
        %3112 = vmatpush1.xpose.msra.mxu0 0.0
        %3113 = vmatprep.subr.mxu0 0.0
        %3114 = vmatpush1.xpose.msra.mxu0 0.0
        %3115 = vmatprep.subr.mxu0 0.0
        %3116 = vmatpush1.xpose.msra.mxu0 0.0
        %3117 = vmatprep.subr.mxu0 0.0
        %3118 = vmatpush1.xpose.msra.mxu0 0.0
        %3119 = vmatprep.subr.mxu0 0.0
        %3120 = vmatpush1.xpose.msra.mxu0 0.0
        %3121 = vmatprep.subr.mxu0 0.0
        %3122 = vmatpush1.xpose.msra.mxu0 0.0
        %3123 = vmatprep.subr.mxu0 0.0
        %3124 = vmatpush1.xpose.msra.mxu0 0.0
        %3125 = vmatprep.subr.mxu0 0.0
        %3126 = vmatpush1.xpose.msra.mxu0 0.0
        %3127 = vmatprep.subr.mxu0 0.0
        %3128 = vmatpush1.xpose.msra.mxu0 0.0
        %3129 = vmatprep.subr.mxu0 0.0
        %3130 = vmatpush1.xpose.msra.mxu0 0.0
        %3131 = vmatprep.subr.mxu0 0.0
        %3132 = vmatpush1.xpose.msra.mxu0 0.0
        %3133 = vmatprep.subr.mxu0 0.0
        %3134 = vmatpush1.xpose.msra.mxu0 0.0
        %3135 = vmatprep.subr.mxu0 0.0
        %3136 = vmatpush1.xpose.msra.mxu0 0.0
        %3137 = vmatprep.subr.mxu0 0.0
        %3138 = vmatpush1.xpose.msra.mxu0 %v3105
        %3139 = vmatprep.subr.mxu0 0.0
        %3140 = vmatpush2.xpose.msra.mxu0 0.0
        %3141 = vmatprep.subr.mxu0 0.0
        %3142 = vmatpush2.xpose.msra.mxu0 0.0
        %3143 = vmatprep.subr.mxu0 0.0
        %3144 = vmatpush2.xpose.msra.mxu0 0.0
        %3145 = vmatprep.subr.mxu0 0.0
        %3146 = vmatpush2.xpose.msra.mxu0 0.0
        %3147 = vmatprep.subr.mxu0 0.0
        %3148 = vmatpush2.xpose.msra.mxu0 0.0
        %3149 = vmatprep.subr.mxu0 0.0
        %3150 = vmatpush2.xpose.msra.mxu0 0.0
        %3151 = vmatprep.subr.mxu0 0.0
        %3152 = vmatpush2.xpose.msra.mxu0 0.0
        %3153 = vmatprep.subr.mxu0 0.0
        %3154 = vmatpush2.xpose.msra.mxu0 0.0
        %3155 = vmatprep.subr.mxu0 0.0
        %3156 = vmatpush2.xpose.msra.mxu0 0.0
        %3157 = vmatprep.subr.mxu0 0.0
        %3158 = vmatpush2.xpose.msra.mxu0 0.0
        %3159 = vmatprep.subr.mxu0 0.0
        %3160 = vmatpush2.xpose.msra.mxu0 0.0
        %3161 = vmatprep.subr.mxu0 0.0
        %3162 = vmatpush2.xpose.msra.mxu0 0.0
        %3163 = vmatprep.subr.mxu0 0.0
        %3164 = vmatpush2.xpose.msra.mxu0 0.0
        %3165 = vmatprep.subr.mxu0 0.0
        %3166 = vmatpush2.xpose.msra.mxu0 0.0
        %3167 = vmatprep.subr.mxu0 0.0
        %3168 = vmatpush2.xpose.msra.mxu0 0.0
        %3169 = vmatprep.subr.mxu0 0.0
        %3170 = vmatpush2.xpose.msra.mxu0 0.0
        %3171 = vmatprep.mubr.f32.mxu0 0.0
        %3172 = vmatmul.mubr.f32.gmra.mxu0 %v3102
        %v3173 = vpop.f32.mrf.mxu0
        %v3174 = vadd.f32 %v536, %v3173
        %v3175 = vpop.f32.mrf.mxu0
        %3176 = vdwg.mxu0
        %v3177 = vsel %vm538, %v3174, -inf
        %3178 = vmax.xlane.f32.xlu0 %v3177
        %v3179 = vpop.xlane.xlu0 %3178
        %v3180 = vsub.f32 %v3174, %v3179
        %v3181 = vmul.f32 %v3180, 1.442695
        %v3182 = vpow.pop %v3181
        %v3183 = vsel %vm538, %v3182, 0.0
        %3184 = vadd.xlane.f32.xlu0 %v3183
        %v3185 = vpop.xlane.xlu0 %3184
        %v3186 = vrcp.pop %v3185
        %v3187 = vmul.f32 %v3182, %v3186
        %v3189 = vsel %vm538, %v3187, 0
        %3191 = vmatprep.subr.mxu0 0.0
        %3192 = vmatpush1.msra.mxu0 0.0
        %3193 = vmatprep.subr.mxu0 0.0
        %3194 = vmatpush1.msra.mxu0 0.0
        %3195 = vmatprep.subr.mxu0 0.0
        %3196 = vmatpush1.msra.mxu0 0.0
        %3197 = vmatprep.subr.mxu0 0.0
        %3198 = vmatpush1.msra.mxu0 0.0
        %3199 = vmatprep.subr.mxu0 0.0
        %3200 = vmatpush1.msra.mxu0 0.0
        %3201 = vmatprep.subr.mxu0 0.0
        %3202 = vmatpush1.msra.mxu0 0.0
        %3203 = vmatprep.subr.mxu0 0.0
        %3204 = vmatpush1.msra.mxu0 0.0
        %3205 = vmatprep.subr.mxu0 0.0
        %3206 = vmatpush1.msra.mxu0 0.0
        %3207 = vmatprep.subr.mxu0 0.0
        %3208 = vmatpush1.msra.mxu0 0.0
        %3209 = vmatprep.subr.mxu0 0.0
        %3210 = vmatpush1.msra.mxu0 0.0
        %3211 = vmatprep.subr.mxu0 0.0
        %3212 = vmatpush1.msra.mxu0 0.0
        %3213 = vmatprep.subr.mxu0 0.0
        %3214 = vmatpush1.msra.mxu0 0.0
        %3215 = vmatprep.subr.mxu0 0.0
        %3216 = vmatpush1.msra.mxu0 0.0
        %3217 = vmatprep.subr.mxu0 0.0
        %3218 = vmatpush1.msra.mxu0 0.0
        %3219 = vmatprep.subr.mxu0 0.0
        %3220 = vmatpush1.msra.mxu0 0.0
        %3221 = vmatprep.subr.mxu0 0.0
        %3222 = vmatpush1.msra.mxu0 %v3098
        %3223 = vmatprep.subr.mxu0 0.0
        %3224 = vmatpush2.msra.mxu0 0.0
        %3225 = vmatprep.subr.mxu0 0.0
        %3226 = vmatpush2.msra.mxu0 0.0
        %3227 = vmatprep.subr.mxu0 0.0
        %3228 = vmatpush2.msra.mxu0 0.0
        %3229 = vmatprep.subr.mxu0 0.0
        %3230 = vmatpush2.msra.mxu0 0.0
        %3231 = vmatprep.subr.mxu0 0.0
        %3232 = vmatpush2.msra.mxu0 0.0
        %3233 = vmatprep.subr.mxu0 0.0
        %3234 = vmatpush2.msra.mxu0 0.0
        %3235 = vmatprep.subr.mxu0 0.0
        %3236 = vmatpush2.msra.mxu0 0.0
        %3237 = vmatprep.subr.mxu0 0.0
        %3238 = vmatpush2.msra.mxu0 0.0
        %3239 = vmatprep.subr.mxu0 0.0
        %3240 = vmatpush2.msra.mxu0 0.0
        %3241 = vmatprep.subr.mxu0 0.0
        %3242 = vmatpush2.msra.mxu0 0.0
        %3243 = vmatprep.subr.mxu0 0.0
        %3244 = vmatpush2.msra.mxu0 0.0
        %3245 = vmatprep.subr.mxu0 0.0
        %3246 = vmatpush2.msra.mxu0 0.0
        %3247 = vmatprep.subr.mxu0 0.0
        %3248 = vmatpush2.msra.mxu0 0.0
        %3249 = vmatprep.subr.mxu0 0.0
        %3250 = vmatpush2.msra.mxu0 0.0
        %3251 = vmatprep.subr.mxu0 0.0
        %3252 = vmatpush2.msra.mxu0 0.0
        %3253 = vmatprep.subr.mxu0 0.0
        %3254 = vmatpush2.msra.mxu0 0.0
        %3255 = vmatprep.mubr.f32.mxu0 0.0
        %3256 = vmatmul.mubr.f32.gmra.mxu0 %v3189
        %v3257 = vpop.f32.mrf.mxu0
        %v3258 = vadd.f32 0.0, %v3257
        %v3259 = vpop.f32.mrf.mxu0
        %3260 = vdwg.mxu0
        %s3261 = scalar_lea.vmem %s3, 40
        %v3262 = vld [vmem:[%s3261] sm:$0xff]
        %v3264 = vsel %vm538, %v3258, 0
        %3266 = vmatprep.subr.mxu0 0.0
        %3267 = vmatpush1.msra.mxu0 0.0
        %3268 = vmatprep.subr.mxu0 0.0
        %3269 = vmatpush1.msra.mxu0 0.0
        %3270 = vmatprep.subr.mxu0 0.0
        %3271 = vmatpush1.msra.mxu0 0.0
        %3272 = vmatprep.subr.mxu0 0.0
        %3273 = vmatpush1.msra.mxu0 0.0
        %3274 = vmatprep.subr.mxu0 0.0
        %3275 = vmatpush1.msra.mxu0 0.0
        %3276 = vmatprep.subr.mxu0 0.0
        %3277 = vmatpush1.msra.mxu0 0.0
        %3278 = vmatprep.subr.mxu0 0.0
        %3279 = vmatpush1.msra.mxu0 0.0
        %3280 = vmatprep.subr.mxu0 0.0
        %3281 = vmatpush1.msra.mxu0 0.0
        %3282 = vmatprep.subr.mxu0 0.0
        %3283 = vmatpush1.msra.mxu0 0.0
        %3284 = vmatprep.subr.mxu0 0.0
        %3285 = vmatpush1.msra.mxu0 0.0
        %3286 = vmatprep.subr.mxu0 0.0
        %3287 = vmatpush1.msra.mxu0 0.0
        %3288 = vmatprep.subr.mxu0 0.0
        %3289 = vmatpush1.msra.mxu0 0.0
        %3290 = vmatprep.subr.mxu0 0.0
        %3291 = vmatpush1.msra.mxu0 0.0
        %3292 = vmatprep.subr.mxu0 0.0
        %3293 = vmatpush1.msra.mxu0 0.0
        %3294 = vmatprep.subr.mxu0 0.0
        %3295 = vmatpush1.msra.mxu0 0.0
        %3296 = vmatprep.subr.mxu0 0.0
        %3297 = vmatpush1.msra.mxu0 %v3262
        %3298 = vmatprep.subr.mxu0 0.0
        %3299 = vmatpush2.msra.mxu0 0.0
        %3300 = vmatprep.subr.mxu0 0.0
        %3301 = vmatpush2.msra.mxu0 0.0
        %3302 = vmatprep.subr.mxu0 0.0
        %3303 = vmatpush2.msra.mxu0 0.0
        %3304 = vmatprep.subr.mxu0 0.0
        %3305 = vmatpush2.msra.mxu0 0.0
        %3306 = vmatprep.subr.mxu0 0.0
        %3307 = vmatpush2.msra.mxu0 0.0
        %3308 = vmatprep.subr.mxu0 0.0
        %3309 = vmatpush2.msra.mxu0 0.0
        %3310 = vmatprep.subr.mxu0 0.0
        %3311 = vmatpush2.msra.mxu0 0.0
        %3312 = vmatprep.subr.mxu0 0.0
        %3313 = vmatpush2.msra.mxu0 0.0
        %3314 = vmatprep.subr.mxu0 0.0
        %3315 = vmatpush2.msra.mxu0 0.0
        %3316 = vmatprep.subr.mxu0 0.0
        %3317 = vmatpush2.msra.mxu0 0.0
        %3318 = vmatprep.subr.mxu0 0.0
        %3319 = vmatpush2.msra.mxu0 0.0
        %3320 = vmatprep.subr.mxu0 0.0
        %3321 = vmatpush2.msra.mxu0 0.0
        %3322 = vmatprep.subr.mxu0 0.0
        %3323 = vmatpush2.msra.mxu0 0.0
        %3324 = vmatprep.subr.mxu0 0.0
        %3325 = vmatpush2.msra.mxu0 0.0
        %3326 = vmatprep.subr.mxu0 0.0
        %3327 = vmatpush2.msra.mxu0 0.0
        %3328 = vmatprep.subr.mxu0 0.0
        %3329 = vmatpush2.msra.mxu0 0.0
        %3330 = vmatprep.mubr.f32.mxu0 0.0
        %3331 = vmatmul.mubr.f32.gmra.mxu0 %v3264
        %v3332 = vpop.f32.mrf.mxu0
        %v3333 = vadd.f32 0.0, %v3332
        %v3334 = vpop.f32.mrf.mxu0
        %3335 = vdwg.mxu0
        %v3337 = vsel %vm538, %v2856, 0
        %3339 = vmatprep.subr.mxu0 0.0
        %3340 = vmatpush1.msra.mxu0 0.0
        %3341 = vmatprep.subr.mxu0 0.0
        %3342 = vmatpush1.msra.mxu0 0.0
        %3343 = vmatprep.subr.mxu0 0.0
        %3344 = vmatpush1.msra.mxu0 0.0
        %3345 = vmatprep.subr.mxu0 0.0
        %3346 = vmatpush1.msra.mxu0 0.0
        %3347 = vmatprep.subr.mxu0 0.0
        %3348 = vmatpush1.msra.mxu0 0.0
        %3349 = vmatprep.subr.mxu0 0.0
        %3350 = vmatpush1.msra.mxu0 0.0
        %3351 = vmatprep.subr.mxu0 0.0
        %3352 = vmatpush1.msra.mxu0 0.0
        %3353 = vmatprep.subr.mxu0 0.0
        %3354 = vmatpush1.msra.mxu0 0.0
        %3355 = vmatprep.subr.mxu0 0.0
        %3356 = vmatpush1.msra.mxu0 0.0
        %3357 = vmatprep.subr.mxu0 0.0
        %3358 = vmatpush1.msra.mxu0 0.0
        %3359 = vmatprep.subr.mxu0 0.0
        %3360 = vmatpush1.msra.mxu0 0.0
        %3361 = vmatprep.subr.mxu0 0.0
        %3362 = vmatpush1.msra.mxu0 0.0
        %3363 = vmatprep.subr.mxu0 0.0
        %3364 = vmatpush1.msra.mxu0 0.0
        %3365 = vmatprep.subr.mxu0 0.0
        %3366 = vmatpush1.msra.mxu0 0.0
        %3367 = vmatprep.subr.mxu0 0.0
        %3368 = vmatpush1.msra.mxu0 0.0
        %3369 = vmatprep.subr.mxu0 0.0
        %3370 = vmatpush1.msra.mxu0 %v2860
        %3371 = vmatprep.subr.mxu0 0.0
        %3372 = vmatpush2.msra.mxu0 0.0
        %3373 = vmatprep.subr.mxu0 0.0
        %3374 = vmatpush2.msra.mxu0 0.0
        %3375 = vmatprep.subr.mxu0 0.0
        %3376 = vmatpush2.msra.mxu0 0.0
        %3377 = vmatprep.subr.mxu0 0.0
        %3378 = vmatpush2.msra.mxu0 0.0
        %3379 = vmatprep.subr.mxu0 0.0
        %3380 = vmatpush2.msra.mxu0 0.0
        %3381 = vmatprep.subr.mxu0 0.0
        %3382 = vmatpush2.msra.mxu0 0.0
        %3383 = vmatprep.subr.mxu0 0.0
        %3384 = vmatpush2.msra.mxu0 0.0
        %3385 = vmatprep.subr.mxu0 0.0
        %3386 = vmatpush2.msra.mxu0 0.0
        %3387 = vmatprep.subr.mxu0 0.0
        %3388 = vmatpush2.msra.mxu0 0.0
        %3389 = vmatprep.subr.mxu0 0.0
        %3390 = vmatpush2.msra.mxu0 0.0
        %3391 = vmatprep.subr.mxu0 0.0
        %3392 = vmatpush2.msra.mxu0 0.0
        %3393 = vmatprep.subr.mxu0 0.0
        %3394 = vmatpush2.msra.mxu0 0.0
        %3395 = vmatprep.subr.mxu0 0.0
        %3396 = vmatpush2.msra.mxu0 0.0
        %3397 = vmatprep.subr.mxu0 0.0
        %3398 = vmatpush2.msra.mxu0 0.0
        %3399 = vmatprep.subr.mxu0 0.0
        %3400 = vmatpush2.msra.mxu0 0.0
        %3401 = vmatprep.subr.mxu0 0.0
        %3402 = vmatpush2.msra.mxu0 0.0
        %3403 = vmatprep.mubr.f32.mxu0 0.0
        %3404 = vmatmul.mubr.f32.gmra.mxu0 %v3337
        %v3405 = vpop.f32.mrf.mxu0
        %v3406 = vadd.f32 %v3333, %v3405
        %v3407 = vpop.f32.mrf.mxu0
        %3408 = vdwg.mxu0
        %s3409 = scalar_lea.vmem %s2, 448
        %v3410 = vld [vmem:[%s3409] sm:$0xff]
        %v3411 = vld [vmem:[%s3409 + $0x8] sm:$0xff]
        %v3412 = vld [vmem:[%s3409 + $0x10] sm:$0xff]
        %v3413 = vld [vmem:[%s3409 + $0x18] sm:$0xff]
        %v3414 = vld [vmem:[%s2460 + $0x9] sm:$0x1]
        %v3415 = vlaneseq
        %v3416 = vshrl.u32 %v3415, 7
        %v3417 = vsub.s32 0, %v3416
        %v3418 = vrot.slane %v3414, %v3417
        %3419 = vmatprep.subr.mxu0 0.0
        %3420 = vmatpush1.msra.mxu0 0.0
        %3421 = vmatprep.subr.mxu0 0.0
        %3422 = vmatpush1.msra.mxu0 0.0
        %3423 = vmatprep.subr.mxu0 0.0
        %3424 = vmatpush1.msra.mxu0 0.0
        %3425 = vmatprep.subr.mxu0 0.0
        %3426 = vmatpush1.msra.mxu0 0.0
        %3427 = vmatprep.subr.mxu0 0.0
        %3428 = vmatpush1.msra.mxu0 0.0
        %3429 = vmatprep.subr.mxu0 0.0
        %3430 = vmatpush1.msra.mxu0 0.0
        %3431 = vmatprep.subr.mxu0 0.0
        %3432 = vmatpush1.msra.mxu0 0.0
        %3433 = vmatprep.subr.mxu0 0.0
        %3434 = vmatpush1.msra.mxu0 0.0
        %3435 = vmatprep.subr.mxu0 0.0
        %3436 = vmatpush1.msra.mxu0 0.0
        %3437 = vmatprep.subr.mxu0 0.0
        %3438 = vmatpush1.msra.mxu0 0.0
        %3439 = vmatprep.subr.mxu0 0.0
        %3440 = vmatpush1.msra.mxu0 0.0
        %3441 = vmatprep.subr.mxu0 0.0
        %3442 = vmatpush1.msra.mxu0 0.0
        %3443 = vmatprep.subr.mxu0 0.0
        %3444 = vmatpush1.msra.mxu0 %v3413
        %3445 = vmatprep.subr.mxu0 0.0
        %3446 = vmatpush1.msra.mxu0 %v3412
        %3447 = vmatprep.subr.mxu0 0.0
        %3448 = vmatpush1.msra.mxu0 %v3411
        %3449 = vmatprep.subr.mxu0 0.0
        %3450 = vmatpush1.msra.mxu0 %v3410
        %3451 = vmatprep.subr.mxu0 0.0
        %3452 = vmatpush2.msra.mxu0 0.0
        %3453 = vmatprep.subr.mxu0 0.0
        %3454 = vmatpush2.msra.mxu0 0.0
        %3455 = vmatprep.subr.mxu0 0.0
        %3456 = vmatpush2.msra.mxu0 0.0
        %3457 = vmatprep.subr.mxu0 0.0
        %3458 = vmatpush2.msra.mxu0 0.0
        %3459 = vmatprep.subr.mxu0 0.0
        %3460 = vmatpush2.msra.mxu0 0.0
        %3461 = vmatprep.subr.mxu0 0.0
        %3462 = vmatpush2.msra.mxu0 0.0
        %3463 = vmatprep.subr.mxu0 0.0
        %3464 = vmatpush2.msra.mxu0 0.0
        %3465 = vmatprep.subr.mxu0 0.0
        %3466 = vmatpush2.msra.mxu0 0.0
        %3467 = vmatprep.subr.mxu0 0.0
        %3468 = vmatpush2.msra.mxu0 0.0
        %3469 = vmatprep.subr.mxu0 0.0
        %3470 = vmatpush2.msra.mxu0 0.0
        %3471 = vmatprep.subr.mxu0 0.0
        %3472 = vmatpush2.msra.mxu0 0.0
        %3473 = vmatprep.subr.mxu0 0.0
        %3474 = vmatpush2.msra.mxu0 0.0
        %3475 = vmatprep.subr.mxu0 0.0
        %3476 = vmatpush2.msra.mxu0 0.0
        %3477 = vmatprep.subr.mxu0 0.0
        %3478 = vmatpush2.msra.mxu0 0.0
        %3479 = vmatprep.subr.mxu0 0.0
        %3480 = vmatpush2.msra.mxu0 0.0
        %3481 = vmatprep.subr.mxu0 0.0
        %3482 = vmatpush2.msra.mxu0 0.0
        %3483 = vmatprep.mubr.f32.mxu0 0.0
        %3484 = vmatmul.mubr.f32.gmra.mxu0 %v2467
        %v3485 = vpop.f32.mrf.mxu0
        %v3486 = vadd.f32 %v3418, %v3485
        %v3487 = vpop.f32.mrf.mxu0
        %3488 = vdwg.mxu0
        %s3489 = scalar_lea.vmem %s2, 576
        %v3490 = vld [vmem:[%s3489] sm:$0xff]
        %v3491 = vld [vmem:[%s3489 + $0x8] sm:$0xff]
        %v3492 = vld [vmem:[%s3489 + $0x10] sm:$0xff]
        %v3493 = vld [vmem:[%s3489 + $0x18] sm:$0xff]
        %v3494 = vld [vmem:[%s2460 + $0xd] sm:$0x1]
        %v3495 = vlaneseq
        %v3496 = vshrl.u32 %v3495, 7
        %v3497 = vsub.s32 0, %v3496
        %v3498 = vrot.slane %v3494, %v3497
        %3499 = vmatprep.subr.mxu0 0.0
        %3500 = vmatpush1.msra.mxu0 0.0
        %3501 = vmatprep.subr.mxu0 0.0
        %3502 = vmatpush1.msra.mxu0 0.0
        %3503 = vmatprep.subr.mxu0 0.0
        %3504 = vmatpush1.msra.mxu0 0.0
        %3505 = vmatprep.subr.mxu0 0.0
        %3506 = vmatpush1.msra.mxu0 0.0
        %3507 = vmatprep.subr.mxu0 0.0
        %3508 = vmatpush1.msra.mxu0 0.0
        %3509 = vmatprep.subr.mxu0 0.0
        %3510 = vmatpush1.msra.mxu0 0.0
        %3511 = vmatprep.subr.mxu0 0.0
        %3512 = vmatpush1.msra.mxu0 0.0
        %3513 = vmatprep.subr.mxu0 0.0
        %3514 = vmatpush1.msra.mxu0 0.0
        %3515 = vmatprep.subr.mxu0 0.0
        %3516 = vmatpush1.msra.mxu0 0.0
        %3517 = vmatprep.subr.mxu0 0.0
        %3518 = vmatpush1.msra.mxu0 0.0
        %3519 = vmatprep.subr.mxu0 0.0
        %3520 = vmatpush1.msra.mxu0 0.0
        %3521 = vmatprep.subr.mxu0 0.0
        %3522 = vmatpush1.msra.mxu0 0.0
        %3523 = vmatprep.subr.mxu0 0.0
        %3524 = vmatpush1.msra.mxu0 %v3493
        %3525 = vmatprep.subr.mxu0 0.0
        %3526 = vmatpush1.msra.mxu0 %v3492
        %3527 = vmatprep.subr.mxu0 0.0
        %3528 = vmatpush1.msra.mxu0 %v3491
        %3529 = vmatprep.subr.mxu0 0.0
        %3530 = vmatpush1.msra.mxu0 %v3490
        %3531 = vmatprep.subr.mxu0 0.0
        %3532 = vmatpush2.msra.mxu0 0.0
        %3533 = vmatprep.subr.mxu0 0.0
        %3534 = vmatpush2.msra.mxu0 0.0
        %3535 = vmatprep.subr.mxu0 0.0
        %3536 = vmatpush2.msra.mxu0 0.0
        %3537 = vmatprep.subr.mxu0 0.0
        %3538 = vmatpush2.msra.mxu0 0.0
        %3539 = vmatprep.subr.mxu0 0.0
        %3540 = vmatpush2.msra.mxu0 0.0
        %3541 = vmatprep.subr.mxu0 0.0
        %3542 = vmatpush2.msra.mxu0 0.0
        %3543 = vmatprep.subr.mxu0 0.0
        %3544 = vmatpush2.msra.mxu0 0.0
        %3545 = vmatprep.subr.mxu0 0.0
        %3546 = vmatpush2.msra.mxu0 0.0
        %3547 = vmatprep.subr.mxu0 0.0
        %3548 = vmatpush2.msra.mxu0 0.0
        %3549 = vmatprep.subr.mxu0 0.0
        %3550 = vmatpush2.msra.mxu0 0.0
        %3551 = vmatprep.subr.mxu0 0.0
        %3552 = vmatpush2.msra.mxu0 0.0
        %3553 = vmatprep.subr.mxu0 0.0
        %3554 = vmatpush2.msra.mxu0 0.0
        %3555 = vmatprep.subr.mxu0 0.0
        %3556 = vmatpush2.msra.mxu0 0.0
        %3557 = vmatprep.subr.mxu0 0.0
        %3558 = vmatpush2.msra.mxu0 0.0
        %3559 = vmatprep.subr.mxu0 0.0
        %3560 = vmatpush2.msra.mxu0 0.0
        %3561 = vmatprep.subr.mxu0 0.0
        %3562 = vmatpush2.msra.mxu0 0.0
        %3563 = vmatprep.mubr.f32.mxu0 0.0
        %3564 = vmatmul.mubr.f32.gmra.mxu0 %v2467
        %v3565 = vpop.f32.mrf.mxu0
        %v3566 = vadd.f32 %v3498, %v3565
        %v3567 = vpop.f32.mrf.mxu0
        %3568 = vdwg.mxu0
        %s3569 = scalar_lea.vmem %s2, 704
        %v3570 = vld [vmem:[%s3569] sm:$0xff]
        %v3571 = vld [vmem:[%s3569 + $0x8] sm:$0xff]
        %v3572 = vld [vmem:[%s3569 + $0x10] sm:$0xff]
        %v3573 = vld [vmem:[%s3569 + $0x18] sm:$0xff]
        %v3574 = vld [vmem:[%s2460 + $0x11] sm:$0x1]
        %v3575 = vlaneseq
        %v3576 = vshrl.u32 %v3575, 7
        %v3577 = vsub.s32 0, %v3576
        %v3578 = vrot.slane %v3574, %v3577
        %3579 = vmatprep.subr.mxu0 0.0
        %3580 = vmatpush1.msra.mxu0 0.0
        %3581 = vmatprep.subr.mxu0 0.0
        %3582 = vmatpush1.msra.mxu0 0.0
        %3583 = vmatprep.subr.mxu0 0.0
        %3584 = vmatpush1.msra.mxu0 0.0
        %3585 = vmatprep.subr.mxu0 0.0
        %3586 = vmatpush1.msra.mxu0 0.0
        %3587 = vmatprep.subr.mxu0 0.0
        %3588 = vmatpush1.msra.mxu0 0.0
        %3589 = vmatprep.subr.mxu0 0.0
        %3590 = vmatpush1.msra.mxu0 0.0
        %3591 = vmatprep.subr.mxu0 0.0
        %3592 = vmatpush1.msra.mxu0 0.0
        %3593 = vmatprep.subr.mxu0 0.0
        %3594 = vmatpush1.msra.mxu0 0.0
        %3595 = vmatprep.subr.mxu0 0.0
        %3596 = vmatpush1.msra.mxu0 0.0
        %3597 = vmatprep.subr.mxu0 0.0
        %3598 = vmatpush1.msra.mxu0 0.0
        %3599 = vmatprep.subr.mxu0 0.0
        %3600 = vmatpush1.msra.mxu0 0.0
        %3601 = vmatprep.subr.mxu0 0.0
        %3602 = vmatpush1.msra.mxu0 0.0
        %3603 = vmatprep.subr.mxu0 0.0
        %3604 = vmatpush1.msra.mxu0 %v3573
        %3605 = vmatprep.subr.mxu0 0.0
        %3606 = vmatpush1.msra.mxu0 %v3572
        %3607 = vmatprep.subr.mxu0 0.0
        %3608 = vmatpush1.msra.mxu0 %v3571
        %3609 = vmatprep.subr.mxu0 0.0
        %3610 = vmatpush1.msra.mxu0 %v3570
        %3611 = vmatprep.subr.mxu0 0.0
        %3612 = vmatpush2.msra.mxu0 0.0
        %3613 = vmatprep.subr.mxu0 0.0
        %3614 = vmatpush2.msra.mxu0 0.0
        %3615 = vmatprep.subr.mxu0 0.0
        %3616 = vmatpush2.msra.mxu0 0.0
        %3617 = vmatprep.subr.mxu0 0.0
        %3618 = vmatpush2.msra.mxu0 0.0
        %3619 = vmatprep.subr.mxu0 0.0
        %3620 = vmatpush2.msra.mxu0 0.0
        %3621 = vmatprep.subr.mxu0 0.0
        %3622 = vmatpush2.msra.mxu0 0.0
        %3623 = vmatprep.subr.mxu0 0.0
        %3624 = vmatpush2.msra.mxu0 0.0
        %3625 = vmatprep.subr.mxu0 0.0
        %3626 = vmatpush2.msra.mxu0 0.0
        %3627 = vmatprep.subr.mxu0 0.0
        %3628 = vmatpush2.msra.mxu0 0.0
        %3629 = vmatprep.subr.mxu0 0.0
        %3630 = vmatpush2.msra.mxu0 0.0
        %3631 = vmatprep.subr.mxu0 0.0
        %3632 = vmatpush2.msra.mxu0 0.0
        %3633 = vmatprep.subr.mxu0 0.0
        %3634 = vmatpush2.msra.mxu0 0.0
        %3635 = vmatprep.subr.mxu0 0.0
        %3636 = vmatpush2.msra.mxu0 0.0
        %3637 = vmatprep.subr.mxu0 0.0
        %3638 = vmatpush2.msra.mxu0 0.0
        %3639 = vmatprep.subr.mxu0 0.0
        %3640 = vmatpush2.msra.mxu0 0.0
        %3641 = vmatprep.subr.mxu0 0.0
        %3642 = vmatpush2.msra.mxu0 0.0
        %3643 = vmatprep.mubr.f32.mxu0 0.0
        %3644 = vmatmul.mubr.f32.gmra.mxu0 %v2467
        %v3645 = vpop.f32.mrf.mxu0
        %v3646 = vadd.f32 %v3578, %v3645
        %v3647 = vpop.f32.mrf.mxu0
        %3648 = vdwg.mxu0
        %v3650 = vsel %vm538, %v3486, 0
        %v3653 = vsel %vm538, %v3566, 0
        %3655 = vmatprep.subr.mxu0 0.0
        %3656 = vmatpush1.xpose.msra.mxu0 0.0
        %3657 = vmatprep.subr.mxu0 0.0
        %3658 = vmatpush1.xpose.msra.mxu0 0.0
        %3659 = vmatprep.subr.mxu0 0.0
        %3660 = vmatpush1.xpose.msra.mxu0 0.0
        %3661 = vmatprep.subr.mxu0 0.0
        %3662 = vmatpush1.xpose.msra.mxu0 0.0
        %3663 = vmatprep.subr.mxu0 0.0
        %3664 = vmatpush1.xpose.msra.mxu0 0.0
        %3665 = vmatprep.subr.mxu0 0.0
        %3666 = vmatpush1.xpose.msra.mxu0 0.0
        %3667 = vmatprep.subr.mxu0 0.0
        %3668 = vmatpush1.xpose.msra.mxu0 0.0
        %3669 = vmatprep.subr.mxu0 0.0
        %3670 = vmatpush1.xpose.msra.mxu0 0.0
        %3671 = vmatprep.subr.mxu0 0.0
        %3672 = vmatpush1.xpose.msra.mxu0 0.0
        %3673 = vmatprep.subr.mxu0 0.0
        %3674 = vmatpush1.xpose.msra.mxu0 0.0
        %3675 = vmatprep.subr.mxu0 0.0
        %3676 = vmatpush1.xpose.msra.mxu0 0.0
        %3677 = vmatprep.subr.mxu0 0.0
        %3678 = vmatpush1.xpose.msra.mxu0 0.0
        %3679 = vmatprep.subr.mxu0 0.0
        %3680 = vmatpush1.xpose.msra.mxu0 0.0
        %3681 = vmatprep.subr.mxu0 0.0
        %3682 = vmatpush1.xpose.msra.mxu0 0.0
        %3683 = vmatprep.subr.mxu0 0.0
        %3684 = vmatpush1.xpose.msra.mxu0 0.0
        %3685 = vmatprep.subr.mxu0 0.0
        %3686 = vmatpush1.xpose.msra.mxu0 %v3653
        %3687 = vmatprep.subr.mxu0 0.0
        %3688 = vmatpush2.xpose.msra.mxu0 0.0
        %3689 = vmatprep.subr.mxu0 0.0
        %3690 = vmatpush2.xpose.msra.mxu0 0.0
        %3691 = vmatprep.subr.mxu0 0.0
        %3692 = vmatpush2.xpose.msra.mxu0 0.0
        %3693 = vmatprep.subr.mxu0 0.0
        %3694 = vmatpush2.xpose.msra.mxu0 0.0
        %3695 = vmatprep.subr.mxu0 0.0
        %3696 = vmatpush2.xpose.msra.mxu0 0.0
        %3697 = vmatprep.subr.mxu0 0.0
        %3698 = vmatpush2.xpose.msra.mxu0 0.0
        %3699 = vmatprep.subr.mxu0 0.0
        %3700 = vmatpush2.xpose.msra.mxu0 0.0
        %3701 = vmatprep.subr.mxu0 0.0
        %3702 = vmatpush2.xpose.msra.mxu0 0.0
        %3703 = vmatprep.subr.mxu0 0.0
        %3704 = vmatpush2.xpose.msra.mxu0 0.0
        %3705 = vmatprep.subr.mxu0 0.0
        %3706 = vmatpush2.xpose.msra.mxu0 0.0
        %3707 = vmatprep.subr.mxu0 0.0
        %3708 = vmatpush2.xpose.msra.mxu0 0.0
        %3709 = vmatprep.subr.mxu0 0.0
        %3710 = vmatpush2.xpose.msra.mxu0 0.0
        %3711 = vmatprep.subr.mxu0 0.0
        %3712 = vmatpush2.xpose.msra.mxu0 0.0
        %3713 = vmatprep.subr.mxu0 0.0
        %3714 = vmatpush2.xpose.msra.mxu0 0.0
        %3715 = vmatprep.subr.mxu0 0.0
        %3716 = vmatpush2.xpose.msra.mxu0 0.0
        %3717 = vmatprep.subr.mxu0 0.0
        %3718 = vmatpush2.xpose.msra.mxu0 0.0
        %3719 = vmatprep.mubr.f32.mxu0 0.0
        %3720 = vmatmul.mubr.f32.gmra.mxu0 %v3650
        %v3721 = vpop.f32.mrf.mxu0
        %v3722 = vadd.f32 %v536, %v3721
        %v3723 = vpop.f32.mrf.mxu0
        %3724 = vdwg.mxu0
        %v3725 = vsel %vm538, %v3722, -inf
        %3726 = vmax.xlane.f32.xlu0 %v3725
        %v3727 = vpop.xlane.xlu0 %3726
        %v3728 = vsub.f32 %v3722, %v3727
        %v3729 = vmul.f32 %v3728, 1.442695
        %v3730 = vpow.pop %v3729
        %v3731 = vsel %vm538, %v3730, 0.0
        %3732 = vadd.xlane.f32.xlu0 %v3731
        %v3733 = vpop.xlane.xlu0 %3732
        %v3734 = vrcp.pop %v3733
        %v3735 = vmul.f32 %v3730, %v3734
        %v3737 = vsel %vm538, %v3735, 0
        %3739 = vmatprep.subr.mxu0 0.0
        %3740 = vmatpush1.msra.mxu0 0.0
        %3741 = vmatprep.subr.mxu0 0.0
        %3742 = vmatpush1.msra.mxu0 0.0
        %3743 = vmatprep.subr.mxu0 0.0
        %3744 = vmatpush1.msra.mxu0 0.0
        %3745 = vmatprep.subr.mxu0 0.0
        %3746 = vmatpush1.msra.mxu0 0.0
        %3747 = vmatprep.subr.mxu0 0.0
        %3748 = vmatpush1.msra.mxu0 0.0
        %3749 = vmatprep.subr.mxu0 0.0
        %3750 = vmatpush1.msra.mxu0 0.0
        %3751 = vmatprep.subr.mxu0 0.0
        %3752 = vmatpush1.msra.mxu0 0.0
        %3753 = vmatprep.subr.mxu0 0.0
        %3754 = vmatpush1.msra.mxu0 0.0
        %3755 = vmatprep.subr.mxu0 0.0
        %3756 = vmatpush1.msra.mxu0 0.0
        %3757 = vmatprep.subr.mxu0 0.0
        %3758 = vmatpush1.msra.mxu0 0.0
        %3759 = vmatprep.subr.mxu0 0.0
        %3760 = vmatpush1.msra.mxu0 0.0
        %3761 = vmatprep.subr.mxu0 0.0
        %3762 = vmatpush1.msra.mxu0 0.0
        %3763 = vmatprep.subr.mxu0 0.0
        %3764 = vmatpush1.msra.mxu0 0.0
        %3765 = vmatprep.subr.mxu0 0.0
        %3766 = vmatpush1.msra.mxu0 0.0
        %3767 = vmatprep.subr.mxu0 0.0
        %3768 = vmatpush1.msra.mxu0 0.0
        %3769 = vmatprep.subr.mxu0 0.0
        %3770 = vmatpush1.msra.mxu0 %v3646
        %3771 = vmatprep.subr.mxu0 0.0
        %3772 = vmatpush2.msra.mxu0 0.0
        %3773 = vmatprep.subr.mxu0 0.0
        %3774 = vmatpush2.msra.mxu0 0.0
        %3775 = vmatprep.subr.mxu0 0.0
        %3776 = vmatpush2.msra.mxu0 0.0
        %3777 = vmatprep.subr.mxu0 0.0
        %3778 = vmatpush2.msra.mxu0 0.0
        %3779 = vmatprep.subr.mxu0 0.0
        %3780 = vmatpush2.msra.mxu0 0.0
        %3781 = vmatprep.subr.mxu0 0.0
        %3782 = vmatpush2.msra.mxu0 0.0
        %3783 = vmatprep.subr.mxu0 0.0
        %3784 = vmatpush2.msra.mxu0 0.0
        %3785 = vmatprep.subr.mxu0 0.0
        %3786 = vmatpush2.msra.mxu0 0.0
        %3787 = vmatprep.subr.mxu0 0.0
        %3788 = vmatpush2.msra.mxu0 0.0
        %3789 = vmatprep.subr.mxu0 0.0
        %3790 = vmatpush2.msra.mxu0 0.0
        %3791 = vmatprep.subr.mxu0 0.0
        %3792 = vmatpush2.msra.mxu0 0.0
        %3793 = vmatprep.subr.mxu0 0.0
        %3794 = vmatpush2.msra.mxu0 0.0
        %3795 = vmatprep.subr.mxu0 0.0
        %3796 = vmatpush2.msra.mxu0 0.0
        %3797 = vmatprep.subr.mxu0 0.0
        %3798 = vmatpush2.msra.mxu0 0.0
        %3799 = vmatprep.subr.mxu0 0.0
        %3800 = vmatpush2.msra.mxu0 0.0
        %3801 = vmatprep.subr.mxu0 0.0
        %3802 = vmatpush2.msra.mxu0 0.0
        %3803 = vmatprep.mubr.f32.mxu0 0.0
        %3804 = vmatmul.mubr.f32.gmra.mxu0 %v3737
        %v3805 = vpop.f32.mrf.mxu0
        %v3806 = vadd.f32 0.0, %v3805
        %v3807 = vpop.f32.mrf.mxu0
        %3808 = vdwg.mxu0
        %s3809 = scalar_lea.vmem %s3, 48
        %v3810 = vld [vmem:[%s3809] sm:$0xff]
        %v3812 = vsel %vm538, %v3806, 0
        %3814 = vmatprep.subr.mxu0 0.0
        %3815 = vmatpush1.msra.mxu0 0.0
        %3816 = vmatprep.subr.mxu0 0.0
        %3817 = vmatpush1.msra.mxu0 0.0
        %3818 = vmatprep.subr.mxu0 0.0
        %3819 = vmatpush1.msra.mxu0 0.0
        %3820 = vmatprep.subr.mxu0 0.0
        %3821 = vmatpush1.msra.mxu0 0.0
        %3822 = vmatprep.subr.mxu0 0.0
        %3823 = vmatpush1.msra.mxu0 0.0
        %3824 = vmatprep.subr.mxu0 0.0
        %3825 = vmatpush1.msra.mxu0 0.0
        %3826 = vmatprep.subr.mxu0 0.0
        %3827 = vmatpush1.msra.mxu0 0.0
        %3828 = vmatprep.subr.mxu0 0.0
        %3829 = vmatpush1.msra.mxu0 0.0
        %3830 = vmatprep.subr.mxu0 0.0
        %3831 = vmatpush1.msra.mxu0 0.0
        %3832 = vmatprep.subr.mxu0 0.0
        %3833 = vmatpush1.msra.mxu0 0.0
        %3834 = vmatprep.subr.mxu0 0.0
        %3835 = vmatpush1.msra.mxu0 0.0
        %3836 = vmatprep.subr.mxu0 0.0
        %3837 = vmatpush1.msra.mxu0 0.0
        %3838 = vmatprep.subr.mxu0 0.0
        %3839 = vmatpush1.msra.mxu0 0.0
        %3840 = vmatprep.subr.mxu0 0.0
        %3841 = vmatpush1.msra.mxu0 0.0
        %3842 = vmatprep.subr.mxu0 0.0
        %3843 = vmatpush1.msra.mxu0 0.0
        %3844 = vmatprep.subr.mxu0 0.0
        %3845 = vmatpush1.msra.mxu0 %v3810
        %3846 = vmatprep.subr.mxu0 0.0
        %3847 = vmatpush2.msra.mxu0 0.0
        %3848 = vmatprep.subr.mxu0 0.0
        %3849 = vmatpush2.msra.mxu0 0.0
        %3850 = vmatprep.subr.mxu0 0.0
        %3851 = vmatpush2.msra.mxu0 0.0
        %3852 = vmatprep.subr.mxu0 0.0
        %3853 = vmatpush2.msra.mxu0 0.0
        %3854 = vmatprep.subr.mxu0 0.0
        %3855 = vmatpush2.msra.mxu0 0.0
        %3856 = vmatprep.subr.mxu0 0.0
        %3857 = vmatpush2.msra.mxu0 0.0
        %3858 = vmatprep.subr.mxu0 0.0
        %3859 = vmatpush2.msra.mxu0 0.0
        %3860 = vmatprep.subr.mxu0 0.0
        %3861 = vmatpush2.msra.mxu0 0.0
        %3862 = vmatprep.subr.mxu0 0.0
        %3863 = vmatpush2.msra.mxu0 0.0
        %3864 = vmatprep.subr.mxu0 0.0
        %3865 = vmatpush2.msra.mxu0 0.0
        %3866 = vmatprep.subr.mxu0 0.0
        %3867 = vmatpush2.msra.mxu0 0.0
        %3868 = vmatprep.subr.mxu0 0.0
        %3869 = vmatpush2.msra.mxu0 0.0
        %3870 = vmatprep.subr.mxu0 0.0
        %3871 = vmatpush2.msra.mxu0 0.0
        %3872 = vmatprep.subr.mxu0 0.0
        %3873 = vmatpush2.msra.mxu0 0.0
        %3874 = vmatprep.subr.mxu0 0.0
        %3875 = vmatpush2.msra.mxu0 0.0
        %3876 = vmatprep.subr.mxu0 0.0
        %3877 = vmatpush2.msra.mxu0 0.0
        %3878 = vmatprep.mubr.f32.mxu0 0.0
        %3879 = vmatmul.mubr.f32.gmra.mxu0 %v3812
        %v3880 = vpop.f32.mrf.mxu0
        %v3881 = vadd.f32 0.0, %v3880
        %v3882 = vpop.f32.mrf.mxu0
        %3883 = vdwg.mxu0
        %v3884 = vadd.f32 %v3406, %v3881
        %s3885 = scalar_lea.vmem %s2, 480
        %v3886 = vld [vmem:[%s3885] sm:$0xff]
        %v3887 = vld [vmem:[%s3885 + $0x8] sm:$0xff]
        %v3888 = vld [vmem:[%s3885 + $0x10] sm:$0xff]
        %v3889 = vld [vmem:[%s3885 + $0x18] sm:$0xff]
        %v3890 = vld [vmem:[%s2460 + $0xa] sm:$0x1]
        %v3891 = vlaneseq
        %v3892 = vshrl.u32 %v3891, 7
        %v3893 = vsub.s32 0, %v3892
        %v3894 = vrot.slane %v3890, %v3893
        %3895 = vmatprep.subr.mxu0 0.0
        %3896 = vmatpush1.msra.mxu0 0.0
        %3897 = vmatprep.subr.mxu0 0.0
        %3898 = vmatpush1.msra.mxu0 0.0
        %3899 = vmatprep.subr.mxu0 0.0
        %3900 = vmatpush1.msra.mxu0 0.0
        %3901 = vmatprep.subr.mxu0 0.0
        %3902 = vmatpush1.msra.mxu0 0.0
        %3903 = vmatprep.subr.mxu0 0.0
        %3904 = vmatpush1.msra.mxu0 0.0
        %3905 = vmatprep.subr.mxu0 0.0
        %3906 = vmatpush1.msra.mxu0 0.0
        %3907 = vmatprep.subr.mxu0 0.0
        %3908 = vmatpush1.msra.mxu0 0.0
        %3909 = vmatprep.subr.mxu0 0.0
        %3910 = vmatpush1.msra.mxu0 0.0
        %3911 = vmatprep.subr.mxu0 0.0
        %3912 = vmatpush1.msra.mxu0 0.0
        %3913 = vmatprep.subr.mxu0 0.0
        %3914 = vmatpush1.msra.mxu0 0.0
        %3915 = vmatprep.subr.mxu0 0.0
        %3916 = vmatpush1.msra.mxu0 0.0
        %3917 = vmatprep.subr.mxu0 0.0
        %3918 = vmatpush1.msra.mxu0 0.0
        %3919 = vmatprep.subr.mxu0 0.0
        %3920 = vmatpush1.msra.mxu0 %v3889
        %3921 = vmatprep.subr.mxu0 0.0
        %3922 = vmatpush1.msra.mxu0 %v3888
        %3923 = vmatprep.subr.mxu0 0.0
        %3924 = vmatpush1.msra.mxu0 %v3887
        %3925 = vmatprep.subr.mxu0 0.0
        %3926 = vmatpush1.msra.mxu0 %v3886
        %3927 = vmatprep.subr.mxu0 0.0
        %3928 = vmatpush2.msra.mxu0 0.0
        %3929 = vmatprep.subr.mxu0 0.0
        %3930 = vmatpush2.msra.mxu0 0.0
        %3931 = vmatprep.subr.mxu0 0.0
        %3932 = vmatpush2.msra.mxu0 0.0
        %3933 = vmatprep.subr.mxu0 0.0
        %3934 = vmatpush2.msra.mxu0 0.0
        %3935 = vmatprep.subr.mxu0 0.0
        %3936 = vmatpush2.msra.mxu0 0.0
        %3937 = vmatprep.subr.mxu0 0.0
        %3938 = vmatpush2.msra.mxu0 0.0
        %3939 = vmatprep.subr.mxu0 0.0
        %3940 = vmatpush2.msra.mxu0 0.0
        %3941 = vmatprep.subr.mxu0 0.0
        %3942 = vmatpush2.msra.mxu0 0.0
        %3943 = vmatprep.subr.mxu0 0.0
        %3944 = vmatpush2.msra.mxu0 0.0
        %3945 = vmatprep.subr.mxu0 0.0
        %3946 = vmatpush2.msra.mxu0 0.0
        %3947 = vmatprep.subr.mxu0 0.0
        %3948 = vmatpush2.msra.mxu0 0.0
        %3949 = vmatprep.subr.mxu0 0.0
        %3950 = vmatpush2.msra.mxu0 0.0
        %3951 = vmatprep.subr.mxu0 0.0
        %3952 = vmatpush2.msra.mxu0 0.0
        %3953 = vmatprep.subr.mxu0 0.0
        %3954 = vmatpush2.msra.mxu0 0.0
        %3955 = vmatprep.subr.mxu0 0.0
        %3956 = vmatpush2.msra.mxu0 0.0
        %3957 = vmatprep.subr.mxu0 0.0
        %3958 = vmatpush2.msra.mxu0 0.0
        %3959 = vmatprep.mubr.f32.mxu0 0.0
        %3960 = vmatmul.mubr.f32.gmra.mxu0 %v2467
        %v3961 = vpop.f32.mrf.mxu0
        %v3962 = vadd.f32 %v3894, %v3961
        %v3963 = vpop.f32.mrf.mxu0
        %3964 = vdwg.mxu0
        %s3965 = scalar_lea.vmem %s2, 608
        %v3966 = vld [vmem:[%s3965] sm:$0xff]
        %v3967 = vld [vmem:[%s3965 + $0x8] sm:$0xff]
        %v3968 = vld [vmem:[%s3965 + $0x10] sm:$0xff]
        %v3969 = vld [vmem:[%s3965 + $0x18] sm:$0xff]
        %v3970 = vld [vmem:[%s2460 + $0xe] sm:$0x1]
        %v3971 = vlaneseq
        %v3972 = vshrl.u32 %v3971, 7
        %v3973 = vsub.s32 0, %v3972
        %v3974 = vrot.slane %v3970, %v3973
        %3975 = vmatprep.subr.mxu0 0.0
        %3976 = vmatpush1.msra.mxu0 0.0
        %3977 = vmatprep.subr.mxu0 0.0
        %3978 = vmatpush1.msra.mxu0 0.0
        %3979 = vmatprep.subr.mxu0 0.0
        %3980 = vmatpush1.msra.mxu0 0.0
        %3981 = vmatprep.subr.mxu0 0.0
        %3982 = vmatpush1.msra.mxu0 0.0
        %3983 = vmatprep.subr.mxu0 0.0
        %3984 = vmatpush1.msra.mxu0 0.0
        %3985 = vmatprep.subr.mxu0 0.0
        %3986 = vmatpush1.msra.mxu0 0.0
        %3987 = vmatprep.subr.mxu0 0.0
        %3988 = vmatpush1.msra.mxu0 0.0
        %3989 = vmatprep.subr.mxu0 0.0
        %3990 = vmatpush1.msra.mxu0 0.0
        %3991 = vmatprep.subr.mxu0 0.0
        %3992 = vmatpush1.msra.mxu0 0.0
        %3993 = vmatprep.subr.mxu0 0.0
        %3994 = vmatpush1.msra.mxu0 0.0
        %3995 = vmatprep.subr.mxu0 0.0
        %3996 = vmatpush1.msra.mxu0 0.0
        %3997 = vmatprep.subr.mxu0 0.0
        %3998 = vmatpush1.msra.mxu0 0.0
        %3999 = vmatprep.subr.mxu0 0.0
        %4000 = vmatpush1.msra.mxu0 %v3969
        %4001 = vmatprep.subr.mxu0 0.0
        %4002 = vmatpush1.msra.mxu0 %v3968
        %4003 = vmatprep.subr.mxu0 0.0
        %4004 = vmatpush1.msra.mxu0 %v3967
        %4005 = vmatprep.subr.mxu0 0.0
        %4006 = vmatpush1.msra.mxu0 %v3966
        %4007 = vmatprep.subr.mxu0 0.0
        %4008 = vmatpush2.msra.mxu0 0.0
        %4009 = vmatprep.subr.mxu0 0.0
        %4010 = vmatpush2.msra.mxu0 0.0
        %4011 = vmatprep.subr.mxu0 0.0
        %4012 = vmatpush2.msra.mxu0 0.0
        %4013 = vmatprep.subr.mxu0 0.0
        %4014 = vmatpush2.msra.mxu0 0.0
        %4015 = vmatprep.subr.mxu0 0.0
        %4016 = vmatpush2.msra.mxu0 0.0
        %4017 = vmatprep.subr.mxu0 0.0
        %4018 = vmatpush2.msra.mxu0 0.0
        %4019 = vmatprep.subr.mxu0 0.0
        %4020 = vmatpush2.msra.mxu0 0.0
        %4021 = vmatprep.subr.mxu0 0.0
        %4022 = vmatpush2.msra.mxu0 0.0
        %4023 = vmatprep.subr.mxu0 0.0
        %4024 = vmatpush2.msra.mxu0 0.0
        %4025 = vmatprep.subr.mxu0 0.0
        %4026 = vmatpush2.msra.mxu0 0.0
        %4027 = vmatprep.subr.mxu0 0.0
        %4028 = vmatpush2.msra.mxu0 0.0
        %4029 = vmatprep.subr.mxu0 0.0
        %4030 = vmatpush2.msra.mxu0 0.0
        %4031 = vmatprep.subr.mxu0 0.0
        %4032 = vmatpush2.msra.mxu0 0.0
        %4033 = vmatprep.subr.mxu0 0.0
        %4034 = vmatpush2.msra.mxu0 0.0
        %4035 = vmatprep.subr.mxu0 0.0
        %4036 = vmatpush2.msra.mxu0 0.0
        %4037 = vmatprep.subr.mxu0 0.0
        %4038 = vmatpush2.msra.mxu0 0.0
        %4039 = vmatprep.mubr.f32.mxu0 0.0
        %4040 = vmatmul.mubr.f32.gmra.mxu0 %v2467
        %v4041 = vpop.f32.mrf.mxu0
        %v4042 = vadd.f32 %v3974, %v4041
        %v4043 = vpop.f32.mrf.mxu0
        %4044 = vdwg.mxu0
        %s4045 = scalar_lea.vmem %s2, 736
        %v4046 = vld [vmem:[%s4045] sm:$0xff]
        %v4047 = vld [vmem:[%s4045 + $0x8] sm:$0xff]
        %v4048 = vld [vmem:[%s4045 + $0x10] sm:$0xff]
        %v4049 = vld [vmem:[%s4045 + $0x18] sm:$0xff]
        %v4050 = vld [vmem:[%s2460 + $0x12] sm:$0x1]
        %v4051 = vlaneseq
        %v4052 = vshrl.u32 %v4051, 7
        %v4053 = vsub.s32 0, %v4052
        %v4054 = vrot.slane %v4050, %v4053
        %4055 = vmatprep.subr.mxu0 0.0
        %4056 = vmatpush1.msra.mxu0 0.0
        %4057 = vmatprep.subr.mxu0 0.0
        %4058 = vmatpush1.msra.mxu0 0.0
        %4059 = vmatprep.subr.mxu0 0.0
        %4060 = vmatpush1.msra.mxu0 0.0
        %4061 = vmatprep.subr.mxu0 0.0
        %4062 = vmatpush1.msra.mxu0 0.0
        %4063 = vmatprep.subr.mxu0 0.0
        %4064 = vmatpush1.msra.mxu0 0.0
        %4065 = vmatprep.subr.mxu0 0.0
        %4066 = vmatpush1.msra.mxu0 0.0
        %4067 = vmatprep.subr.mxu0 0.0
        %4068 = vmatpush1.msra.mxu0 0.0
        %4069 = vmatprep.subr.mxu0 0.0
        %4070 = vmatpush1.msra.mxu0 0.0
        %4071 = vmatprep.subr.mxu0 0.0
        %4072 = vmatpush1.msra.mxu0 0.0
        %4073 = vmatprep.subr.mxu0 0.0
        %4074 = vmatpush1.msra.mxu0 0.0
        %4075 = vmatprep.subr.mxu0 0.0
        %4076 = vmatpush1.msra.mxu0 0.0
        %4077 = vmatprep.subr.mxu0 0.0
        %4078 = vmatpush1.msra.mxu0 0.0
        %4079 = vmatprep.subr.mxu0 0.0
        %4080 = vmatpush1.msra.mxu0 %v4049
        %4081 = vmatprep.subr.mxu0 0.0
        %4082 = vmatpush1.msra.mxu0 %v4048
        %4083 = vmatprep.subr.mxu0 0.0
        %4084 = vmatpush1.msra.mxu0 %v4047
        %4085 = vmatprep.subr.mxu0 0.0
        %4086 = vmatpush1.msra.mxu0 %v4046
        %4087 = vmatprep.subr.mxu0 0.0
        %4088 = vmatpush2.msra.mxu0 0.0
        %4089 = vmatprep.subr.mxu0 0.0
        %4090 = vmatpush2.msra.mxu0 0.0
        %4091 = vmatprep.subr.mxu0 0.0
        %4092 = vmatpush2.msra.mxu0 0.0
        %4093 = vmatprep.subr.mxu0 0.0
        %4094 = vmatpush2.msra.mxu0 0.0
        %4095 = vmatprep.subr.mxu0 0.0
        %4096 = vmatpush2.msra.mxu0 0.0
        %4097 = vmatprep.subr.mxu0 0.0
        %4098 = vmatpush2.msra.mxu0 0.0
        %4099 = vmatprep.subr.mxu0 0.0
        %4100 = vmatpush2.msra.mxu0 0.0
        %4101 = vmatprep.subr.mxu0 0.0
        %4102 = vmatpush2.msra.mxu0 0.0
        %4103 = vmatprep.subr.mxu0 0.0
        %4104 = vmatpush2.msra.mxu0 0.0
        %4105 = vmatprep.subr.mxu0 0.0
        %4106 = vmatpush2.msra.mxu0 0.0
        %4107 = vmatprep.subr.mxu0 0.0
        %4108 = vmatpush2.msra.mxu0 0.0
        %4109 = vmatprep.subr.mxu0 0.0
        %4110 = vmatpush2.msra.mxu0 0.0
        %4111 = vmatprep.subr.mxu0 0.0
        %4112 = vmatpush2.msra.mxu0 0.0
        %4113 = vmatprep.subr.mxu0 0.0
        %4114 = vmatpush2.msra.mxu0 0.0
        %4115 = vmatprep.subr.mxu0 0.0
        %4116 = vmatpush2.msra.mxu0 0.0
        %4117 = vmatprep.subr.mxu0 0.0
        %4118 = vmatpush2.msra.mxu0 0.0
        %4119 = vmatprep.mubr.f32.mxu0 0.0
        %4120 = vmatmul.mubr.f32.gmra.mxu0 %v2467
        %v4121 = vpop.f32.mrf.mxu0
        %v4122 = vadd.f32 %v4054, %v4121
        %v4123 = vpop.f32.mrf.mxu0
        %4124 = vdwg.mxu0
        %v4126 = vsel %vm538, %v3962, 0
        %v4129 = vsel %vm538, %v4042, 0
        %4131 = vmatprep.subr.mxu0 0.0
        %4132 = vmatpush1.xpose.msra.mxu0 0.0
        %4133 = vmatprep.subr.mxu0 0.0
        %4134 = vmatpush1.xpose.msra.mxu0 0.0
        %4135 = vmatprep.subr.mxu0 0.0
        %4136 = vmatpush1.xpose.msra.mxu0 0.0
        %4137 = vmatprep.subr.mxu0 0.0
        %4138 = vmatpush1.xpose.msra.mxu0 0.0
        %4139 = vmatprep.subr.mxu0 0.0
        %4140 = vmatpush1.xpose.msra.mxu0 0.0
        %4141 = vmatprep.subr.mxu0 0.0
        %4142 = vmatpush1.xpose.msra.mxu0 0.0
        %4143 = vmatprep.subr.mxu0 0.0
        %4144 = vmatpush1.xpose.msra.mxu0 0.0
        %4145 = vmatprep.subr.mxu0 0.0
        %4146 = vmatpush1.xpose.msra.mxu0 0.0
        %4147 = vmatprep.subr.mxu0 0.0
        %4148 = vmatpush1.xpose.msra.mxu0 0.0
        %4149 = vmatprep.subr.mxu0 0.0
        %4150 = vmatpush1.xpose.msra.mxu0 0.0
        %4151 = vmatprep.subr.mxu0 0.0
        %4152 = vmatpush1.xpose.msra.mxu0 0.0
        %4153 = vmatprep.subr.mxu0 0.0
        %4154 = vmatpush1.xpose.msra.mxu0 0.0
        %4155 = vmatprep.subr.mxu0 0.0
        %4156 = vmatpush1.xpose.msra.mxu0 0.0
        %4157 = vmatprep.subr.mxu0 0.0
        %4158 = vmatpush1.xpose.msra.mxu0 0.0
        %4159 = vmatprep.subr.mxu0 0.0
        %4160 = vmatpush1.xpose.msra.mxu0 0.0
        %4161 = vmatprep.subr.mxu0 0.0
        %4162 = vmatpush1.xpose.msra.mxu0 %v4129
        %4163 = vmatprep.subr.mxu0 0.0
        %4164 = vmatpush2.xpose.msra.mxu0 0.0
        %4165 = vmatprep.subr.mxu0 0.0
        %4166 = vmatpush2.xpose.msra.mxu0 0.0
        %4167 = vmatprep.subr.mxu0 0.0
        %4168 = vmatpush2.xpose.msra.mxu0 0.0
        %4169 = vmatprep.subr.mxu0 0.0
        %4170 = vmatpush2.xpose.msra.mxu0 0.0
        %4171 = vmatprep.subr.mxu0 0.0
        %4172 = vmatpush2.xpose.msra.mxu0 0.0
        %4173 = vmatprep.subr.mxu0 0.0
        %4174 = vmatpush2.xpose.msra.mxu0 0.0
        %4175 = vmatprep.subr.mxu0 0.0
        %4176 = vmatpush2.xpose.msra.mxu0 0.0
        %4177 = vmatprep.subr.mxu0 0.0
        %4178 = vmatpush2.xpose.msra.mxu0 0.0
        %4179 = vmatprep.subr.mxu0 0.0
        %4180 = vmatpush2.xpose.msra.mxu0 0.0
        %4181 = vmatprep.subr.mxu0 0.0
        %4182 = vmatpush2.xpose.msra.mxu0 0.0
        %4183 = vmatprep.subr.mxu0 0.0
        %4184 = vmatpush2.xpose.msra.mxu0 0.0
        %4185 = vmatprep.subr.mxu0 0.0
        %4186 = vmatpush2.xpose.msra.mxu0 0.0
        %4187 = vmatprep.subr.mxu0 0.0
        %4188 = vmatpush2.xpose.msra.mxu0 0.0
        %4189 = vmatprep.subr.mxu0 0.0
        %4190 = vmatpush2.xpose.msra.mxu0 0.0
        %4191 = vmatprep.subr.mxu0 0.0
        %4192 = vmatpush2.xpose.msra.mxu0 0.0
        %4193 = vmatprep.subr.mxu0 0.0
        %4194 = vmatpush2.xpose.msra.mxu0 0.0
        %4195 = vmatprep.mubr.f32.mxu0 0.0
        %4196 = vmatmul.mubr.f32.gmra.mxu0 %v4126
        %v4197 = vpop.f32.mrf.mxu0
        %v4198 = vadd.f32 %v536, %v4197
        %v4199 = vpop.f32.mrf.mxu0
        %4200 = vdwg.mxu0
        %v4201 = vsel %vm538, %v4198, -inf
        %4202 = vmax.xlane.f32.xlu0 %v4201
        %v4203 = vpop.xlane.xlu0 %4202
        %v4204 = vsub.f32 %v4198, %v4203
        %v4205 = vmul.f32 %v4204, 1.442695
        %v4206 = vpow.pop %v4205
        %v4207 = vsel %vm538, %v4206, 0.0
        %4208 = vadd.xlane.f32.xlu0 %v4207
        %v4209 = vpop.xlane.xlu0 %4208
        %v4210 = vrcp.pop %v4209
        %v4211 = vmul.f32 %v4206, %v4210
        %v4213 = vsel %vm538, %v4211, 0
        %4215 = vmatprep.subr.mxu0 0.0
        %4216 = vmatpush1.msra.mxu0 0.0
        %4217 = vmatprep.subr.mxu0 0.0
        %4218 = vmatpush1.msra.mxu0 0.0
        %4219 = vmatprep.subr.mxu0 0.0
        %4220 = vmatpush1.msra.mxu0 0.0
        %4221 = vmatprep.subr.mxu0 0.0
        %4222 = vmatpush1.msra.mxu0 0.0
        %4223 = vmatprep.subr.mxu0 0.0
        %4224 = vmatpush1.msra.mxu0 0.0
        %4225 = vmatprep.subr.mxu0 0.0
        %4226 = vmatpush1.msra.mxu0 0.0
        %4227 = vmatprep.subr.mxu0 0.0
        %4228 = vmatpush1.msra.mxu0 0.0
        %4229 = vmatprep.subr.mxu0 0.0
        %4230 = vmatpush1.msra.mxu0 0.0
        %4231 = vmatprep.subr.mxu0 0.0
        %4232 = vmatpush1.msra.mxu0 0.0
        %4233 = vmatprep.subr.mxu0 0.0
        %4234 = vmatpush1.msra.mxu0 0.0
        %4235 = vmatprep.subr.mxu0 0.0
        %4236 = vmatpush1.msra.mxu0 0.0
        %4237 = vmatprep.subr.mxu0 0.0
        %4238 = vmatpush1.msra.mxu0 0.0
        %4239 = vmatprep.subr.mxu0 0.0
        %4240 = vmatpush1.msra.mxu0 0.0
        %4241 = vmatprep.subr.mxu0 0.0
        %4242 = vmatpush1.msra.mxu0 0.0
        %4243 = vmatprep.subr.mxu0 0.0
        %4244 = vmatpush1.msra.mxu0 0.0
        %4245 = vmatprep.subr.mxu0 0.0
        %4246 = vmatpush1.msra.mxu0 %v4122
        %4247 = vmatprep.subr.mxu0 0.0
        %4248 = vmatpush2.msra.mxu0 0.0
        %4249 = vmatprep.subr.mxu0 0.0
        %4250 = vmatpush2.msra.mxu0 0.0
        %4251 = vmatprep.subr.mxu0 0.0
        %4252 = vmatpush2.msra.mxu0 0.0
        %4253 = vmatprep.subr.mxu0 0.0
        %4254 = vmatpush2.msra.mxu0 0.0
        %4255 = vmatprep.subr.mxu0 0.0
        %4256 = vmatpush2.msra.mxu0 0.0
        %4257 = vmatprep.subr.mxu0 0.0
        %4258 = vmatpush2.msra.mxu0 0.0
        %4259 = vmatprep.subr.mxu0 0.0
        %4260 = vmatpush2.msra.mxu0 0.0
        %4261 = vmatprep.subr.mxu0 0.0
        %4262 = vmatpush2.msra.mxu0 0.0
        %4263 = vmatprep.subr.mxu0 0.0
        %4264 = vmatpush2.msra.mxu0 0.0
        %4265 = vmatprep.subr.mxu0 0.0
        %4266 = vmatpush2.msra.mxu0 0.0
        %4267 = vmatprep.subr.mxu0 0.0
        %4268 = vmatpush2.msra.mxu0 0.0
        %4269 = vmatprep.subr.mxu0 0.0
        %4270 = vmatpush2.msra.mxu0 0.0
        %4271 = vmatprep.subr.mxu0 0.0
        %4272 = vmatpush2.msra.mxu0 0.0
        %4273 = vmatprep.subr.mxu0 0.0
        %4274 = vmatpush2.msra.mxu0 0.0
        %4275 = vmatprep.subr.mxu0 0.0
        %4276 = vmatpush2.msra.mxu0 0.0
        %4277 = vmatprep.subr.mxu0 0.0
        %4278 = vmatpush2.msra.mxu0 0.0
        %4279 = vmatprep.mubr.f32.mxu0 0.0
        %4280 = vmatmul.mubr.f32.gmra.mxu0 %v4213
        %v4281 = vpop.f32.mrf.mxu0
        %v4282 = vadd.f32 0.0, %v4281
        %v4283 = vpop.f32.mrf.mxu0
        %4284 = vdwg.mxu0
        %s4285 = scalar_lea.vmem %s3, 56
        %v4286 = vld [vmem:[%s4285] sm:$0xff]
        %v4288 = vsel %vm538, %v4282, 0
        %4290 = vmatprep.subr.mxu0 0.0
        %4291 = vmatpush1.msra.mxu0 0.0
        %4292 = vmatprep.subr.mxu0 0.0
        %4293 = vmatpush1.msra.mxu0 0.0
        %4294 = vmatprep.subr.mxu0 0.0
        %4295 = vmatpush1.msra.mxu0 0.0
        %4296 = vmatprep.subr.mxu0 0.0
        %4297 = vmatpush1.msra.mxu0 0.0
        %4298 = vmatprep.subr.mxu0 0.0
        %4299 = vmatpush1.msra.mxu0 0.0
        %4300 = vmatprep.subr.mxu0 0.0
        %4301 = vmatpush1.msra.mxu0 0.0
        %4302 = vmatprep.subr.mxu0 0.0
        %4303 = vmatpush1.msra.mxu0 0.0
        %4304 = vmatprep.subr.mxu0 0.0
        %4305 = vmatpush1.msra.mxu0 0.0
        %4306 = vmatprep.subr.mxu0 0.0
        %4307 = vmatpush1.msra.mxu0 0.0
        %4308 = vmatprep.subr.mxu0 0.0
        %4309 = vmatpush1.msra.mxu0 0.0
        %4310 = vmatprep.subr.mxu0 0.0
        %4311 = vmatpush1.msra.mxu0 0.0
        %4312 = vmatprep.subr.mxu0 0.0
        %4313 = vmatpush1.msra.mxu0 0.0
        %4314 = vmatprep.subr.mxu0 0.0
        %4315 = vmatpush1.msra.mxu0 0.0
        %4316 = vmatprep.subr.mxu0 0.0
        %4317 = vmatpush1.msra.mxu0 0.0
        %4318 = vmatprep.subr.mxu0 0.0
        %4319 = vmatpush1.msra.mxu0 0.0
        %4320 = vmatprep.subr.mxu0 0.0
        %4321 = vmatpush1.msra.mxu0 %v4286
        %4322 = vmatprep.subr.mxu0 0.0
        %4323 = vmatpush2.msra.mxu0 0.0
        %4324 = vmatprep.subr.mxu0 0.0
        %4325 = vmatpush2.msra.mxu0 0.0
        %4326 = vmatprep.subr.mxu0 0.0
        %4327 = vmatpush2.msra.mxu0 0.0
        %4328 = vmatprep.subr.mxu0 0.0
        %4329 = vmatpush2.msra.mxu0 0.0
        %4330 = vmatprep.subr.mxu0 0.0
        %4331 = vmatpush2.msra.mxu0 0.0
        %4332 = vmatprep.subr.mxu0 0.0
        %4333 = vmatpush2.msra.mxu0 0.0
        %4334 = vmatprep.subr.mxu0 0.0
        %4335 = vmatpush2.msra.mxu0 0.0
        %4336 = vmatprep.subr.mxu0 0.0
        %4337 = vmatpush2.msra.mxu0 0.0
        %4338 = vmatprep.subr.mxu0 0.0
        %4339 = vmatpush2.msra.mxu0 0.0
        %4340 = vmatprep.subr.mxu0 0.0
        %4341 = vmatpush2.msra.mxu0 0.0
        %4342 = vmatprep.subr.mxu0 0.0
        %4343 = vmatpush2.msra.mxu0 0.0
        %4344 = vmatprep.subr.mxu0 0.0
        %4345 = vmatpush2.msra.mxu0 0.0
        %4346 = vmatprep.subr.mxu0 0.0
        %4347 = vmatpush2.msra.mxu0 0.0
        %4348 = vmatprep.subr.mxu0 0.0
        %4349 = vmatpush2.msra.mxu0 0.0
        %4350 = vmatprep.subr.mxu0 0.0
        %4351 = vmatpush2.msra.mxu0 0.0
        %4352 = vmatprep.subr.mxu0 0.0
        %4353 = vmatpush2.msra.mxu0 0.0
        %4354 = vmatprep.mubr.f32.mxu0 0.0
        %4355 = vmatmul.mubr.f32.gmra.mxu0 %v4288
        %v4356 = vpop.f32.mrf.mxu0
        %v4357 = vadd.f32 0.0, %v4356
        %v4358 = vpop.f32.mrf.mxu0
        %4359 = vdwg.mxu0
        %v4360 = vadd.f32 %v3884, %v4357
        %v4361 = vld [vmem:[%s2460] sm:$0x1]
        %v4362 = vlaneseq
        %v4363 = vshrl.u32 %v4362, 7
        %v4364 = vsub.s32 0, %v4363
        %v4365 = vrot.slane %v4361, %v4364
        %v4366 = vadd.f32 %v4360, %v4365
        %v4367 = vadd.f32 %v4366, %v2454
        %v4368 = vld [vmem:[%s2460 + $0x1] sm:$0x1]
        %v4369 = vld [vmem:[%s2460 + $0x2] sm:$0x1]
        %v4370 = vsel %vm298, %v4367, 0.0
        %4371 = vadd.xlane.f32.xlu0 %v4370
        %v4372 = vpop.xlane.xlu0 %4371
        %v4373 = vmul.f32 %v4372, %v2212
        %v4374 = vsub.f32 %v4367, %v4373
        %v4375 = vmul.f32 %v4374, %v4374
        %v4376 = vsel %vm298, %v4375, 0.0
        %4377 = vadd.xlane.f32.xlu0 %v4376
        %v4378 = vpop.xlane.xlu0 %4377
        %v4379 = vmul.f32 %v4378, %v2212
        %v4380 = vadd.f32 %v4379, 1e-12
        %v4381 = vrsqrt.pop %v4380
        %v4382 = vmul.f32 %v4374, %v4381
        %v4383 = vlaneseq
        %v4384 = vshrl.u32 %v4383, 7
        %v4385 = vsub.s32 0, %v4384
        %v4386 = vrot.slane %v4368, %v4385
        %v4387 = vmul.f32 %v4382, %v4386
        %v4388 = vlaneseq
        %v4389 = vshrl.u32 %v4388, 7
        %v4390 = vsub.s32 0, %v4389
        %v4391 = vrot.slane %v4369, %v4390
        %v4392 = vadd.f32 %v4387, %v4391
        %s4393 = scalar_lea.vmem %s4, 32
        %v4394 = vld [vmem:[%s4393] sm:$0xff]
        %v4395 = vld [vmem:[%s4393 + $0x8] sm:$0xff]
        %v4396 = vld [vmem:[%s4393 + $0x10] sm:$0xff]
        %v4397 = vld [vmem:[%s4393 + $0x18] sm:$0xff]
        %v4398 = vld [vmem:[%s2460 + $0x3] sm:$0x1]
        %v4399 = vlaneseq
        %v4400 = vshrl.u32 %v4399, 7
        %v4401 = vsub.s32 0, %v4400
        %v4402 = vrot.slane %v4398, %v4401
        %v4404 = vsel %vm298, %v4392, 0
        %4406 = vmatprep.subr.mxu0 0.0
        %4407 = vmatpush1.msra.mxu0 0.0
        %4408 = vmatprep.subr.mxu0 0.0
        %4409 = vmatpush1.msra.mxu0 0.0
        %4410 = vmatprep.subr.mxu0 0.0
        %4411 = vmatpush1.msra.mxu0 0.0
        %4412 = vmatprep.subr.mxu0 0.0
        %4413 = vmatpush1.msra.mxu0 0.0
        %4414 = vmatprep.subr.mxu0 0.0
        %4415 = vmatpush1.msra.mxu0 0.0
        %4416 = vmatprep.subr.mxu0 0.0
        %4417 = vmatpush1.msra.mxu0 0.0
        %4418 = vmatprep.subr.mxu0 0.0
        %4419 = vmatpush1.msra.mxu0 0.0
        %4420 = vmatprep.subr.mxu0 0.0
        %4421 = vmatpush1.msra.mxu0 0.0
        %4422 = vmatprep.subr.mxu0 0.0
        %4423 = vmatpush1.msra.mxu0 0.0
        %4424 = vmatprep.subr.mxu0 0.0
        %4425 = vmatpush1.msra.mxu0 0.0
        %4426 = vmatprep.subr.mxu0 0.0
        %4427 = vmatpush1.msra.mxu0 0.0
        %4428 = vmatprep.subr.mxu0 0.0
        %4429 = vmatpush1.msra.mxu0 0.0
        %4430 = vmatprep.subr.mxu0 0.0
        %4431 = vmatpush1.msra.mxu0 %v4397
        %4432 = vmatprep.subr.mxu0 0.0
        %4433 = vmatpush1.msra.mxu0 %v4396
        %4434 = vmatprep.subr.mxu0 0.0
        %4435 = vmatpush1.msra.mxu0 %v4395
        %4436 = vmatprep.subr.mxu0 0.0
        %4437 = vmatpush1.msra.mxu0 %v4394
        %4438 = vmatprep.subr.mxu0 0.0
        %4439 = vmatpush2.msra.mxu0 0.0
        %4440 = vmatprep.subr.mxu0 0.0
        %4441 = vmatpush2.msra.mxu0 0.0
        %4442 = vmatprep.subr.mxu0 0.0
        %4443 = vmatpush2.msra.mxu0 0.0
        %4444 = vmatprep.subr.mxu0 0.0
        %4445 = vmatpush2.msra.mxu0 0.0
        %4446 = vmatprep.subr.mxu0 0.0
        %4447 = vmatpush2.msra.mxu0 0.0
        %4448 = vmatprep.subr.mxu0 0.0
        %4449 = vmatpush2.msra.mxu0 0.0
        %4450 = vmatprep.subr.mxu0 0.0
        %4451 = vmatpush2.msra.mxu0 0.0
        %4452 = vmatprep.subr.mxu0 0.0
        %4453 = vmatpush2.msra.mxu0 0.0
        %4454 = vmatprep.subr.mxu0 0.0
        %4455 = vmatpush2.msra.mxu0 0.0
        %4456 = vmatprep.subr.mxu0 0.0
        %4457 = vmatpush2.msra.mxu0 0.0
        %4458 = vmatprep.subr.mxu0 0.0
        %4459 = vmatpush2.msra.mxu0 0.0
        %4460 = vmatprep.subr.mxu0 0.0
        %4461 = vmatpush2.msra.mxu0 0.0
        %4462 = vmatprep.subr.mxu0 0.0
        %4463 = vmatpush2.msra.mxu0 0.0
        %4464 = vmatprep.subr.mxu0 0.0
        %4465 = vmatpush2.msra.mxu0 0.0
        %4466 = vmatprep.subr.mxu0 0.0
        %4467 = vmatpush2.msra.mxu0 0.0
        %4468 = vmatprep.subr.mxu0 0.0
        %4469 = vmatpush2.msra.mxu0 0.0
        %4470 = vmatprep.mubr.f32.mxu0 0.0
        %4471 = vmatmul.mubr.f32.gmra.mxu0 %v4404
        %v4472 = vpop.f32.mrf.mxu0
        %v4473 = vadd.f32 %v4402, %v4472
        %v4474 = vpop.f32.mrf.mxu0
        %4475 = vdwg.mxu0
        %v4476 = vmul.f32 %v4473, 0.5
        %v4477 = vmul.f32 %v4473, 0.70710677
        %vm4478 = vcmp.ge.f32.partialorder %v4477, 0.0
        %v4479 = vsel %vm4478, 1.0, -1.0
        %v4480 = vand.u32 2147483647, %v4477
        %v4481 = vmul.f32 %v4480, 0.3275911
        %v4482 = vadd.f32 %v4481, 1.0
        %v4483 = vrcp.pop %v4482
        %v4484 = vmul.f32 1.0, %v4483
        %v4485 = vmul.f32 %v4484, 1.0614054
        %v4486 = vadd.f32 %v4485, -1.4531521
        %v4487 = vmul.f32 %v4486, %v4484
        %v4488 = vadd.f32 %v4487, 1.4214138
        %v4489 = vmul.f32 %v4488, %v4484
        %v4490 = vadd.f32 %v4489, -0.28449672
        %v4491 = vmul.f32 %v4490, %v4484
        %v4492 = vadd.f32 %v4491, 0.2548296
        %v4493 = vmul.f32 %v4492, %v4484
        %v4494 = vsub.f32 0.0, %v4480
        %v4495 = vmul.f32 %v4494, %v4480
        %v4496 = vmul.f32 %v4495, 1.442695
        %v4497 = vpow.pop %v4496
        %v4498 = vmul.f32 %v4493, %v4497
        %v4499 = vsub.f32 1.0, %v4498
        %v4500 = vmul.f32 %v4479, %v4499
        %v4501 = vadd.f32 %v4500, 1.0
        %v4502 = vmul.f32 %v4476, %v4501
        %s4503 = scalar_lea.vmem %s5, 64
        %v4504 = vld [vmem:[%s4503] sm:$0xff]
        %v4505 = vld [vmem:[%s4503 + $0x8] sm:$0xff]
        %v4506 = vld [vmem:[%s4503 + $0x10] sm:$0xff]
        %v4507 = vld [vmem:[%s4503 + $0x18] sm:$0xff]
        %v4508 = vld [vmem:[%s4503 + $0x20] sm:$0xff]
        %v4509 = vld [vmem:[%s4503 + $0x28] sm:$0xff]
        %v4510 = vld [vmem:[%s4503 + $0x30] sm:$0xff]
        %v4511 = vld [vmem:[%s4503 + $0x38] sm:$0xff]
        %v4512 = vld [vmem:[%s2460 + $0x4] sm:$0x1]
        %v4513 = vlaneseq
        %v4514 = vshrl.u32 %v4513, 7
        %v4515 = vsub.s32 0, %v4514
        %v4516 = vrot.slane %v4512, %v4515
        %v4518 = vsel %vm2355, %v4502, 0
        %4520 = vmatprep.subr.mxu0 0.0
        %4521 = vmatpush1.msra.mxu0 0.0
        %4522 = vmatprep.subr.mxu0 0.0
        %4523 = vmatpush1.msra.mxu0 0.0
        %4524 = vmatprep.subr.mxu0 0.0
        %4525 = vmatpush1.msra.mxu0 0.0
        %4526 = vmatprep.subr.mxu0 0.0
        %4527 = vmatpush1.msra.mxu0 0.0
        %4528 = vmatprep.subr.mxu0 0.0
        %4529 = vmatpush1.msra.mxu0 0.0
        %4530 = vmatprep.subr.mxu0 0.0
        %4531 = vmatpush1.msra.mxu0 0.0
        %4532 = vmatprep.subr.mxu0 0.0
        %4533 = vmatpush1.msra.mxu0 0.0
        %4534 = vmatprep.subr.mxu0 0.0
        %4535 = vmatpush1.msra.mxu0 0.0
        %4536 = vmatprep.subr.mxu0 0.0
        %4537 = vmatpush1.msra.mxu0 %v4511
        %4538 = vmatprep.subr.mxu0 0.0
        %4539 = vmatpush1.msra.mxu0 %v4510
        %4540 = vmatprep.subr.mxu0 0.0
        %4541 = vmatpush1.msra.mxu0 %v4509
        %4542 = vmatprep.subr.mxu0 0.0
        %4543 = vmatpush1.msra.mxu0 %v4508
        %4544 = vmatprep.subr.mxu0 0.0
        %4545 = vmatpush1.msra.mxu0 %v4507
        %4546 = vmatprep.subr.mxu0 0.0
        %4547 = vmatpush1.msra.mxu0 %v4506
        %4548 = vmatprep.subr.mxu0 0.0
        %4549 = vmatpush1.msra.mxu0 %v4505
        %4550 = vmatprep.subr.mxu0 0.0
        %4551 = vmatpush1.msra.mxu0 %v4504
        %4552 = vmatprep.subr.mxu0 0.0
        %4553 = vmatpush2.msra.mxu0 0.0
        %4554 = vmatprep.subr.mxu0 0.0
        %4555 = vmatpush2.msra.mxu0 0.0
        %4556 = vmatprep.subr.mxu0 0.0
        %4557 = vmatpush2.msra.mxu0 0.0
        %4558 = vmatprep.subr.mxu0 0.0
        %4559 = vmatpush2.msra.mxu0 0.0
        %4560 = vmatprep.subr.mxu0 0.0
        %4561 = vmatpush2.msra.mxu0 0.0
        %4562 = vmatprep.subr.mxu0 0.0
        %4563 = vmatpush2.msra.mxu0 0.0
        %4564 = vmatprep.subr.mxu0 0.0
        %4565 = vmatpush2.msra.mxu0 0.0
        %4566 = vmatprep.subr.mxu0 0.0
        %4567 = vmatpush2.msra.mxu0 0.0
        %4568 = vmatprep.subr.mxu0 0.0
        %4569 = vmatpush2.msra.mxu0 0.0
        %4570 = vmatprep.subr.mxu0 0.0
        %4571 = vmatpush2.msra.mxu0 0.0
        %4572 = vmatprep.subr.mxu0 0.0
        %4573 = vmatpush2.msra.mxu0 0.0
        %4574 = vmatprep.subr.mxu0 0.0
        %4575 = vmatpush2.msra.mxu0 0.0
        %4576 = vmatprep.subr.mxu0 0.0
        %4577 = vmatpush2.msra.mxu0 0.0
        %4578 = vmatprep.subr.mxu0 0.0
        %4579 = vmatpush2.msra.mxu0 0.0
        %4580 = vmatprep.subr.mxu0 0.0
        %4581 = vmatpush2.msra.mxu0 0.0
        %4582 = vmatprep.subr.mxu0 0.0
        %4583 = vmatpush2.msra.mxu0 0.0
        %4584 = vmatprep.mubr.f32.mxu0 0.0
        %4585 = vmatmul.mubr.f32.gmra.mxu0 %v4518
        %v4586 = vpop.f32.mrf.mxu0
        %v4587 = vadd.f32 %v4516, %v4586
        %v4588 = vpop.f32.mrf.mxu0
        %4589 = vdwg.mxu0
        %v4590 = vadd.f32 %v4587, %v4392
        %v4591 = vld [vmem:[%s2460 + $0x5] sm:$0x1]
        %v4592 = vld [vmem:[%s2460 + $0x6] sm:$0x1]
        %v4593 = vsel %vm298, %v4590, 0.0
        %4594 = vadd.xlane.f32.xlu0 %v4593
        %v4595 = vpop.xlane.xlu0 %4594
        %v4596 = vmul.f32 %v4595, %v2212
        %v4597 = vsub.f32 %v4590, %v4596
        %v4598 = vmul.f32 %v4597, %v4597
        %v4599 = vsel %vm298, %v4598, 0.0
        %4600 = vadd.xlane.f32.xlu0 %v4599
        %v4601 = vpop.xlane.xlu0 %4600
        %v4602 = vmul.f32 %v4601, %v2212
        %v4603 = vadd.f32 %v4602, 1e-12
        %v4604 = vrsqrt.pop %v4603
        %v4605 = vmul.f32 %v4597, %v4604
        %v4606 = vlaneseq
        %v4607 = vshrl.u32 %v4606, 7
        %v4608 = vsub.s32 0, %v4607
        %v4609 = vrot.slane %v4591, %v4608
        %v4610 = vmul.f32 %v4605, %v4609
        %v4611 = vlaneseq
        %v4612 = vshrl.u32 %v4611, 7
        %v4613 = vsub.s32 0, %v4612
        %v4614 = vrot.slane %v4592, %v4613
        %v4615 = vadd.f32 %v4610, %v4614
        %vm4616 = vcmask 253952
        %4617 = vst.msk [vmem:[%s279] sm:$0x1] %vm4616, %v4615
        %s4618 = sand.u32 %s186, 1
        %s4619 = scalar_lea.sflag [#allocation3], %s4618
        %s4620 = sand.u32 %s186, 1
        %s4621 = scalar_lea.vmem [#allocation2], %s4620
        // Predicated region
        $region49: #{tpu_custom_call.1} parent=47 // pred_check
          %p4622 = pneg %p196
        $region50: #{tpu_custom_call.1} parent=47 // pred_check_branch
          %4624 = sbr.rel (%p4622) target = $region52
        $region51: #{tpu_custom_call.1} parent=47 // pred_region
          %s4626 = ssub.s32 16, 16
          %4627 = vsyncadd %s4619, %s4626
          %s4628 = smul.addr %s21, 16
          %s4629 = scalar_lea.hbm %s7, %s4628
          %s4631 = sshll.u32 %s4621, 4
          %s4632 = int_to_ptr.vmem [resolvable:$true] %s4631
          %4634 = dma.vmem_to_hbm [thread:$0]  %s4632, 16, %s4629, %s4619
        $region52: #{tpu_custom_call.1} parent=47 // pred_fallthru
          _
      $region48: #{tpu_custom_call.1} parent=5 // pred_fallthru
        _
      %p4635 = scmp.le.s32.totalorder 2, %s16
      // Predicated region
      $region53: #{tpu_custom_call.1} parent=5 // pred_check
        %p4636 = pneg %p4635
      $region54: #{tpu_custom_call.1} parent=5 // pred_check_branch
        %4638 = sbr.rel (%p4636) target = $region56
      $region55: #{tpu_custom_call.1} parent=5 // pred_region
        %s4639 = ssub.s32 %s16, 2
        // Predicated region
        $region57: #{tpu_custom_call.1} parent=55 // pred_check
          %p4640 = pneg %p202
        $region58: #{tpu_custom_call.1} parent=55 // pred_check_branch
          %4642 = sbr.rel (%p4640) target = $region60
        $region59: #{tpu_custom_call.1} parent=55 // pred_region
          %s4643 = sand.u32 %s187, 1
          %s4644 = scalar_lea.sflag [#allocation3], %s4643
          %s4645 = sand.u32 %s187, 1
          %s4646 = scalar_lea.vmem [#allocation2], %s4645
          %4647 = dma.done %s4644, 16
        $region60: #{tpu_custom_call.1} parent=55 // pred_fallthru
          _
      $region56: #{tpu_custom_call.1} parent=5 // pred_fallthru
        _
    $region6: #{tpu_custom_call.1} parent=1 // loop_footer
      %s20 = sadd.s32 1, %s16
    $region7: #{tpu_custom_call.1} parent=1 // loop_footer_branch
      %15 = sbr.rel target = $region3
    $region8: #{tpu_custom_call.1} parent=1 // loop_exit
      _
    %4648 = vsyncpa [#allocation3], 1
    %s4649 = scalar_lea.sflag [#allocation3], 1
    %4650 = vsyncpa %s4649, 1

</llo_original>
